<compile_context>
chip_gen: v7x
topology: tpu7x:2x2x1
jax: 0.10.0
libtpu: 0.0.40
codegen_flags: <defaults>
</compile_context>

<pallas_src>
import functools
import math

import jax
import jax.numpy as jnp
from jax.experimental import pallas as pl
from jax.experimental.pallas import tpu as pltpu


def _ffn_kernel(x_ref, w1_ref, b1_ref, w2_ref, b2_ref, o_ref, acc_ref):
    """Grid = (token blocks, hidden blocks).  Per step:

    x_ref : (tile_m, D)   f32       w1_ref : (D, tile_h)  bf16
    b1_ref: (1, tile_h)   f32       w2_ref : (tile_h, D)  bf16
    b2_ref: (1, D)        f32       o_ref  : (tile_m, D)  f32
    acc_ref: (tile_m, D)  f32 scratch (persists across the hidden axis)
    """
    j = pl.program_id(1)

    @pl.when(j == 0)
    def _():
        acc_ref[...] = jnp.zeros_like(acc_ref)

    # Cast activations to the MXU dtype in-kernel (VPU) instead of paying a
    # wrapper-side astype that costs a full extra HBM read+write pass.
    x = x_ref[...].astype(w1_ref.dtype)
    h = jnp.dot(x, w1_ref[...], preferred_element_type=jnp.float32)
    h = jnp.maximum(h + b1_ref[...], 0.0)
    # TODO(synk): dropout is identity (inference/eval mode); training-mode
    # dropout would use pltpu.prng_seed / pltpu.prng_random_bits + 1/(1-p).
    acc_ref[...] += jnp.dot(h.astype(w2_ref.dtype), w2_ref[...],
                            preferred_element_type=jnp.float32)

    @pl.when(j == pl.num_programs(1) - 1)
    def _():
        o_ref[...] = (acc_ref[...] + b2_ref[...]).astype(o_ref.dtype)


def _pick_tiles(M, D, H, tile_m, tile_h):
    """Static (trace-time) tile selection."""
    if tile_m is None:
        tile_m = 512 if D <= 256 else 256          # amortize per-step overhead
    m_ceil = -(-M // 8) * 8                        # round M up to sublane mult
    tile_m = max(8, min(tile_m, m_ceil))           # stays a multiple of 8

    if tile_h is None:
        tile_h = H
        if H > 2048:                               # stream wide hidden dims
            for cand in (2048, 1536, 1024, 768, 512, 384, 256, 128):
                if H % cand == 0:
                    tile_h = cand
                    break
    if H % tile_h != 0:
        # Partial hidden blocks would feed undefined data into the reduction;
        # keep the split exact (fall back to a single resident block).
        tile_h = H
    return tile_m, tile_h


@functools.partial(jax.jit, static_argnames=("tile_m", "tile_h"))
def feed_forward(x, w1, b1, w2, b2, *, tile_m=None, tile_h=None):
    """x: (..., D) float32.  w1:(D,H) / w2:(H,D) ideally bf16, b1/b2 f32."""
    orig_shape = x.shape
    out_dtype = x.dtype
    D = orig_shape[-1]
    H = w1.shape[1]

    x2 = x.reshape(-1, D)
    M = x2.shape[0]
    tm, th = _pick_tiles(M, D, H, tile_m, tile_h)
    grid = (pl.cdiv(M, tm), H // th)

    # Biases are tiny; keep them f32 (lane-dense (1, N) layout).
    b1_2d = b1.reshape(1, H).astype(jnp.float32)
    b2_2d = b2.reshape(1, D).astype(jnp.float32)

    # VMEM budget from the actual footprint, clamped to the real per-core VMEM.
    xbytes = x2.dtype.itemsize
    wbytes = jnp.dtype(w1.dtype).itemsize
    obytes = jnp.dtype(out_dtype).itemsize
    need = (2 * tm * D * xbytes            # x tiles (double-buffered)
            + 2 * D * th * wbytes          # W1 column-blocks
            + 2 * th * D * wbytes          # W2 row-blocks
            + 2 * th * 4 + 2 * D * 4       # biases
            + 2 * tm * D * obytes          # out tiles
            + tm * D * 4                   # f32 accumulator scratch
            + 2 * tm * th * 4)             # f32 intermediate (headroom)
    try:
        vmem_cap = int(pltpu.get_tpu_info().vmem_capacity_bytes)
    except Exception:
        vmem_cap = 64 * 1024 * 1024        # conservative (v7x per-core) fallback
    vmem_limit = int(min(max(2 * need, 32 * 1024 * 1024), int(0.8 * vmem_cap)))

    out = pl.pallas_call(
        _ffn_kernel,
        out_shape=jax.ShapeDtypeStruct((M, D), out_dtype),
        grid_spec=pltpu.PrefetchScalarGridSpec(
            num_scalar_prefetch=0,
            grid=grid,
            in_specs=[
                pl.BlockSpec((tm, D), lambda i, j: (i, 0)),   # x tile (f32)
                pl.BlockSpec((D, th), lambda i, j: (0, j)),   # W1 column-block
                pl.BlockSpec((1, th), lambda i, j: (0, j)),   # b1 block
                pl.BlockSpec((th, D), lambda i, j: (j, 0)),   # W2 row-block
                pl.BlockSpec((1, D), lambda i, j: (0, 0)),    # b2
            ],
            out_specs=pl.BlockSpec((tm, D), lambda i, j: (i, 0)),
            scratch_shapes=[pltpu.VMEM((tm, D), jnp.float32)],
        ),
        compiler_params=pltpu.CompilerParams(
            dimension_semantics=("parallel", "arbitrary"),  # tokens || , H reduce
            vmem_limit_bytes=vmem_limit,
        ),
    )(x2, w1, b1_2d, w2, b2_2d)

    return out.reshape(orig_shape)


def init_params(key, embed_dim, *, param_dtype=jnp.bfloat16):
    """nn.Linear-style init; weights stored transposed (x @ W) and pre-cast to
    bf16 ONCE here so no per-call astype/HBM pass is needed."""
    hidden = embed_dim * 4
    k1, k2, k3, k4 = jax.random.split(key, 4)
    bound1 = 1.0 / math.sqrt(embed_dim)
    bound2 = 1.0 / math.sqrt(hidden)
    w1 = jax.random.uniform(k1, (embed_dim, hidden), jnp.float32,
                            -bound1, bound1).astype(param_dtype)
    b1 = jax.random.uniform(k2, (hidden,), jnp.float32, -bound1, bound1)
    w2 = jax.random.uniform(k3, (hidden, embed_dim), jnp.float32,
                            -bound2, bound2).astype(param_dtype)
    b2 = jax.random.uniform(k4, (embed_dim,), jnp.float32, -bound2, bound2)
    return w1, b1, w2, b2


if __name__ == "__main__":
    key = jax.random.PRNGKey(0)
    # D=256 / H=1024: 256-wide contraction & output dims fill the v6e/v7x
    # 256x256 MXU; M = 4*512 = 2048 tokens with tile_m=512 -> 4 grid steps
    # (>= 2 steps per v7x TensorCore under the megacore split).
    batch, seq, embed_dim = 4, 512, 256

    k_x, k_p = jax.random.split(key)
    x = jax.random.normal(k_x, (batch, seq, embed_dim), jnp.float32)
    w1, b1, w2, b2 = init_params(k_p, embed_dim)   # bf16 weights, f32 biases

    # tile_h=512 streams H=1024 in two blocks (exercises the accumulator path).
    out = feed_forward(x, w1, b1, w2, b2, tile_h=512)
    out = jax.block_until_ready(out)

    # Reference with the same bf16 operand rounding (f32 accumulation);
    # dropout == identity in eval mode.
    xr = x.astype(jnp.bfloat16).astype(jnp.float32)
    w1r = w1.astype(jnp.float32)
    w2r = w2.astype(jnp.float32)
    h = jnp.maximum(xr @ w1r + b1, 0.0)
    h = h.astype(jnp.bfloat16).astype(jnp.float32)
    ref = h @ w2r + b2

    assert out.shape == x.shape
    assert out.dtype == x.dtype
    assert jnp.allclose(out, ref, atol=2e-3, rtol=2e-3), \
        float(jnp.max(jnp.abs(out - ref)))

    print("KERNEL_OK")
</pallas_src>

<mosaic_0001>
module attributes {stable_mosaic.version = 11 : i64} {
  func.func @_ffn_kernel(%arg0: i32, %arg1: i32, %arg2: memref<512x256xf32, #tpu.memory_space<vmem>>, %arg3: memref<256x512xbf16, #tpu.memory_space<vmem>>, %arg4: memref<1x512xf32, #tpu.memory_space<vmem>>, %arg5: memref<512x256xbf16, #tpu.memory_space<vmem>>, %arg6: memref<1x256xf32, #tpu.memory_space<vmem>>, %arg7: memref<512x256xf32, #tpu.memory_space<vmem>>, %arg8: memref<512x256xf32, #tpu.memory_space<vmem>>) attributes {dimension_semantics = [#tpu.dimension_semantics<parallel>, #tpu.dimension_semantics<arbitrary>], iteration_bounds = array<i64: 4, 2>, scalar_prefetch = 0 : i64, scratch_operands = 1 : i64, tpu.core_type = #tpu.core_type<tc>, window_params = [{transform_indices = @transform_0, window_bounds = array<i64: 512, 256>}, {transform_indices = @transform_1, window_bounds = array<i64: 256, 512>}, {transform_indices = @transform_2, window_bounds = array<i64: 1, 512>}, {transform_indices = @transform_3, window_bounds = array<i64: 512, 256>}, {pipeline_mode = #tpu.pipeline_mode<synchronous>, transform_indices = @transform_4, window_bounds = array<i64: 1, 256>}, {transform_indices = @transform_5, window_bounds = array<i64: 512, 256>}]} {
    %c0_i32 = arith.constant 0 : i32
    %0 = arith.cmpi eq, %arg1, %c0_i32 : i32
    %1 = arith.extui %0 : i1 to i32
    %c0_i32_0 = arith.constant 0 : i32
    %2 = arith.cmpi ne, %1, %c0_i32_0 : i32
    scf.if %2 {
      %cst_15 = arith.constant 0.000000e+00 : f32
      %21 = vector.broadcast %cst_15 : f32 to vector<512x256xf32>
      %c0_16 = arith.constant 0 : index
      %c0_17 = arith.constant 0 : index
      %22 = vector.load %arg8[%c0_16, %c0_17] : memref<512x256xf32, #tpu.memory_space<vmem>>, vector<512x256xf32>
      tpu.vector_store %arg8[%c0_16, %c0_17], %21 {strides = array<i32>} : memref<512x256xf32, #tpu.memory_space<vmem>>, vector<512x256xf32>,
    } else {
    }
    %c0 = arith.constant 0 : index
    %c0_1 = arith.constant 0 : index
    %3 = vector.load %arg2[%c0, %c0_1] : memref<512x256xf32, #tpu.memory_space<vmem>>, vector<512x256xf32>
    %4 = arith.truncf %3 : vector<512x256xf32> to vector<512x256xbf16>
    %c0_2 = arith.constant 0 : index
    %c0_3 = arith.constant 0 : index
    %5 = vector.load %arg3[%c0_2, %c0_3] : memref<256x512xbf16, #tpu.memory_space<vmem>>, vector<256x512xbf16>
    %cst = arith.constant dense<0.000000e+00> : vector<512x512xf32>
    %6 = tpu.matmul %4, %5, %cst {dimension_numbers = #tpu.dot_dimension_numbers<[1], [0], [0], [1], [0, 0, 1, 1], [], []>} : vector<512x256xbf16>, vector<256x512xbf16>, vector<512x512xf32> -> vector<512x512xf32>
    %c0_4 = arith.constant 0 : index
    %c0_5 = arith.constant 0 : index
    %7 = vector.load %arg4[%c0_4, %c0_5] : memref<1x512xf32, #tpu.memory_space<vmem>>, vector<1x512xf32>
    %8 = vector.broadcast %7 : vector<1x512xf32> to vector<512x512xf32>
    %9 = arith.addf %6, %8 : vector<512x512xf32>
    %cst_6 = arith.constant 0.000000e+00 : f32
    %10 = vector.broadcast %cst_6 : f32 to vector<512x512xf32>
    %11 = arith.maximumf %9, %10 : vector<512x512xf32>
    %c0_7 = arith.constant 0 : index
    %c0_8 = arith.constant 0 : index
    %12 = vector.load %arg8[%c0_7, %c0_8] : memref<512x256xf32, #tpu.memory_space<vmem>>, vector<512x256xf32>
    %13 = arith.truncf %11 : vector<512x512xf32> to vector<512x512xbf16>
    %c0_9 = arith.constant 0 : index
    %c0_10 = arith.constant 0 : index
    %14 = vector.load %arg5[%c0_9, %c0_10] : memref<512x256xbf16, #tpu.memory_space<vmem>>, vector<512x256xbf16>
    %cst_11 = arith.constant dense<0.000000e+00> : vector<512x256xf32>
    %15 = tpu.matmul %13, %14, %cst_11 {dimension_numbers = #tpu.dot_dimension_numbers<[1], [0], [0], [1], [0, 0, 1, 1], [], []>} : vector<512x512xbf16>, vector<512x256xbf16>, vector<512x256xf32> -> vector<512x256xf32>
    %16 = arith.addf %12, %15 : vector<512x256xf32>
    %c0_12 = arith.constant 0 : index
    %c0_13 = arith.constant 0 : index
    %17 = vector.load %arg8[%c0_12, %c0_13] : memref<512x256xf32, #tpu.memory_space<vmem>>, vector<512x256xf32>
    tpu.vector_store %arg8[%c0_12, %c0_13], %16 {strides = array<i32>} : memref<512x256xf32, #tpu.memory_space<vmem>>, vector<512x256xf32>,
    %c1_i32 = arith.constant 1 : i32
    %18 = arith.cmpi eq, %arg1, %c1_i32 : i32
    %19 = arith.extui %18 : i1 to i32
    %c0_i32_14 = arith.constant 0 : i32
    %20 = arith.cmpi ne, %19, %c0_i32_14 : i32
    scf.if %20 {
      %c0_15 = arith.constant 0 : index
      %c0_16 = arith.constant 0 : index
      %21 = vector.load %arg8[%c0_15, %c0_16] : memref<512x256xf32, #tpu.memory_space<vmem>>, vector<512x256xf32>
      %c0_17 = arith.constant 0 : index
      %c0_18 = arith.constant 0 : index
      %22 = vector.load %arg6[%c0_17, %c0_18] : memref<1x256xf32, #tpu.memory_space<vmem>>, vector<1x256xf32>
      %23 = vector.broadcast %22 : vector<1x256xf32> to vector<512x256xf32>
      %24 = arith.addf %21, %23 : vector<512x256xf32>
      %c0_19 = arith.constant 0 : index
      %c0_20 = arith.constant 0 : index
      %25 = vector.load %arg7[%c0_19, %c0_20] : memref<512x256xf32, #tpu.memory_space<vmem>>, vector<512x256xf32>
      tpu.vector_store %arg7[%c0_19, %c0_20], %24 {strides = array<i32>} : memref<512x256xf32, #tpu.memory_space<vmem>>, vector<512x256xf32>,
    } else {
    }
    return
  }
  func.func @transform_0(%arg0: i32, %arg1: i32) -> (i32, i32) {
    %c0_i32 = arith.constant 0 : i32
    %c0_i32_0 = arith.constant 0 : i32
    return %arg0, %c0_i32 : i32, i32
  }
  func.func @transform_1(%arg0: i32, %arg1: i32) -> (i32, i32) {
    %c0_i32 = arith.constant 0 : i32
    %c0_i32_0 = arith.constant 0 : i32
    return %c0_i32, %arg1 : i32, i32
  }
  func.func @transform_2(%arg0: i32, %arg1: i32) -> (i32, i32) {
    %c0_i32 = arith.constant 0 : i32
    %c0_i32_0 = arith.constant 0 : i32
    return %c0_i32, %arg1 : i32, i32
  }
  func.func @transform_3(%arg0: i32, %arg1: i32) -> (i32, i32) {
    %c0_i32 = arith.constant 0 : i32
    %c0_i32_0 = arith.constant 0 : i32
    return %arg1, %c0_i32 : i32, i32
  }
  func.func @transform_4(%arg0: i32, %arg1: i32) -> (i32, i32) {
    %c0_i32 = arith.constant 0 : i32
    %c0_i32_0 = arith.constant 0 : i32
    %c0_i32_1 = arith.constant 0 : i32
    return %c0_i32, %c0_i32_0 : i32, i32
  }
  func.func @transform_5(%arg0: i32, %arg1: i32) -> (i32, i32) {
    %c0_i32 = arith.constant 0 : i32
    %c0_i32_0 = arith.constant 0 : i32
    return %arg0, %c0_i32 : i32, i32
  }
}

</mosaic_0001>

<llo_original>
// kernel: feed_forward.1
$region0: #{feed_forward.1}
  #allocation0 [shape = 'u32[]', space=smem, size = 0x4, offset = 0x4, fixed_abs, tag = 'smem constant byte address 0x4 - core index']
  #allocation1 [shape = 'u32[144,128]{1,0:T(1,128)}', space=vmem, size = 0x12000, scoped, tag = 'internal scratch']
  #allocation2 [shape = 'f32[512,256]{1,0:T(8,128)}', space=vmem, size = 0x80000, scoped, tag = 'scratch operand']
  %s0 = inlined_call_operand.hbm [shape: f32[2048,256], index: 0, kind: input, shape index: {}]
  %s1 = inlined_call_operand.hbm [shape: bf16[256,1024], index: 1, kind: input, shape index: {}]
  %s2 = inlined_call_operand.hbm [shape: f32[1,1024], index: 2, kind: input, shape index: {}]
  %s3 = inlined_call_operand.hbm [shape: bf16[1024,256], index: 3, kind: input, shape index: {}]
  %s4 = inlined_call_operand.hbm [shape: f32[1,256], index: 4, kind: input, shape index: {}]
  %s5 = inlined_call_operand.hbm [shape: f32[2048,256], index: 5, kind: output, shape index: {}]
  %s6 = sld [smem:[#allocation0]]
  $region81: #{feed_forward.1} parent=0
    _
  %s8 = ssub.s32 1, %s6
  %s9 = scalar_select 0, %s8, %s6
  $region1: #{feed_forward.1} parent=0
    #allocation3 [shape = 'u8[1048576]{0}', space=vmem, size = 0x100000, scoped, tag = 'input window, operand 0']
    #allocation4 [shape = 's32[2]{0}', space=sflag, size = 0x8, scoped, tag = 'scoped memory for feed_forward.1']
    #allocation5 [shape = 's32[2]{0}', space=sflag, size = 0x8, scoped, tag = 'scoped memory for feed_forward.1']
    #allocation6 [shape = 'u8[524288]{0}', space=vmem, size = 0x80000, scoped, tag = 'input window, operand 1']
    #allocation7 [shape = 's32[2]{0}', space=sflag, size = 0x8, scoped, tag = 'scoped memory for feed_forward.1']
    #allocation8 [shape = 'u8[4096]{0}', space=vmem, size = 0x1000, scoped, tag = 'input window, operand 2']
    #allocation9 [shape = 'u8[524288]{0}', space=vmem, size = 0x80000, scoped, tag = 'input window, operand 3']
    #allocation10 [shape = 's32[2]{0}', space=sflag, size = 0x8, scoped, tag = 'scoped memory for feed_forward.1']
    #allocation11 [shape = 'u8[1024]{0}', space=vmem, size = 0x400, scoped, tag = 'input window, operand 4, single buffered']
    #allocation12 [shape = 'u8[1048576]{0}', space=vmem, size = 0x100000, scoped, tag = 'output window, operand 0']
    %10 = vsyncpa [#allocation4], 0
    %s11 = scalar_lea.sflag [#allocation4], 1
    %12 = vsyncpa %s11, 0
    %13 = vsyncpa [#allocation7], 0
    %s14 = scalar_lea.sflag [#allocation7], 1
    %15 = vsyncpa %s14, 0
    %16 = vsyncpa [#allocation10], 0
    %s17 = scalar_lea.sflag [#allocation10], 1
    %18 = vsyncpa %s17, 0
    %19 = vsyncpa [#allocation5], 0
    %s20 = scalar_lea.sflag [#allocation5], 1
    %21 = vsyncpa %s20, 0
    loop: start=0, step=1, limit=10
    $region2: #{feed_forward.1} parent=1 // loop_pre_header
      _
    $region3: #{feed_forward.1} parent=1 // loop_header
      %s23 = sphi 0, %s27
      %p24 = scmp.ge.s32.totalorder %s23, 10
      %s30 = sphi 0, %s42
      %s31 = sphi 0, %s38
      %s32 = sphi 0, %s30
      %s33 = sphi 0, %s31
      %s34 = sphi 0, %s32
      %s35 = sphi 0, %s33
      %s45 = sphi 0, %s47
      %s48 = sphi 0, %s45
      %s49 = sphi 0, %s48
      %s65 = sphi 0, %s49
      %s71 = sphi 0, %s73
      %s74 = sphi 0, %s71
      %s75 = sphi 0, %s74
      %s91 = sphi 0, %s75
      %s97 = sphi 0, %s99
      %s100 = sphi 0, %s97
      %s101 = sphi 0, %s100
      %s117 = sphi 0, %s101
      %s123 = sphi 0, %s125
      %s126 = sphi 0, %s123
      %s127 = sphi 0, %s126
      %s143 = sphi 0, %s127
      %s147 = sphi 0, %s147
      %s149 = sphi 0, %s147
      %s150 = sphi 0, %s149
      %s164 = sphi 0, %s150
      %s170 = sphi 0, %s172
      %s173 = sphi 0, %s170
      %s174 = sphi 0, %s173
      %s190 = sphi 0, %s174
    $region4: #{feed_forward.1} parent=1 // loop_header_branch
      %26 = sbr.rel (%p24) target = $region8
    $region5: #{feed_forward.1} parent=1 // loop_body
      %s28 = ssub.s32 %s23, 1
      %s29 = ssub.s32 %s23, 2
      %s36 = sadd.s32 1, %s31
      %p37 = scmp.ge.s32.totalorder %s36, 2
      %s38 = scalar_select %p37, 0, %s36
      %s39 = sadd.s32 1, %s30
      %s40 = scalar_select %p37, %s39, %s30
      %p41 = scmp.ge.s32.totalorder %s40, 4
      %s42 = scalar_select %p41, 0, %s40
      %s43 = ssub.s32 %s30, %s42
      %p44 = scmp.eq.s32.totalorder %s43, 0
      %s46 = sadd.s32 %s45, 1
      %s47 = scalar_select %p44, %s45, %s46
      %p50 = pneg %p44
      %p51 = scmp.eq.s32.totalorder %s23, 7
      %p52 = por %p50, %p51
      %p53 = scmp.ne.s32.totalorder %s45, %s48
      %p54 = scmp.eq.s32.totalorder %s23, 0
      %p55 = por %p53, %p54
      %p56 = scmp.ne.s32.totalorder %s45, %s48
      %p57 = scmp.eq.s32.totalorder %s28, 7
      %p58 = por %p56, %p57
      %p59 = scmp.ne.s32.totalorder %s48, %s49
      %p60 = scmp.eq.s32.totalorder %s28, 0
      %p61 = por %p59, %p60
      %p62 = scmp.ne.s32.totalorder %s48, %s49
      %p63 = scmp.eq.s32.totalorder %s29, 7
      %p64 = por %p62, %p63
      %p66 = scmp.ne.s32.totalorder %s49, %s65
      %p67 = scmp.eq.s32.totalorder %s29, 0
      %p68 = por %p66, %p67
      %s69 = ssub.s32 %s31, %s38
      %p70 = scmp.eq.s32.totalorder %s69, 0
      %s72 = sadd.s32 %s71, 1
      %s73 = scalar_select %p70, %s71, %s72
      %p76 = pneg %p70
      %p77 = scmp.eq.s32.totalorder %s23, 7
      %p78 = por %p76, %p77
      %p79 = scmp.ne.s32.totalorder %s71, %s74
      %p80 = scmp.eq.s32.totalorder %s23, 0
      %p81 = por %p79, %p80
      %p82 = scmp.ne.s32.totalorder %s71, %s74
      %p83 = scmp.eq.s32.totalorder %s28, 7
      %p84 = por %p82, %p83
      %p85 = scmp.ne.s32.totalorder %s74, %s75
      %p86 = scmp.eq.s32.totalorder %s28, 0
      %p87 = por %p85, %p86
      %p88 = scmp.ne.s32.totalorder %s74, %s75
      %p89 = scmp.eq.s32.totalorder %s29, 7
      %p90 = por %p88, %p89
      %p92 = scmp.ne.s32.totalorder %s75, %s91
      %p93 = scmp.eq.s32.totalorder %s29, 0
      %p94 = por %p92, %p93
      %s95 = ssub.s32 %s31, %s38
      %p96 = scmp.eq.s32.totalorder %s95, 0
      %s98 = sadd.s32 %s97, 1
      %s99 = scalar_select %p96, %s97, %s98
      %p102 = pneg %p96
      %p103 = scmp.eq.s32.totalorder %s23, 7
      %p104 = por %p102, %p103
      %p105 = scmp.ne.s32.totalorder %s97, %s100
      %p106 = scmp.eq.s32.totalorder %s23, 0
      %p107 = por %p105, %p106
      %p108 = scmp.ne.s32.totalorder %s97, %s100
      %p109 = scmp.eq.s32.totalorder %s28, 7
      %p110 = por %p108, %p109
      %p111 = scmp.ne.s32.totalorder %s100, %s101
      %p112 = scmp.eq.s32.totalorder %s28, 0
      %p113 = por %p111, %p112
      %p114 = scmp.ne.s32.totalorder %s100, %s101
      %p115 = scmp.eq.s32.totalorder %s29, 7
      %p116 = por %p114, %p115
      %p118 = scmp.ne.s32.totalorder %s101, %s117
      %p119 = scmp.eq.s32.totalorder %s29, 0
      %p120 = por %p118, %p119
      %s121 = ssub.s32 %s31, %s38
      %p122 = scmp.eq.s32.totalorder %s121, 0
      %s124 = sadd.s32 %s123, 1
      %s125 = scalar_select %p122, %s123, %s124
      %p128 = pneg %p122
      %p129 = scmp.eq.s32.totalorder %s23, 7
      %p130 = por %p128, %p129
      %p131 = scmp.ne.s32.totalorder %s123, %s126
      %p132 = scmp.eq.s32.totalorder %s23, 0
      %p133 = por %p131, %p132
      %p134 = scmp.ne.s32.totalorder %s123, %s126
      %p135 = scmp.eq.s32.totalorder %s28, 7
      %p136 = por %p134, %p135
      %p137 = scmp.ne.s32.totalorder %s126, %s127
      %p138 = scmp.eq.s32.totalorder %s28, 0
      %p139 = por %p137, %p138
      %p140 = scmp.ne.s32.totalorder %s126, %s127
      %p141 = scmp.eq.s32.totalorder %s29, 7
      %p142 = por %p140, %p141
      %p144 = scmp.ne.s32.totalorder %s127, %s143
      %p145 = scmp.eq.s32.totalorder %s29, 0
      %p146 = por %p144, %p145
      %s148 = sadd.s32 %s147, 1
      %p151 = scmp.eq.s32.totalorder %s23, 7
      %p152 = scmp.ne.s32.totalorder %s147, %s149
      %p153 = scmp.eq.s32.totalorder %s23, 0
      %p154 = por %p152, %p153
      %p155 = scmp.ne.s32.totalorder %s147, %s149
      %p156 = scmp.eq.s32.totalorder %s28, 7
      %p157 = por %p155, %p156
      %p158 = scmp.ne.s32.totalorder %s149, %s150
      %p159 = scmp.eq.s32.totalorder %s28, 0
      %p160 = por %p158, %p159
      %p161 = scmp.ne.s32.totalorder %s149, %s150
      %p162 = scmp.eq.s32.totalorder %s29, 7
      %p163 = por %p161, %p162
      %p165 = scmp.ne.s32.totalorder %s150, %s164
      %p166 = scmp.eq.s32.totalorder %s29, 0
      %p167 = por %p165, %p166
      %s168 = ssub.s32 %s30, %s42
      %p169 = scmp.eq.s32.totalorder %s168, 0
      %s171 = sadd.s32 %s170, 1
      %s172 = scalar_select %p169, %s170, %s171
      %p175 = pneg %p169
      %p176 = scmp.eq.s32.totalorder %s23, 7
      %p177 = por %p175, %p176
      %p178 = scmp.ne.s32.totalorder %s170, %s173
      %p179 = scmp.eq.s32.totalorder %s23, 0
      %p180 = por %p178, %p179
      %p181 = scmp.ne.s32.totalorder %s170, %s173
      %p182 = scmp.eq.s32.totalorder %s28, 7
      %p183 = por %p181, %p182
      %p184 = scmp.ne.s32.totalorder %s173, %s174
      %p185 = scmp.eq.s32.totalorder %s28, 0
      %p186 = por %p184, %p185
      %p187 = scmp.ne.s32.totalorder %s173, %s174
      %p188 = scmp.eq.s32.totalorder %s29, 7
      %p189 = por %p187, %p188
      %p191 = scmp.ne.s32.totalorder %s174, %s190
      %p192 = scmp.eq.s32.totalorder %s29, 0
      %p193 = por %p191, %p192
      %p194 = scmp.le.s32.totalorder 1, %s23
      %p195 = scmp.lt.s32.totalorder %s23, 9
      %p196 = pnand %p194, %p195
      %p197 = pneg %p196
      // Predicated region
      $region9: #{feed_forward.1} parent=5 // pred_check
        _
      $region10: #{feed_forward.1} parent=5 // pred_check_branch
        %199 = sbr.rel (%p196) target = $region12
      $region11: #{feed_forward.1} parent=5 // pred_region
        %s200 = ssub.s32 %s23, 1
        // Predicated region
        $region13: #{feed_forward.1} parent=11 // pred_check
          %p201 = pneg %p160
        $region14: #{feed_forward.1} parent=11 // pred_check_branch
          %203 = sbr.rel (%p201) target = $region16
        $region15: #{feed_forward.1} parent=11 // pred_region
          %s205 = ssub.s32 32, 32
          %206 = vsyncadd [#allocation10], %s205
          %s208 = sshll.u32 [#allocation11], 4
          %s209 = int_to_ptr.vmem [resolvable:$true] %s208
          %211 = dma.hbm_to_vmem [thread:$0]  %s4, 32, %s209, [#allocation10]
        $region16: #{feed_forward.1} parent=11 // pred_fallthru
          _
      $region12: #{feed_forward.1} parent=5 // pred_fallthru
        _
      %p212 = scmp.lt.s32.totalorder %s23, 8
      // Predicated region
      $region17: #{feed_forward.1} parent=5 // pred_check
        %p213 = pneg %p212
      $region18: #{feed_forward.1} parent=5 // pred_check_branch
        %215 = sbr.rel (%p213) target = $region20
      $region19: #{feed_forward.1} parent=5 // pred_region
        // Predicated region
        $region21: #{feed_forward.1} parent=19 // pred_check
          %p216 = pneg %p55
        $region22: #{feed_forward.1} parent=19 // pred_check_branch
          %218 = sbr.rel (%p216) target = $region24
        $region23: #{feed_forward.1} parent=19 // pred_region
          %s219 = sand.u32 %s45, 1
          %s220 = scalar_lea.sflag [#allocation4], %s219
          %s221 = sand.u32 %s45, 1
          %s222 = smul.addr %s221, 1024
          %s223 = scalar_lea.vmem [#allocation3], %s222
          %s224 = smul.u32 64, %s30
          %s226 = ssub.s32 16384, 16384
          %227 = vsyncadd %s220, %s226
          %s228 = smul.addr %s224, 2
          %s229 = smul.addr %s228, 128
          %s230 = scalar_lea.hbm %s0, %s229
          %s231 = sshll.u32 %s223, 4
          %s232 = int_to_ptr.vmem [resolvable:$true] %s231
          %237 = dma.hbm_to_vmem [thread:$0]  %s230, 16384, %s232, %s220, 256, 256, 16
        $region24: #{feed_forward.1} parent=19 // pred_fallthru
          _
        // Predicated region
        $region25: #{feed_forward.1} parent=19 // pred_check
          %p238 = pneg %p81
        $region26: #{feed_forward.1} parent=19 // pred_check_branch
          %240 = sbr.rel (%p238) target = $region28
        $region27: #{feed_forward.1} parent=19 // pred_region
          %s241 = sand.u32 %s23, 1
          %s242 = scalar_lea.sflag [#allocation7], %s241
          %s243 = sand.u32 %s71, 1
          %s244 = smul.addr %s243, 512
          %s245 = scalar_lea.vmem [#allocation6], %s244
          %s246 = smul.u32 4, %s31
          %s248 = ssub.s32 8192, 8192
          %249 = vsyncadd %s242, %s248
          %s250 = smul.addr %s246, 64
          %s251 = scalar_lea.hbm %s1, %s250
          %s252 = sshll.u32 %s245, 4
          %s253 = int_to_ptr.vmem [resolvable:$true] %s252
          %258 = dma.hbm_to_vmem [thread:$0]  %s251, 8192, %s253, %s242, 512, 256, 16
        $region28: #{feed_forward.1} parent=19 // pred_fallthru
          _
        // Predicated region
        $region29: #{feed_forward.1} parent=19 // pred_check
          %p259 = pneg %p107
        $region30: #{feed_forward.1} parent=19 // pred_check_branch
          %261 = sbr.rel (%p259) target = $region32
        $region31: #{feed_forward.1} parent=19 // pred_region
          %s262 = sand.u32 %s23, 1
          %s263 = scalar_lea.sflag [#allocation7], %s262
          %s264 = sand.u32 %s97, 1
          %s265 = smul.addr %s264, 4
          %s266 = scalar_lea.vmem [#allocation8], %s265
          %s267 = smul.u32 4, %s31
          %s269 = ssub.s32 64, 64
          %270 = vsyncadd %s263, %s269
          %s271 = smul.addr %s267, 16
          %s272 = scalar_lea.hbm %s2, %s271
          %s274 = sshll.u32 %s266, 4
          %s275 = int_to_ptr.vmem [resolvable:$true] %s274
          %277 = dma.hbm_to_vmem [thread:$0]  %s272, 64, %s275, %s263
        $region32: #{feed_forward.1} parent=19 // pred_fallthru
          _
        // Predicated region
        $region33: #{feed_forward.1} parent=19 // pred_check
          %p278 = pneg %p133
        $region34: #{feed_forward.1} parent=19 // pred_check_branch
          %280 = sbr.rel (%p278) target = $region36
        $region35: #{feed_forward.1} parent=19 // pred_region
          %s281 = sand.u32 %s23, 1
          %s282 = scalar_lea.sflag [#allocation10], %s281
          %s283 = sand.u32 %s123, 1
          %s284 = smul.addr %s283, 512
          %s285 = scalar_lea.vmem [#allocation9], %s284
          %s286 = smul.u32 64, %s31
          %s288 = ssub.s32 8192, 8192
          %289 = vsyncadd %s282, %s288
          %s290 = smul.addr %s286, 2
          %s291 = smul.addr %s290, 64
          %s292 = scalar_lea.hbm %s3, %s291
          %s293 = sshll.u32 %s285, 4
          %s294 = int_to_ptr.vmem [resolvable:$true] %s293
          %299 = dma.hbm_to_vmem [thread:$0]  %s292, 8192, %s294, %s282, 128, 128, 8
        $region36: #{feed_forward.1} parent=19 // pred_fallthru
          _
      $region20: #{feed_forward.1} parent=5 // pred_fallthru
        _
      %p300 = scmp.le.s32.totalorder 1, %s23
      %p301 = scmp.lt.s32.totalorder %s23, 9
      %p302 = pnand %p300, %p301
      %p303 = pneg %p302
      // Predicated region
      $region37: #{feed_forward.1} parent=5 // pred_check
        _
      $region38: #{feed_forward.1} parent=5 // pred_check_branch
        %305 = sbr.rel (%p302) target = $region40
      $region39: #{feed_forward.1} parent=5 // pred_region
        %s306 = ssub.s32 %s23, 1
        %s307 = sand.u32 %s48, 1
        %s308 = scalar_lea.sflag [#allocation4], %s307
        %s309 = sand.u32 %s48, 1
        %s310 = smul.addr %s309, 1024
        %s311 = scalar_lea.vmem [#allocation3], %s310
        // Predicated region
        $region41: #{feed_forward.1} parent=39 // pred_check
          %p312 = pneg %p61
        $region42: #{feed_forward.1} parent=39 // pred_check_branch
          %314 = sbr.rel (%p312) target = $region44
        $region43: #{feed_forward.1} parent=39 // pred_region
          %315 = dma.done %s308, 16384
        $region44: #{feed_forward.1} parent=39 // pred_fallthru
          _
        %s316 = sand.u32 %s28, 1
        %s317 = scalar_lea.sflag [#allocation7], %s316
        %s318 = sand.u32 %s74, 1
        %s319 = smul.addr %s318, 512
        %s320 = scalar_lea.vmem [#allocation6], %s319
        // Predicated region
        $region45: #{feed_forward.1} parent=39 // pred_check
          %p321 = pneg %p87
        $region46: #{feed_forward.1} parent=39 // pred_check_branch
          %323 = sbr.rel (%p321) target = $region48
        $region47: #{feed_forward.1} parent=39 // pred_region
          %324 = dma.done %s317, 8192
        $region48: #{feed_forward.1} parent=39 // pred_fallthru
          _
        %s325 = sand.u32 %s28, 1
        %s326 = scalar_lea.sflag [#allocation7], %s325
        %s327 = sand.u32 %s100, 1
        %s328 = smul.addr %s327, 4
        %s329 = scalar_lea.vmem [#allocation8], %s328
        // Predicated region
        $region49: #{feed_forward.1} parent=39 // pred_check
          %p330 = pneg %p113
        $region50: #{feed_forward.1} parent=39 // pred_check_branch
          %332 = sbr.rel (%p330) target = $region52
        $region51: #{feed_forward.1} parent=39 // pred_region
          %333 = dma.done %s326, 64
        $region52: #{feed_forward.1} parent=39 // pred_fallthru
          _
        %s334 = sand.u32 %s28, 1
        %s335 = scalar_lea.sflag [#allocation10], %s334
        %s336 = sand.u32 %s126, 1
        %s337 = smul.addr %s336, 512
        %s338 = scalar_lea.vmem [#allocation9], %s337
        // Predicated region
        $region53: #{feed_forward.1} parent=39 // pred_check
          %p339 = pneg %p139
        $region54: #{feed_forward.1} parent=39 // pred_check_branch
          %341 = sbr.rel (%p339) target = $region56
        $region55: #{feed_forward.1} parent=39 // pred_region
          %342 = dma.done %s335, 8192
        $region56: #{feed_forward.1} parent=39 // pred_fallthru
          _
        // Predicated region
        $region57: #{feed_forward.1} parent=39 // pred_check
          %p343 = pneg %p160
        $region58: #{feed_forward.1} parent=39 // pred_check_branch
          %345 = sbr.rel (%p343) target = $region60
        $region59: #{feed_forward.1} parent=39 // pred_region
          %346 = dma.done [#allocation10], 32
        $region60: #{feed_forward.1} parent=39 // pred_fallthru
          _
        %s347 = sand.u32 %s48, 1
        %s348 = scalar_lea.sflag [#allocation4], %s347
        %s349 = sand.u32 %s48, 1
        %s350 = smul.addr %s349, 1024
        %s351 = scalar_lea.vmem [#allocation3], %s350
        %p352 = pneg %p61
        %p353 = pneg %p58
        %s354 = sand.u32 %s28, 1
        %s355 = scalar_lea.sflag [#allocation7], %s354
        %s356 = sand.u32 %s74, 1
        %s357 = smul.addr %s356, 512
        %s358 = scalar_lea.vmem [#allocation6], %s357
        %p359 = pneg %p87
        %p360 = pneg %p84
        %s361 = sand.u32 %s28, 1
        %s362 = scalar_lea.sflag [#allocation7], %s361
        %s363 = sand.u32 %s100, 1
        %s364 = smul.addr %s363, 4
        %s365 = scalar_lea.vmem [#allocation8], %s364
        %p366 = pneg %p113
        %p367 = pneg %p110
        %s368 = sand.u32 %s28, 1
        %s369 = scalar_lea.sflag [#allocation10], %s368
        %s370 = sand.u32 %s126, 1
        %s371 = smul.addr %s370, 512
        %s372 = scalar_lea.vmem [#allocation9], %s371
        %p373 = pneg %p139
        %p374 = pneg %p136
        %p375 = pneg %p160
        %p376 = pneg %p157
        %p377 = pneg %p186
        %p378 = pneg %p183
        %s379 = sand.u32 %s173, 1
        %s380 = scalar_lea.sflag [#allocation5], %s379
        %s381 = sand.u32 %s173, 1
        %s382 = smul.addr %s381, 1024
        %s383 = scalar_lea.vmem [#allocation12], %s382
        %s384 = smul.u32 64, %s32
        %s385 = smul.u32 4, %s33
        %s386 = smul.u32 4, %s33
        %s387 = smul.u32 64, %s33
        %s388 = smul.u32 64, %s32
        %p389 = scmp.eq.s32.totalorder %s33, 0
        // Predicated region
        $region61: #{feed_forward.1} parent=39 // pred_check
          %p390 = pneg %p389
        $region62: #{feed_forward.1} parent=39 // pred_check_branch
          %392 = sbr.rel (%p390) target = $region64
        $region63: #{feed_forward.1} parent=39 // pred_region
          %393 = vst [vmem:[#allocation2] sm:$0xff] 0.0
          %394 = vst [vmem:[#allocation2 + $0x8] sm:$0xff] 0.0
          %395 = vst [vmem:[#allocation2 + $0x10] sm:$0xff] 0.0
          %396 = vst [vmem:[#allocation2 + $0x18] sm:$0xff] 0.0
          %397 = vst [vmem:[#allocation2 + $0x20] sm:$0xff] 0.0
          %398 = vst [vmem:[#allocation2 + $0x28] sm:$0xff] 0.0
          %399 = vst [vmem:[#allocation2 + $0x30] sm:$0xff] 0.0
          %400 = vst [vmem:[#allocation2 + $0x38] sm:$0xff] 0.0
          %401 = vst [vmem:[#allocation2 + $0x40] sm:$0xff] 0.0
          %402 = vst [vmem:[#allocation2 + $0x48] sm:$0xff] 0.0
          %403 = vst [vmem:[#allocation2 + $0x50] sm:$0xff] 0.0
          %404 = vst [vmem:[#allocation2 + $0x58] sm:$0xff] 0.0
          %405 = vst [vmem:[#allocation2 + $0x60] sm:$0xff] 0.0
          %406 = vst [vmem:[#allocation2 + $0x68] sm:$0xff] 0.0
          %407 = vst [vmem:[#allocation2 + $0x70] sm:$0xff] 0.0
          %408 = vst [vmem:[#allocation2 + $0x78] sm:$0xff] 0.0
          %409 = vst [vmem:[#allocation2 + $0x80] sm:$0xff] 0.0
          %410 = vst [vmem:[#allocation2 + $0x88] sm:$0xff] 0.0
          %411 = vst [vmem:[#allocation2 + $0x90] sm:$0xff] 0.0
          %412 = vst [vmem:[#allocation2 + $0x98] sm:$0xff] 0.0
          %413 = vst [vmem:[#allocation2 + $0xa0] sm:$0xff] 0.0
          %414 = vst [vmem:[#allocation2 + $0xa8] sm:$0xff] 0.0
          %415 = vst [vmem:[#allocation2 + $0xb0] sm:$0xff] 0.0
          %416 = vst [vmem:[#allocation2 + $0xb8] sm:$0xff] 0.0
          %417 = vst [vmem:[#allocation2 + $0xc0] sm:$0xff] 0.0
          %418 = vst [vmem:[#allocation2 + $0xc8] sm:$0xff] 0.0
          %419 = vst [vmem:[#allocation2 + $0xd0] sm:$0xff] 0.0
          %420 = vst [vmem:[#allocation2 + $0xd8] sm:$0xff] 0.0
          %421 = vst [vmem:[#allocation2 + $0xe0] sm:$0xff] 0.0
          %422 = vst [vmem:[#allocation2 + $0xe8] sm:$0xff] 0.0
          %423 = vst [vmem:[#allocation2 + $0xf0] sm:$0xff] 0.0
          %424 = vst [vmem:[#allocation2 + $0xf8] sm:$0xff] 0.0
          %425 = vst [vmem:[#allocation2 + $0x100] sm:$0xff] 0.0
          %426 = vst [vmem:[#allocation2 + $0x108] sm:$0xff] 0.0
          %427 = vst [vmem:[#allocation2 + $0x110] sm:$0xff] 0.0
          %428 = vst [vmem:[#allocation2 + $0x118] sm:$0xff] 0.0
          %429 = vst [vmem:[#allocation2 + $0x120] sm:$0xff] 0.0
          %430 = vst [vmem:[#allocation2 + $0x128] sm:$0xff] 0.0
          %431 = vst [vmem:[#allocation2 + $0x130] sm:$0xff] 0.0
          %432 = vst [vmem:[#allocation2 + $0x138] sm:$0xff] 0.0
          %433 = vst [vmem:[#allocation2 + $0x140] sm:$0xff] 0.0
          %434 = vst [vmem:[#allocation2 + $0x148] sm:$0xff] 0.0
          %435 = vst [vmem:[#allocation2 + $0x150] sm:$0xff] 0.0
          %436 = vst [vmem:[#allocation2 + $0x158] sm:$0xff] 0.0
          %437 = vst [vmem:[#allocation2 + $0x160] sm:$0xff] 0.0
          %438 = vst [vmem:[#allocation2 + $0x168] sm:$0xff] 0.0
          %439 = vst [vmem:[#allocation2 + $0x170] sm:$0xff] 0.0
          %440 = vst [vmem:[#allocation2 + $0x178] sm:$0xff] 0.0
          %441 = vst [vmem:[#allocation2 + $0x180] sm:$0xff] 0.0
          %442 = vst [vmem:[#allocation2 + $0x188] sm:$0xff] 0.0
          %443 = vst [vmem:[#allocation2 + $0x190] sm:$0xff] 0.0
          %444 = vst [vmem:[#allocation2 + $0x198] sm:$0xff] 0.0
          %445 = vst [vmem:[#allocation2 + $0x1a0] sm:$0xff] 0.0
          %446 = vst [vmem:[#allocation2 + $0x1a8] sm:$0xff] 0.0
          %447 = vst [vmem:[#allocation2 + $0x1b0] sm:$0xff] 0.0
          %448 = vst [vmem:[#allocation2 + $0x1b8] sm:$0xff] 0.0
          %449 = vst [vmem:[#allocation2 + $0x1c0] sm:$0xff] 0.0
          %450 = vst [vmem:[#allocation2 + $0x1c8] sm:$0xff] 0.0
          %451 = vst [vmem:[#allocation2 + $0x1d0] sm:$0xff] 0.0
          %452 = vst [vmem:[#allocation2 + $0x1d8] sm:$0xff] 0.0
          %453 = vst [vmem:[#allocation2 + $0x1e0] sm:$0xff] 0.0
          %454 = vst [vmem:[#allocation2 + $0x1e8] sm:$0xff] 0.0
          %455 = vst [vmem:[#allocation2 + $0x1f0] sm:$0xff] 0.0
          %456 = vst [vmem:[#allocation2 + $0x1f8] sm:$0xff] 0.0
          %457 = vst [vmem:[#allocation2 + $0x200] sm:$0xff] 0.0
          %458 = vst [vmem:[#allocation2 + $0x208] sm:$0xff] 0.0
          %459 = vst [vmem:[#allocation2 + $0x210] sm:$0xff] 0.0
          %460 = vst [vmem:[#allocation2 + $0x218] sm:$0xff] 0.0
          %461 = vst [vmem:[#allocation2 + $0x220] sm:$0xff] 0.0
          %462 = vst [vmem:[#allocation2 + $0x228] sm:$0xff] 0.0
          %463 = vst [vmem:[#allocation2 + $0x230] sm:$0xff] 0.0
          %464 = vst [vmem:[#allocation2 + $0x238] sm:$0xff] 0.0
          %465 = vst [vmem:[#allocation2 + $0x240] sm:$0xff] 0.0
          %466 = vst [vmem:[#allocation2 + $0x248] sm:$0xff] 0.0
          %467 = vst [vmem:[#allocation2 + $0x250] sm:$0xff] 0.0
          %468 = vst [vmem:[#allocation2 + $0x258] sm:$0xff] 0.0
          %469 = vst [vmem:[#allocation2 + $0x260] sm:$0xff] 0.0
          %470 = vst [vmem:[#allocation2 + $0x268] sm:$0xff] 0.0
          %471 = vst [vmem:[#allocation2 + $0x270] sm:$0xff] 0.0
          %472 = vst [vmem:[#allocation2 + $0x278] sm:$0xff] 0.0
          %473 = vst [vmem:[#allocation2 + $0x280] sm:$0xff] 0.0
          %474 = vst [vmem:[#allocation2 + $0x288] sm:$0xff] 0.0
          %475 = vst [vmem:[#allocation2 + $0x290] sm:$0xff] 0.0
          %476 = vst [vmem:[#allocation2 + $0x298] sm:$0xff] 0.0
          %477 = vst [vmem:[#allocation2 + $0x2a0] sm:$0xff] 0.0
          %478 = vst [vmem:[#allocation2 + $0x2a8] sm:$0xff] 0.0
          %479 = vst [vmem:[#allocation2 + $0x2b0] sm:$0xff] 0.0
          %480 = vst [vmem:[#allocation2 + $0x2b8] sm:$0xff] 0.0
          %481 = vst [vmem:[#allocation2 + $0x2c0] sm:$0xff] 0.0
          %482 = vst [vmem:[#allocation2 + $0x2c8] sm:$0xff] 0.0
          %483 = vst [vmem:[#allocation2 + $0x2d0] sm:$0xff] 0.0
          %484 = vst [vmem:[#allocation2 + $0x2d8] sm:$0xff] 0.0
          %485 = vst [vmem:[#allocation2 + $0x2e0] sm:$0xff] 0.0
          %486 = vst [vmem:[#allocation2 + $0x2e8] sm:$0xff] 0.0
          %487 = vst [vmem:[#allocation2 + $0x2f0] sm:$0xff] 0.0
          %488 = vst [vmem:[#allocation2 + $0x2f8] sm:$0xff] 0.0
          %489 = vst [vmem:[#allocation2 + $0x300] sm:$0xff] 0.0
          %490 = vst [vmem:[#allocation2 + $0x308] sm:$0xff] 0.0
          %491 = vst [vmem:[#allocation2 + $0x310] sm:$0xff] 0.0
          %492 = vst [vmem:[#allocation2 + $0x318] sm:$0xff] 0.0
          %493 = vst [vmem:[#allocation2 + $0x320] sm:$0xff] 0.0
          %494 = vst [vmem:[#allocation2 + $0x328] sm:$0xff] 0.0
          %495 = vst [vmem:[#allocation2 + $0x330] sm:$0xff] 0.0
          %496 = vst [vmem:[#allocation2 + $0x338] sm:$0xff] 0.0
          %497 = vst [vmem:[#allocation2 + $0x340] sm:$0xff] 0.0
          %498 = vst [vmem:[#allocation2 + $0x348] sm:$0xff] 0.0
          %499 = vst [vmem:[#allocation2 + $0x350] sm:$0xff] 0.0
          %500 = vst [vmem:[#allocation2 + $0x358] sm:$0xff] 0.0
          %501 = vst [vmem:[#allocation2 + $0x360] sm:$0xff] 0.0
          %502 = vst [vmem:[#allocation2 + $0x368] sm:$0xff] 0.0
          %503 = vst [vmem:[#allocation2 + $0x370] sm:$0xff] 0.0
          %504 = vst [vmem:[#allocation2 + $0x378] sm:$0xff] 0.0
          %505 = vst [vmem:[#allocation2 + $0x380] sm:$0xff] 0.0
          %506 = vst [vmem:[#allocation2 + $0x388] sm:$0xff] 0.0
          %507 = vst [vmem:[#allocation2 + $0x390] sm:$0xff] 0.0
          %508 = vst [vmem:[#allocation2 + $0x398] sm:$0xff] 0.0
          %509 = vst [vmem:[#allocation2 + $0x3a0] sm:$0xff] 0.0
          %510 = vst [vmem:[#allocation2 + $0x3a8] sm:$0xff] 0.0
          %511 = vst [vmem:[#allocation2 + $0x3b0] sm:$0xff] 0.0
          %512 = vst [vmem:[#allocation2 + $0x3b8] sm:$0xff] 0.0
          %513 = vst [vmem:[#allocation2 + $0x3c0] sm:$0xff] 0.0
          %514 = vst [vmem:[#allocation2 + $0x3c8] sm:$0xff] 0.0
          %515 = vst [vmem:[#allocation2 + $0x3d0] sm:$0xff] 0.0
          %516 = vst [vmem:[#allocation2 + $0x3d8] sm:$0xff] 0.0
          %517 = vst [vmem:[#allocation2 + $0x3e0] sm:$0xff] 0.0
          %518 = vst [vmem:[#allocation2 + $0x3e8] sm:$0xff] 0.0
          %519 = vst [vmem:[#allocation2 + $0x3f0] sm:$0xff] 0.0
          %520 = vst [vmem:[#allocation2 + $0x3f8] sm:$0xff] 0.0
        $region64: #{feed_forward.1} parent=39 // pred_fallthru
          _
        %v521 = vld [vmem:[%s311] sm:$0xff]
        %v522 = vld [vmem:[%s311 + $0x8] sm:$0xff]
        %v523 = vld [vmem:[%s311 + $0x10] sm:$0xff]
        %v524 = vld [vmem:[%s311 + $0x18] sm:$0xff]
        %v525 = vld [vmem:[%s311 + $0x20] sm:$0xff]
        %v526 = vld [vmem:[%s311 + $0x28] sm:$0xff]
        %v527 = vld [vmem:[%s311 + $0x30] sm:$0xff]
        %v528 = vld [vmem:[%s311 + $0x38] sm:$0xff]
        %v529 = vld [vmem:[%s311 + $0x40] sm:$0xff]
        %v530 = vld [vmem:[%s311 + $0x48] sm:$0xff]
        %v531 = vld [vmem:[%s311 + $0x50] sm:$0xff]
        %v532 = vld [vmem:[%s311 + $0x58] sm:$0xff]
        %v533 = vld [vmem:[%s311 + $0x60] sm:$0xff]
        %v534 = vld [vmem:[%s311 + $0x68] sm:$0xff]
        %v535 = vld [vmem:[%s311 + $0x70] sm:$0xff]
        %v536 = vld [vmem:[%s311 + $0x78] sm:$0xff]
        %v537 = vld [vmem:[%s311 + $0x80] sm:$0xff]
        %v538 = vld [vmem:[%s311 + $0x88] sm:$0xff]
        %v539 = vld [vmem:[%s311 + $0x90] sm:$0xff]
        %v540 = vld [vmem:[%s311 + $0x98] sm:$0xff]
        %v541 = vld [vmem:[%s311 + $0xa0] sm:$0xff]
        %v542 = vld [vmem:[%s311 + $0xa8] sm:$0xff]
        %v543 = vld [vmem:[%s311 + $0xb0] sm:$0xff]
        %v544 = vld [vmem:[%s311 + $0xb8] sm:$0xff]
        %v545 = vld [vmem:[%s311 + $0xc0] sm:$0xff]
        %v546 = vld [vmem:[%s311 + $0xc8] sm:$0xff]
        %v547 = vld [vmem:[%s311 + $0xd0] sm:$0xff]
        %v548 = vld [vmem:[%s311 + $0xd8] sm:$0xff]
        %v549 = vld [vmem:[%s311 + $0xe0] sm:$0xff]
        %v550 = vld [vmem:[%s311 + $0xe8] sm:$0xff]
        %v551 = vld [vmem:[%s311 + $0xf0] sm:$0xff]
        %v552 = vld [vmem:[%s311 + $0xf8] sm:$0xff]
        %v553 = vld [vmem:[%s311 + $0x100] sm:$0xff]
        %v554 = vld [vmem:[%s311 + $0x108] sm:$0xff]
        %v555 = vld [vmem:[%s311 + $0x110] sm:$0xff]
        %v556 = vld [vmem:[%s311 + $0x118] sm:$0xff]
        %v557 = vld [vmem:[%s311 + $0x120] sm:$0xff]
        %v558 = vld [vmem:[%s311 + $0x128] sm:$0xff]
        %v559 = vld [vmem:[%s311 + $0x130] sm:$0xff]
        %v560 = vld [vmem:[%s311 + $0x138] sm:$0xff]
        %v561 = vld [vmem:[%s311 + $0x140] sm:$0xff]
        %v562 = vld [vmem:[%s311 + $0x148] sm:$0xff]
        %v563 = vld [vmem:[%s311 + $0x150] sm:$0xff]
        %v564 = vld [vmem:[%s311 + $0x158] sm:$0xff]
        %v565 = vld [vmem:[%s311 + $0x160] sm:$0xff]
        %v566 = vld [vmem:[%s311 + $0x168] sm:$0xff]
        %v567 = vld [vmem:[%s311 + $0x170] sm:$0xff]
        %v568 = vld [vmem:[%s311 + $0x178] sm:$0xff]
        %v569 = vld [vmem:[%s311 + $0x180] sm:$0xff]
        %v570 = vld [vmem:[%s311 + $0x188] sm:$0xff]
        %v571 = vld [vmem:[%s311 + $0x190] sm:$0xff]
        %v572 = vld [vmem:[%s311 + $0x198] sm:$0xff]
        %v573 = vld [vmem:[%s311 + $0x1a0] sm:$0xff]
        %v574 = vld [vmem:[%s311 + $0x1a8] sm:$0xff]
        %v575 = vld [vmem:[%s311 + $0x1b0] sm:$0xff]
        %v576 = vld [vmem:[%s311 + $0x1b8] sm:$0xff]
        %v577 = vld [vmem:[%s311 + $0x1c0] sm:$0xff]
        %v578 = vld [vmem:[%s311 + $0x1c8] sm:$0xff]
        %v579 = vld [vmem:[%s311 + $0x1d0] sm:$0xff]
        %v580 = vld [vmem:[%s311 + $0x1d8] sm:$0xff]
        %v581 = vld [vmem:[%s311 + $0x1e0] sm:$0xff]
        %v582 = vld [vmem:[%s311 + $0x1e8] sm:$0xff]
        %v583 = vld [vmem:[%s311 + $0x1f0] sm:$0xff]
        %v584 = vld [vmem:[%s311 + $0x1f8] sm:$0xff]
        %v585 = vld [vmem:[%s311 + $0x200] sm:$0xff]
        %v586 = vld [vmem:[%s311 + $0x208] sm:$0xff]
        %v587 = vld [vmem:[%s311 + $0x210] sm:$0xff]
        %v588 = vld [vmem:[%s311 + $0x218] sm:$0xff]
        %v589 = vld [vmem:[%s311 + $0x220] sm:$0xff]
        %v590 = vld [vmem:[%s311 + $0x228] sm:$0xff]
        %v591 = vld [vmem:[%s311 + $0x230] sm:$0xff]
        %v592 = vld [vmem:[%s311 + $0x238] sm:$0xff]
        %v593 = vld [vmem:[%s311 + $0x240] sm:$0xff]
        %v594 = vld [vmem:[%s311 + $0x248] sm:$0xff]
        %v595 = vld [vmem:[%s311 + $0x250] sm:$0xff]
        %v596 = vld [vmem:[%s311 + $0x258] sm:$0xff]
        %v597 = vld [vmem:[%s311 + $0x260] sm:$0xff]
        %v598 = vld [vmem:[%s311 + $0x268] sm:$0xff]
        %v599 = vld [vmem:[%s311 + $0x270] sm:$0xff]
        %v600 = vld [vmem:[%s311 + $0x278] sm:$0xff]
        %v601 = vld [vmem:[%s311 + $0x280] sm:$0xff]
        %v602 = vld [vmem:[%s311 + $0x288] sm:$0xff]
        %v603 = vld [vmem:[%s311 + $0x290] sm:$0xff]
        %v604 = vld [vmem:[%s311 + $0x298] sm:$0xff]
        %v605 = vld [vmem:[%s311 + $0x2a0] sm:$0xff]
        %v606 = vld [vmem:[%s311 + $0x2a8] sm:$0xff]
        %v607 = vld [vmem:[%s311 + $0x2b0] sm:$0xff]
        %v608 = vld [vmem:[%s311 + $0x2b8] sm:$0xff]
        %v609 = vld [vmem:[%s311 + $0x2c0] sm:$0xff]
        %v610 = vld [vmem:[%s311 + $0x2c8] sm:$0xff]
        %v611 = vld [vmem:[%s311 + $0x2d0] sm:$0xff]
        %v612 = vld [vmem:[%s311 + $0x2d8] sm:$0xff]
        %v613 = vld [vmem:[%s311 + $0x2e0] sm:$0xff]
        %v614 = vld [vmem:[%s311 + $0x2e8] sm:$0xff]
        %v615 = vld [vmem:[%s311 + $0x2f0] sm:$0xff]
        %v616 = vld [vmem:[%s311 + $0x2f8] sm:$0xff]
        %v617 = vld [vmem:[%s311 + $0x300] sm:$0xff]
        %v618 = vld [vmem:[%s311 + $0x308] sm:$0xff]
        %v619 = vld [vmem:[%s311 + $0x310] sm:$0xff]
        %v620 = vld [vmem:[%s311 + $0x318] sm:$0xff]
        %v621 = vld [vmem:[%s311 + $0x320] sm:$0xff]
        %v622 = vld [vmem:[%s311 + $0x328] sm:$0xff]
        %v623 = vld [vmem:[%s311 + $0x330] sm:$0xff]
        %v624 = vld [vmem:[%s311 + $0x338] sm:$0xff]
        %v625 = vld [vmem:[%s311 + $0x340] sm:$0xff]
        %v626 = vld [vmem:[%s311 + $0x348] sm:$0xff]
        %v627 = vld [vmem:[%s311 + $0x350] sm:$0xff]
        %v628 = vld [vmem:[%s311 + $0x358] sm:$0xff]
        %v629 = vld [vmem:[%s311 + $0x360] sm:$0xff]
        %v630 = vld [vmem:[%s311 + $0x368] sm:$0xff]
        %v631 = vld [vmem:[%s311 + $0x370] sm:$0xff]
        %v632 = vld [vmem:[%s311 + $0x378] sm:$0xff]
        %v633 = vld [vmem:[%s311 + $0x380] sm:$0xff]
        %v634 = vld [vmem:[%s311 + $0x388] sm:$0xff]
        %v635 = vld [vmem:[%s311 + $0x390] sm:$0xff]
        %v636 = vld [vmem:[%s311 + $0x398] sm:$0xff]
        %v637 = vld [vmem:[%s311 + $0x3a0] sm:$0xff]
        %v638 = vld [vmem:[%s311 + $0x3a8] sm:$0xff]
        %v639 = vld [vmem:[%s311 + $0x3b0] sm:$0xff]
        %v640 = vld [vmem:[%s311 + $0x3b8] sm:$0xff]
        %v641 = vld [vmem:[%s311 + $0x3c0] sm:$0xff]
        %v642 = vld [vmem:[%s311 + $0x3c8] sm:$0xff]
        %v643 = vld [vmem:[%s311 + $0x3d0] sm:$0xff]
        %v644 = vld [vmem:[%s311 + $0x3d8] sm:$0xff]
        %v645 = vld [vmem:[%s311 + $0x3e0] sm:$0xff]
        %v646 = vld [vmem:[%s311 + $0x3e8] sm:$0xff]
        %v647 = vld [vmem:[%s311 + $0x3f0] sm:$0xff]
        %v648 = vld [vmem:[%s311 + $0x3f8] sm:$0xff]
        %v649 = vpack.c.bf16 %v523, %v521
        %v650 = vpack.c.bf16 %v524, %v522
        %v651 = vpack.c.bf16 %v527, %v525
        %v652 = vpack.c.bf16 %v528, %v526
        %v653 = vpack.c.bf16 %v531, %v529
        %v654 = vpack.c.bf16 %v532, %v530
        %v655 = vpack.c.bf16 %v535, %v533
        %v656 = vpack.c.bf16 %v536, %v534
        %v657 = vpack.c.bf16 %v539, %v537
        %v658 = vpack.c.bf16 %v540, %v538
        %v659 = vpack.c.bf16 %v543, %v541
        %v660 = vpack.c.bf16 %v544, %v542
        %v661 = vpack.c.bf16 %v547, %v545
        %v662 = vpack.c.bf16 %v548, %v546
        %v663 = vpack.c.bf16 %v551, %v549
        %v664 = vpack.c.bf16 %v552, %v550
        %v665 = vpack.c.bf16 %v555, %v553
        %v666 = vpack.c.bf16 %v556, %v554
        %v667 = vpack.c.bf16 %v559, %v557
        %v668 = vpack.c.bf16 %v560, %v558
        %v669 = vpack.c.bf16 %v563, %v561
        %v670 = vpack.c.bf16 %v564, %v562
        %v671 = vpack.c.bf16 %v567, %v565
        %v672 = vpack.c.bf16 %v568, %v566
        %v673 = vpack.c.bf16 %v571, %v569
        %v674 = vpack.c.bf16 %v572, %v570
        %v675 = vpack.c.bf16 %v575, %v573
        %v676 = vpack.c.bf16 %v576, %v574
        %v677 = vpack.c.bf16 %v579, %v577
        %v678 = vpack.c.bf16 %v580, %v578
        %v679 = vpack.c.bf16 %v583, %v581
        %v680 = vpack.c.bf16 %v584, %v582
        %v681 = vpack.c.bf16 %v587, %v585
        %v682 = vpack.c.bf16 %v588, %v586
        %v683 = vpack.c.bf16 %v591, %v589
        %v684 = vpack.c.bf16 %v592, %v590
        %v685 = vpack.c.bf16 %v595, %v593
        %v686 = vpack.c.bf16 %v596, %v594
        %v687 = vpack.c.bf16 %v599, %v597
        %v688 = vpack.c.bf16 %v600, %v598
        %v689 = vpack.c.bf16 %v603, %v601
        %v690 = vpack.c.bf16 %v604, %v602
        %v691 = vpack.c.bf16 %v607, %v605
        %v692 = vpack.c.bf16 %v608, %v606
        %v693 = vpack.c.bf16 %v611, %v609
        %v694 = vpack.c.bf16 %v612, %v610
        %v695 = vpack.c.bf16 %v615, %v613
        %v696 = vpack.c.bf16 %v616, %v614
        %v697 = vpack.c.bf16 %v619, %v617
        %v698 = vpack.c.bf16 %v620, %v618
        %v699 = vpack.c.bf16 %v623, %v621
        %v700 = vpack.c.bf16 %v624, %v622
        %v701 = vpack.c.bf16 %v627, %v625
        %v702 = vpack.c.bf16 %v628, %v626
        %v703 = vpack.c.bf16 %v631, %v629
        %v704 = vpack.c.bf16 %v632, %v630
        %v705 = vpack.c.bf16 %v635, %v633
        %v706 = vpack.c.bf16 %v636, %v634
        %v707 = vpack.c.bf16 %v639, %v637
        %v708 = vpack.c.bf16 %v640, %v638
        %v709 = vpack.c.bf16 %v643, %v641
        %v710 = vpack.c.bf16 %v644, %v642
        %v711 = vpack.c.bf16 %v647, %v645
        %v712 = vpack.c.bf16 %v648, %v646
        %v713 = vld [vmem:[%s320] sm:$0xff]
        %v714 = vld [vmem:[%s320 + $0x8] sm:$0xff]
        %v715 = vld [vmem:[%s320 + $0x10] sm:$0xff]
        %v716 = vld [vmem:[%s320 + $0x18] sm:$0xff]
        %v717 = vld [vmem:[%s320 + $0x20] sm:$0xff]
        %v718 = vld [vmem:[%s320 + $0x28] sm:$0xff]
        %v719 = vld [vmem:[%s320 + $0x30] sm:$0xff]
        %v720 = vld [vmem:[%s320 + $0x38] sm:$0xff]
        %v721 = vld [vmem:[%s320 + $0x40] sm:$0xff]
        %v722 = vld [vmem:[%s320 + $0x48] sm:$0xff]
        %v723 = vld [vmem:[%s320 + $0x50] sm:$0xff]
        %v724 = vld [vmem:[%s320 + $0x58] sm:$0xff]
        %v725 = vld [vmem:[%s320 + $0x60] sm:$0xff]
        %v726 = vld [vmem:[%s320 + $0x68] sm:$0xff]
        %v727 = vld [vmem:[%s320 + $0x70] sm:$0xff]
        %v728 = vld [vmem:[%s320 + $0x78] sm:$0xff]
        %v729 = vld [vmem:[%s320 + $0x80] sm:$0xff]
        %v730 = vld [vmem:[%s320 + $0x88] sm:$0xff]
        %v731 = vld [vmem:[%s320 + $0x90] sm:$0xff]
        %v732 = vld [vmem:[%s320 + $0x98] sm:$0xff]
        %v733 = vld [vmem:[%s320 + $0xa0] sm:$0xff]
        %v734 = vld [vmem:[%s320 + $0xa8] sm:$0xff]
        %v735 = vld [vmem:[%s320 + $0xb0] sm:$0xff]
        %v736 = vld [vmem:[%s320 + $0xb8] sm:$0xff]
        %v737 = vld [vmem:[%s320 + $0xc0] sm:$0xff]
        %v738 = vld [vmem:[%s320 + $0xc8] sm:$0xff]
        %v739 = vld [vmem:[%s320 + $0xd0] sm:$0xff]
        %v740 = vld [vmem:[%s320 + $0xd8] sm:$0xff]
        %v741 = vld [vmem:[%s320 + $0xe0] sm:$0xff]
        %v742 = vld [vmem:[%s320 + $0xe8] sm:$0xff]
        %v743 = vld [vmem:[%s320 + $0xf0] sm:$0xff]
        %v744 = vld [vmem:[%s320 + $0xf8] sm:$0xff]
        %v745 = vld [vmem:[%s320 + $0x100] sm:$0xff]
        %v746 = vld [vmem:[%s320 + $0x108] sm:$0xff]
        %v747 = vld [vmem:[%s320 + $0x110] sm:$0xff]
        %v748 = vld [vmem:[%s320 + $0x118] sm:$0xff]
        %v749 = vld [vmem:[%s320 + $0x120] sm:$0xff]
        %v750 = vld [vmem:[%s320 + $0x128] sm:$0xff]
        %v751 = vld [vmem:[%s320 + $0x130] sm:$0xff]
        %v752 = vld [vmem:[%s320 + $0x138] sm:$0xff]
        %v753 = vld [vmem:[%s320 + $0x140] sm:$0xff]
        %v754 = vld [vmem:[%s320 + $0x148] sm:$0xff]
        %v755 = vld [vmem:[%s320 + $0x150] sm:$0xff]
        %v756 = vld [vmem:[%s320 + $0x158] sm:$0xff]
        %v757 = vld [vmem:[%s320 + $0x160] sm:$0xff]
        %v758 = vld [vmem:[%s320 + $0x168] sm:$0xff]
        %v759 = vld [vmem:[%s320 + $0x170] sm:$0xff]
        %v760 = vld [vmem:[%s320 + $0x178] sm:$0xff]
        %v761 = vld [vmem:[%s320 + $0x180] sm:$0xff]
        %v762 = vld [vmem:[%s320 + $0x188] sm:$0xff]
        %v763 = vld [vmem:[%s320 + $0x190] sm:$0xff]
        %v764 = vld [vmem:[%s320 + $0x198] sm:$0xff]
        %v765 = vld [vmem:[%s320 + $0x1a0] sm:$0xff]
        %v766 = vld [vmem:[%s320 + $0x1a8] sm:$0xff]
        %v767 = vld [vmem:[%s320 + $0x1b0] sm:$0xff]
        %v768 = vld [vmem:[%s320 + $0x1b8] sm:$0xff]
        %v769 = vld [vmem:[%s320 + $0x1c0] sm:$0xff]
        %v770 = vld [vmem:[%s320 + $0x1c8] sm:$0xff]
        %v771 = vld [vmem:[%s320 + $0x1d0] sm:$0xff]
        %v772 = vld [vmem:[%s320 + $0x1d8] sm:$0xff]
        %v773 = vld [vmem:[%s320 + $0x1e0] sm:$0xff]
        %v774 = vld [vmem:[%s320 + $0x1e8] sm:$0xff]
        %v775 = vld [vmem:[%s320 + $0x1f0] sm:$0xff]
        %v776 = vld [vmem:[%s320 + $0x1f8] sm:$0xff]
        %v777 = vld [vmem:[%s329] sm:$0xf]
        %v779 = vlaneseq
        %v780 = vshrl.u32 %v779, 7
        %v781 = vsub.s32 0, %v780
        %v782 = vrot.slane %v777, %v781
        %v783 = vlaneseq
        %v784 = vshrl.u32 %v783, 7
        %v785 = vsub.s32 1, %v784
        %v786 = vrot.slane %v777, %v785
        %v787 = vlaneseq
        %v788 = vshrl.u32 %v787, 7
        %v789 = vsub.s32 2, %v788
        %v790 = vrot.slane %v777, %v789
        %v791 = vlaneseq
        %v792 = vshrl.u32 %v791, 7
        %v793 = vsub.s32 3, %v792
        %v794 = vrot.slane %v777, %v793
        %v863 = vunpack.c.l.b16 %v713
        %v864 = vunpack.c.h.b16 %v713
        %v865 = vunpack.c.l.b16 %v714
        %v866 = vunpack.c.h.b16 %v714
        %v867 = vunpack.c.l.b16 %v715
        %v868 = vunpack.c.h.b16 %v715
        %v869 = vunpack.c.l.b16 %v716
        %v870 = vunpack.c.h.b16 %v716
        %v871 = vunpack.c.l.b16 %v717
        %v872 = vunpack.c.h.b16 %v717
        %v873 = vunpack.c.l.b16 %v718
        %v874 = vunpack.c.h.b16 %v718
        %v875 = vunpack.c.l.b16 %v719
        %v876 = vunpack.c.h.b16 %v719
        %v877 = vunpack.c.l.b16 %v720
        %v878 = vunpack.c.h.b16 %v720
        %v879 = vunpack.c.l.b16 %v721
        %v880 = vunpack.c.h.b16 %v721
        %v881 = vunpack.c.l.b16 %v722
        %v882 = vunpack.c.h.b16 %v722
        %v883 = vunpack.c.l.b16 %v723
        %v884 = vunpack.c.h.b16 %v723
        %v885 = vunpack.c.l.b16 %v724
        %v886 = vunpack.c.h.b16 %v724
        %v887 = vunpack.c.l.b16 %v725
        %v888 = vunpack.c.h.b16 %v725
        %v889 = vunpack.c.l.b16 %v726
        %v890 = vunpack.c.h.b16 %v726
        %v891 = vunpack.c.l.b16 %v727
        %v892 = vunpack.c.h.b16 %v727
        %v893 = vunpack.c.l.b16 %v728
        %v894 = vunpack.c.h.b16 %v728
        %v895 = vunpack.c.l.b16 %v729
        %v896 = vunpack.c.h.b16 %v729
        %v897 = vunpack.c.l.b16 %v730
        %v898 = vunpack.c.h.b16 %v730
        %v899 = vunpack.c.l.b16 %v731
        %v900 = vunpack.c.h.b16 %v731
        %v901 = vunpack.c.l.b16 %v732
        %v902 = vunpack.c.h.b16 %v732
        %v903 = vunpack.c.l.b16 %v733
        %v904 = vunpack.c.h.b16 %v733
        %v905 = vunpack.c.l.b16 %v734
        %v906 = vunpack.c.h.b16 %v734
        %v907 = vunpack.c.l.b16 %v735
        %v908 = vunpack.c.h.b16 %v735
        %v909 = vunpack.c.l.b16 %v736
        %v910 = vunpack.c.h.b16 %v736
        %v911 = vunpack.c.l.b16 %v737
        %v912 = vunpack.c.h.b16 %v737
        %v913 = vunpack.c.l.b16 %v738
        %v914 = vunpack.c.h.b16 %v738
        %v915 = vunpack.c.l.b16 %v739
        %v916 = vunpack.c.h.b16 %v739
        %v917 = vunpack.c.l.b16 %v740
        %v918 = vunpack.c.h.b16 %v740
        %v919 = vunpack.c.l.b16 %v741
        %v920 = vunpack.c.h.b16 %v741
        %v921 = vunpack.c.l.b16 %v742
        %v922 = vunpack.c.h.b16 %v742
        %v923 = vunpack.c.l.b16 %v743
        %v924 = vunpack.c.h.b16 %v743
        %v925 = vunpack.c.l.b16 %v744
        %v926 = vunpack.c.h.b16 %v744
        %v927 = vunpack.c.l.b16 %v745
        %v928 = vunpack.c.h.b16 %v745
        %v929 = vunpack.c.l.b16 %v746
        %v930 = vunpack.c.h.b16 %v746
        %v931 = vunpack.c.l.b16 %v747
        %v932 = vunpack.c.h.b16 %v747
        %v933 = vunpack.c.l.b16 %v748
        %v934 = vunpack.c.h.b16 %v748
        %v935 = vunpack.c.l.b16 %v749
        %v936 = vunpack.c.h.b16 %v749
        %v937 = vunpack.c.l.b16 %v750
        %v938 = vunpack.c.h.b16 %v750
        %v939 = vunpack.c.l.b16 %v751
        %v940 = vunpack.c.h.b16 %v751
        %v941 = vunpack.c.l.b16 %v752
        %v942 = vunpack.c.h.b16 %v752
        %v943 = vunpack.c.l.b16 %v753
        %v944 = vunpack.c.h.b16 %v753
        %v945 = vunpack.c.l.b16 %v754
        %v946 = vunpack.c.h.b16 %v754
        %v947 = vunpack.c.l.b16 %v755
        %v948 = vunpack.c.h.b16 %v755
        %v949 = vunpack.c.l.b16 %v756
        %v950 = vunpack.c.h.b16 %v756
        %v951 = vunpack.c.l.b16 %v757
        %v952 = vunpack.c.h.b16 %v757
        %v953 = vunpack.c.l.b16 %v758
        %v954 = vunpack.c.h.b16 %v758
        %v955 = vunpack.c.l.b16 %v759
        %v956 = vunpack.c.h.b16 %v759
        %v957 = vunpack.c.l.b16 %v760
        %v958 = vunpack.c.h.b16 %v760
        %v959 = vunpack.c.l.b16 %v761
        %v960 = vunpack.c.h.b16 %v761
        %v961 = vunpack.c.l.b16 %v762
        %v962 = vunpack.c.h.b16 %v762
        %v963 = vunpack.c.l.b16 %v763
        %v964 = vunpack.c.h.b16 %v763
        %v965 = vunpack.c.l.b16 %v764
        %v966 = vunpack.c.h.b16 %v764
        %v967 = vunpack.c.l.b16 %v765
        %v968 = vunpack.c.h.b16 %v765
        %v969 = vunpack.c.l.b16 %v766
        %v970 = vunpack.c.h.b16 %v766
        %v971 = vunpack.c.l.b16 %v767
        %v972 = vunpack.c.h.b16 %v767
        %v973 = vunpack.c.l.b16 %v768
        %v974 = vunpack.c.h.b16 %v768
        %v975 = vunpack.c.l.b16 %v769
        %v976 = vunpack.c.h.b16 %v769
        %v977 = vunpack.c.l.b16 %v770
        %v978 = vunpack.c.h.b16 %v770
        %v979 = vunpack.c.l.b16 %v771
        %v980 = vunpack.c.h.b16 %v771
        %v981 = vunpack.c.l.b16 %v772
        %v982 = vunpack.c.h.b16 %v772
        %v983 = vunpack.c.l.b16 %v773
        %v984 = vunpack.c.h.b16 %v773
        %v985 = vunpack.c.l.b16 %v774
        %v986 = vunpack.c.h.b16 %v774
        %v987 = vunpack.c.l.b16 %v775
        %v988 = vunpack.c.h.b16 %v775
        %v989 = vunpack.c.l.b16 %v776
        %v990 = vunpack.c.h.b16 %v776
        %v991 = vpack.c.b16 %v867, %v863
        %v992 = vpack.c.b16 %v868, %v864
        %v993 = vpack.c.b16 %v869, %v865
        %v994 = vpack.c.b16 %v870, %v866
        %v995 = vpack.c.b16 %v875, %v871
        %v996 = vpack.c.b16 %v876, %v872
        %v997 = vpack.c.b16 %v877, %v873
        %v998 = vpack.c.b16 %v878, %v874
        %v999 = vpack.c.b16 %v883, %v879
        %v1000 = vpack.c.b16 %v884, %v880
        %v1001 = vpack.c.b16 %v885, %v881
        %v1002 = vpack.c.b16 %v886, %v882
        %v1003 = vpack.c.b16 %v891, %v887
        %v1004 = vpack.c.b16 %v892, %v888
        %v1005 = vpack.c.b16 %v893, %v889
        %v1006 = vpack.c.b16 %v894, %v890
        %v1007 = vpack.c.b16 %v899, %v895
        %v1008 = vpack.c.b16 %v900, %v896
        %v1009 = vpack.c.b16 %v901, %v897
        %v1010 = vpack.c.b16 %v902, %v898
        %v1011 = vpack.c.b16 %v907, %v903
        %v1012 = vpack.c.b16 %v908, %v904
        %v1013 = vpack.c.b16 %v909, %v905
        %v1014 = vpack.c.b16 %v910, %v906
        %v1015 = vpack.c.b16 %v915, %v911
        %v1016 = vpack.c.b16 %v916, %v912
        %v1017 = vpack.c.b16 %v917, %v913
        %v1018 = vpack.c.b16 %v918, %v914
        %v1019 = vpack.c.b16 %v923, %v919
        %v1020 = vpack.c.b16 %v924, %v920
        %v1021 = vpack.c.b16 %v925, %v921
        %v1022 = vpack.c.b16 %v926, %v922
        %v1023 = vpack.c.b16 %v931, %v927
        %v1024 = vpack.c.b16 %v932, %v928
        %v1025 = vpack.c.b16 %v933, %v929
        %v1026 = vpack.c.b16 %v934, %v930
        %v1027 = vpack.c.b16 %v939, %v935
        %v1028 = vpack.c.b16 %v940, %v936
        %v1029 = vpack.c.b16 %v941, %v937
        %v1030 = vpack.c.b16 %v942, %v938
        %v1031 = vpack.c.b16 %v947, %v943
        %v1032 = vpack.c.b16 %v948, %v944
        %v1033 = vpack.c.b16 %v949, %v945
        %v1034 = vpack.c.b16 %v950, %v946
        %v1035 = vpack.c.b16 %v955, %v951
        %v1036 = vpack.c.b16 %v956, %v952
        %v1037 = vpack.c.b16 %v957, %v953
        %v1038 = vpack.c.b16 %v958, %v954
        %v1039 = vpack.c.b16 %v963, %v959
        %v1040 = vpack.c.b16 %v964, %v960
        %v1041 = vpack.c.b16 %v965, %v961
        %v1042 = vpack.c.b16 %v966, %v962
        %v1043 = vpack.c.b16 %v971, %v967
        %v1044 = vpack.c.b16 %v972, %v968
        %v1045 = vpack.c.b16 %v973, %v969
        %v1046 = vpack.c.b16 %v974, %v970
        %v1047 = vpack.c.b16 %v979, %v975
        %v1048 = vpack.c.b16 %v980, %v976
        %v1049 = vpack.c.b16 %v981, %v977
        %v1050 = vpack.c.b16 %v982, %v978
        %v1051 = vpack.c.b16 %v987, %v983
        %v1052 = vpack.c.b16 %v988, %v984
        %v1053 = vpack.c.b16 %v989, %v985
        %v1054 = vpack.c.b16 %v990, %v986
        %1119 = vmatprep.subr.bf16.mxu0 %v992
        %1120 = vmatpush1.bf16.msra.mxu0 %v991
        %1121 = vmatprep.subr.bf16.mxu0 %v996
        %1122 = vmatpush1.bf16.msra.mxu0 %v995
        %1123 = vmatprep.subr.bf16.mxu0 %v1000
        %1124 = vmatpush1.bf16.msra.mxu0 %v999
        %1125 = vmatprep.subr.bf16.mxu0 %v1004
        %1126 = vmatpush1.bf16.msra.mxu0 %v1003
        %1127 = vmatprep.subr.bf16.mxu0 %v1008
        %1128 = vmatpush1.bf16.msra.mxu0 %v1007
        %1129 = vmatprep.subr.bf16.mxu0 %v1012
        %1130 = vmatpush1.bf16.msra.mxu0 %v1011
        %1131 = vmatprep.subr.bf16.mxu0 %v1016
        %1132 = vmatpush1.bf16.msra.mxu0 %v1015
        %1133 = vmatprep.subr.bf16.mxu0 %v1020
        %1134 = vmatpush1.bf16.msra.mxu0 %v1019
        %1135 = vmatprep.subr.bf16.mxu0 %v1024
        %1136 = vmatpush1.bf16.msra.mxu0 %v1023
        %1137 = vmatprep.subr.bf16.mxu0 %v1028
        %1138 = vmatpush1.bf16.msra.mxu0 %v1027
        %1139 = vmatprep.subr.bf16.mxu0 %v1032
        %1140 = vmatpush1.bf16.msra.mxu0 %v1031
        %1141 = vmatprep.subr.bf16.mxu0 %v1036
        %1142 = vmatpush1.bf16.msra.mxu0 %v1035
        %1143 = vmatprep.subr.bf16.mxu0 %v1040
        %1144 = vmatpush1.bf16.msra.mxu0 %v1039
        %1145 = vmatprep.subr.bf16.mxu0 %v1044
        %1146 = vmatpush1.bf16.msra.mxu0 %v1043
        %1147 = vmatprep.subr.bf16.mxu0 %v1048
        %1148 = vmatpush1.bf16.msra.mxu0 %v1047
        %1149 = vmatprep.subr.bf16.mxu0 %v1052
        %1150 = vmatpush1.bf16.msra.mxu0 %v1051
        %1151 = vmatprep.mubr.bf16.mxu0 %v650
        %1152 = vmatmul.mubr.bf16.gmra.mrb[0].mxu0 %v649
        %v1153 = vpop.f32.mrb[0].mxu0
        %v1154 = vadd.f32 %v782, %v1153
        %v1155 = vpop.f32.mrb[0].mxu0
        %v1156 = vadd.f32 %v786, %v1155
        %v1157 = vpop.f32.mrb[0].mxu0
        %v1158 = vadd.f32 %v782, %v1157
        %v1159 = vpop.f32.mrb[0].mxu0
        %v1160 = vadd.f32 %v786, %v1159
        %1161 = vmatprep.mubr.bf16.mxu0 %v652
        %1162 = vmatmul.mubr.bf16.gmra.mrb[0].mxu0 %v651
        %v1163 = vpop.f32.mrb[0].mxu0
        %v1164 = vadd.f32 %v782, %v1163
        %v1165 = vpop.f32.mrb[0].mxu0
        %v1166 = vadd.f32 %v786, %v1165
        %v1167 = vpop.f32.mrb[0].mxu0
        %v1168 = vadd.f32 %v782, %v1167
        %v1169 = vpop.f32.mrb[0].mxu0
        %v1170 = vadd.f32 %v786, %v1169
        %1171 = vmatprep.mubr.bf16.mxu0 %v654
        %1172 = vmatmul.mubr.bf16.gmra.mrb[0].mxu0 %v653
        %v1173 = vpop.f32.mrb[0].mxu0
        %v1174 = vadd.f32 %v782, %v1173
        %v1175 = vpop.f32.mrb[0].mxu0
        %v1176 = vadd.f32 %v786, %v1175
        %v1177 = vpop.f32.mrb[0].mxu0
        %v1178 = vadd.f32 %v782, %v1177
        %v1179 = vpop.f32.mrb[0].mxu0
        %v1180 = vadd.f32 %v786, %v1179
        %1181 = vmatprep.mubr.bf16.mxu0 %v656
        %1182 = vmatmul.mubr.bf16.gmra.mrb[0].mxu0 %v655
        %v1183 = vpop.f32.mrb[0].mxu0
        %v1184 = vadd.f32 %v782, %v1183
        %v1185 = vpop.f32.mrb[0].mxu0
        %v1186 = vadd.f32 %v786, %v1185
        %v1187 = vpop.f32.mrb[0].mxu0
        %v1188 = vadd.f32 %v782, %v1187
        %v1189 = vpop.f32.mrb[0].mxu0
        %v1190 = vadd.f32 %v786, %v1189
        %1191 = vmatprep.mubr.bf16.mxu0 %v658
        %1192 = vmatmul.mubr.bf16.gmra.mrb[0].mxu0 %v657
        %v1193 = vpop.f32.mrb[0].mxu0
        %v1194 = vadd.f32 %v782, %v1193
        %v1195 = vpop.f32.mrb[0].mxu0
        %v1196 = vadd.f32 %v786, %v1195
        %v1197 = vpop.f32.mrb[0].mxu0
        %v1198 = vadd.f32 %v782, %v1197
        %v1199 = vpop.f32.mrb[0].mxu0
        %v1200 = vadd.f32 %v786, %v1199
        %1201 = vmatprep.mubr.bf16.mxu0 %v660
        %1202 = vmatmul.mubr.bf16.gmra.mrb[0].mxu0 %v659
        %v1203 = vpop.f32.mrb[0].mxu0
        %v1204 = vadd.f32 %v782, %v1203
        %v1205 = vpop.f32.mrb[0].mxu0
        %v1206 = vadd.f32 %v786, %v1205
        %v1207 = vpop.f32.mrb[0].mxu0
        %v1208 = vadd.f32 %v782, %v1207
        %v1209 = vpop.f32.mrb[0].mxu0
        %v1210 = vadd.f32 %v786, %v1209
        %1211 = vmatprep.mubr.bf16.mxu0 %v662
        %1212 = vmatmul.mubr.bf16.gmra.mrb[0].mxu0 %v661
        %v1213 = vpop.f32.mrb[0].mxu0
        %v1214 = vadd.f32 %v782, %v1213
        %v1215 = vpop.f32.mrb[0].mxu0
        %v1216 = vadd.f32 %v786, %v1215
        %v1217 = vpop.f32.mrb[0].mxu0
        %v1218 = vadd.f32 %v782, %v1217
        %v1219 = vpop.f32.mrb[0].mxu0
        %v1220 = vadd.f32 %v786, %v1219
        %1221 = vmatprep.mubr.bf16.mxu0 %v664
        %1222 = vmatmul.mubr.bf16.gmra.mrb[0].mxu0 %v663
        %v1223 = vpop.f32.mrb[0].mxu0
        %v1224 = vadd.f32 %v782, %v1223
        %v1225 = vpop.f32.mrb[0].mxu0
        %v1226 = vadd.f32 %v786, %v1225
        %v1227 = vpop.f32.mrb[0].mxu0
        %v1228 = vadd.f32 %v782, %v1227
        %v1229 = vpop.f32.mrb[0].mxu0
        %v1230 = vadd.f32 %v786, %v1229
        %1231 = vmatprep.mubr.bf16.mxu0 %v666
        %1232 = vmatmul.mubr.bf16.gmra.mrb[0].mxu0 %v665
        %v1233 = vpop.f32.mrb[0].mxu0
        %v1234 = vadd.f32 %v782, %v1233
        %v1235 = vpop.f32.mrb[0].mxu0
        %v1236 = vadd.f32 %v786, %v1235
        %v1237 = vpop.f32.mrb[0].mxu0
        %v1238 = vadd.f32 %v782, %v1237
        %v1239 = vpop.f32.mrb[0].mxu0
        %v1240 = vadd.f32 %v786, %v1239
        %1241 = vmatprep.mubr.bf16.mxu0 %v668
        %1242 = vmatmul.mubr.bf16.gmra.mrb[0].mxu0 %v667
        %v1243 = vpop.f32.mrb[0].mxu0
        %v1244 = vadd.f32 %v782, %v1243
        %v1245 = vpop.f32.mrb[0].mxu0
        %v1246 = vadd.f32 %v786, %v1245
        %v1247 = vpop.f32.mrb[0].mxu0
        %v1248 = vadd.f32 %v782, %v1247
        %v1249 = vpop.f32.mrb[0].mxu0
        %v1250 = vadd.f32 %v786, %v1249
        %1251 = vmatprep.mubr.bf16.mxu0 %v670
        %1252 = vmatmul.mubr.bf16.gmra.mrb[0].mxu0 %v669
        %v1253 = vpop.f32.mrb[0].mxu0
        %v1254 = vadd.f32 %v782, %v1253
        %v1255 = vpop.f32.mrb[0].mxu0
        %v1256 = vadd.f32 %v786, %v1255
        %v1257 = vpop.f32.mrb[0].mxu0
        %v1258 = vadd.f32 %v782, %v1257
        %v1259 = vpop.f32.mrb[0].mxu0
        %v1260 = vadd.f32 %v786, %v1259
        %1261 = vmatprep.mubr.bf16.mxu0 %v672
        %1262 = vmatmul.mubr.bf16.gmra.mrb[0].mxu0 %v671
        %v1263 = vpop.f32.mrb[0].mxu0
        %v1264 = vadd.f32 %v782, %v1263
        %v1265 = vpop.f32.mrb[0].mxu0
        %v1266 = vadd.f32 %v786, %v1265
        %v1267 = vpop.f32.mrb[0].mxu0
        %v1268 = vadd.f32 %v782, %v1267
        %v1269 = vpop.f32.mrb[0].mxu0
        %v1270 = vadd.f32 %v786, %v1269
        %1271 = vmatprep.mubr.bf16.mxu0 %v674
        %1272 = vmatmul.mubr.bf16.gmra.mrb[0].mxu0 %v673
        %v1273 = vpop.f32.mrb[0].mxu0
        %v1274 = vadd.f32 %v782, %v1273
        %v1275 = vpop.f32.mrb[0].mxu0
        %v1276 = vadd.f32 %v786, %v1275
        %v1277 = vpop.f32.mrb[0].mxu0
        %v1278 = vadd.f32 %v782, %v1277
        %v1279 = vpop.f32.mrb[0].mxu0
        %v1280 = vadd.f32 %v786, %v1279
        %1281 = vmatprep.mubr.bf16.mxu0 %v676
        %1282 = vmatmul.mubr.bf16.gmra.mrb[0].mxu0 %v675
        %v1283 = vpop.f32.mrb[0].mxu0
        %v1284 = vadd.f32 %v782, %v1283
        %v1285 = vpop.f32.mrb[0].mxu0
        %v1286 = vadd.f32 %v786, %v1285
        %v1287 = vpop.f32.mrb[0].mxu0
        %v1288 = vadd.f32 %v782, %v1287
        %v1289 = vpop.f32.mrb[0].mxu0
        %v1290 = vadd.f32 %v786, %v1289
        %1291 = vmatprep.mubr.bf16.mxu0 %v678
        %1292 = vmatmul.mubr.bf16.gmra.mrb[0].mxu0 %v677
        %v1293 = vpop.f32.mrb[0].mxu0
        %v1294 = vadd.f32 %v782, %v1293
        %v1295 = vpop.f32.mrb[0].mxu0
        %v1296 = vadd.f32 %v786, %v1295
        %v1297 = vpop.f32.mrb[0].mxu0
        %v1298 = vadd.f32 %v782, %v1297
        %v1299 = vpop.f32.mrb[0].mxu0
        %v1300 = vadd.f32 %v786, %v1299
        %1301 = vmatprep.mubr.bf16.mxu0 %v680
        %1302 = vmatmul.mubr.bf16.gmra.mrb[0].mxu0 %v679
        %v1303 = vpop.f32.mrb[0].mxu0
        %v1304 = vadd.f32 %v782, %v1303
        %v1305 = vpop.f32.mrb[0].mxu0
        %v1306 = vadd.f32 %v786, %v1305
        %v1307 = vpop.f32.mrb[0].mxu0
        %v1308 = vadd.f32 %v782, %v1307
        %v1309 = vpop.f32.mrb[0].mxu0
        %v1310 = vadd.f32 %v786, %v1309
        %1311 = vmatprep.mubr.bf16.mxu0 %v682
        %1312 = vmatmul.mubr.bf16.gmra.mrb[0].mxu0 %v681
        %v1313 = vpop.f32.mrb[0].mxu0
        %v1314 = vadd.f32 %v782, %v1313
        %v1315 = vpop.f32.mrb[0].mxu0
        %v1316 = vadd.f32 %v786, %v1315
        %v1317 = vpop.f32.mrb[0].mxu0
        %v1318 = vadd.f32 %v782, %v1317
        %v1319 = vpop.f32.mrb[0].mxu0
        %v1320 = vadd.f32 %v786, %v1319
        %1321 = vmatprep.mubr.bf16.mxu0 %v684
        %1322 = vmatmul.mubr.bf16.gmra.mrb[0].mxu0 %v683
        %v1323 = vpop.f32.mrb[0].mxu0
        %v1324 = vadd.f32 %v782, %v1323
        %v1325 = vpop.f32.mrb[0].mxu0
        %v1326 = vadd.f32 %v786, %v1325
        %v1327 = vpop.f32.mrb[0].mxu0
        %v1328 = vadd.f32 %v782, %v1327
        %v1329 = vpop.f32.mrb[0].mxu0
        %v1330 = vadd.f32 %v786, %v1329
        %1331 = vmatprep.mubr.bf16.mxu0 %v686
        %1332 = vmatmul.mubr.bf16.gmra.mrb[0].mxu0 %v685
        %v1333 = vpop.f32.mrb[0].mxu0
        %v1334 = vadd.f32 %v782, %v1333
        %v1335 = vpop.f32.mrb[0].mxu0
        %v1336 = vadd.f32 %v786, %v1335
        %v1337 = vpop.f32.mrb[0].mxu0
        %v1338 = vadd.f32 %v782, %v1337
        %v1339 = vpop.f32.mrb[0].mxu0
        %v1340 = vadd.f32 %v786, %v1339
        %1341 = vmatprep.mubr.bf16.mxu0 %v688
        %1342 = vmatmul.mubr.bf16.gmra.mrb[0].mxu0 %v687
        %v1343 = vpop.f32.mrb[0].mxu0
        %v1344 = vadd.f32 %v782, %v1343
        %v1345 = vpop.f32.mrb[0].mxu0
        %v1346 = vadd.f32 %v786, %v1345
        %v1347 = vpop.f32.mrb[0].mxu0
        %v1348 = vadd.f32 %v782, %v1347
        %v1349 = vpop.f32.mrb[0].mxu0
        %v1350 = vadd.f32 %v786, %v1349
        %1351 = vmatprep.mubr.bf16.mxu0 %v690
        %1352 = vmatmul.mubr.bf16.gmra.mrb[0].mxu0 %v689
        %v1353 = vpop.f32.mrb[0].mxu0
        %v1354 = vadd.f32 %v782, %v1353
        %v1355 = vpop.f32.mrb[0].mxu0
        %v1356 = vadd.f32 %v786, %v1355
        %v1357 = vpop.f32.mrb[0].mxu0
        %v1358 = vadd.f32 %v782, %v1357
        %v1359 = vpop.f32.mrb[0].mxu0
        %v1360 = vadd.f32 %v786, %v1359
        %1361 = vmatprep.mubr.bf16.mxu0 %v692
        %1362 = vmatmul.mubr.bf16.gmra.mrb[0].mxu0 %v691
        %v1363 = vpop.f32.mrb[0].mxu0
        %v1364 = vadd.f32 %v782, %v1363
        %v1365 = vpop.f32.mrb[0].mxu0
        %v1366 = vadd.f32 %v786, %v1365
        %v1367 = vpop.f32.mrb[0].mxu0
        %v1368 = vadd.f32 %v782, %v1367
        %v1369 = vpop.f32.mrb[0].mxu0
        %v1370 = vadd.f32 %v786, %v1369
        %1371 = vmatprep.mubr.bf16.mxu0 %v694
        %1372 = vmatmul.mubr.bf16.gmra.mrb[0].mxu0 %v693
        %v1373 = vpop.f32.mrb[0].mxu0
        %v1374 = vadd.f32 %v782, %v1373
        %v1375 = vpop.f32.mrb[0].mxu0
        %v1376 = vadd.f32 %v786, %v1375
        %v1377 = vpop.f32.mrb[0].mxu0
        %v1378 = vadd.f32 %v782, %v1377
        %v1379 = vpop.f32.mrb[0].mxu0
        %v1380 = vadd.f32 %v786, %v1379
        %1381 = vmatprep.mubr.bf16.mxu0 %v696
        %1382 = vmatmul.mubr.bf16.gmra.mrb[0].mxu0 %v695
        %v1383 = vpop.f32.mrb[0].mxu0
        %v1384 = vadd.f32 %v782, %v1383
        %v1385 = vpop.f32.mrb[0].mxu0
        %v1386 = vadd.f32 %v786, %v1385
        %v1387 = vpop.f32.mrb[0].mxu0
        %v1388 = vadd.f32 %v782, %v1387
        %v1389 = vpop.f32.mrb[0].mxu0
        %v1390 = vadd.f32 %v786, %v1389
        %1391 = vmatprep.mubr.bf16.mxu0 %v698
        %1392 = vmatmul.mubr.bf16.gmra.mrb[0].mxu0 %v697
        %v1393 = vpop.f32.mrb[0].mxu0
        %v1394 = vadd.f32 %v782, %v1393
        %v1395 = vpop.f32.mrb[0].mxu0
        %v1396 = vadd.f32 %v786, %v1395
        %v1397 = vpop.f32.mrb[0].mxu0
        %v1398 = vadd.f32 %v782, %v1397
        %v1399 = vpop.f32.mrb[0].mxu0
        %v1400 = vadd.f32 %v786, %v1399
        %1401 = vmatprep.mubr.bf16.mxu0 %v700
        %1402 = vmatmul.mubr.bf16.gmra.mrb[0].mxu0 %v699
        %v1403 = vpop.f32.mrb[0].mxu0
        %v1404 = vadd.f32 %v782, %v1403
        %v1405 = vpop.f32.mrb[0].mxu0
        %v1406 = vadd.f32 %v786, %v1405
        %v1407 = vpop.f32.mrb[0].mxu0
        %v1408 = vadd.f32 %v782, %v1407
        %v1409 = vpop.f32.mrb[0].mxu0
        %v1410 = vadd.f32 %v786, %v1409
        %1411 = vmatprep.mubr.bf16.mxu0 %v702
        %1412 = vmatmul.mubr.bf16.gmra.mrb[0].mxu0 %v701
        %v1413 = vpop.f32.mrb[0].mxu0
        %v1414 = vadd.f32 %v782, %v1413
        %v1415 = vpop.f32.mrb[0].mxu0
        %v1416 = vadd.f32 %v786, %v1415
        %v1417 = vpop.f32.mrb[0].mxu0
        %v1418 = vadd.f32 %v782, %v1417
        %v1419 = vpop.f32.mrb[0].mxu0
        %v1420 = vadd.f32 %v786, %v1419
        %1421 = vmatprep.mubr.bf16.mxu0 %v704
        %1422 = vmatmul.mubr.bf16.gmra.mrb[0].mxu0 %v703
        %v1423 = vpop.f32.mrb[0].mxu0
        %v1424 = vadd.f32 %v782, %v1423
        %v1425 = vpop.f32.mrb[0].mxu0
        %v1426 = vadd.f32 %v786, %v1425
        %v1427 = vpop.f32.mrb[0].mxu0
        %v1428 = vadd.f32 %v782, %v1427
        %v1429 = vpop.f32.mrb[0].mxu0
        %v1430 = vadd.f32 %v786, %v1429
        %1431 = vmatprep.mubr.bf16.mxu0 %v706
        %1432 = vmatmul.mubr.bf16.gmra.mrb[0].mxu0 %v705
        %v1433 = vpop.f32.mrb[0].mxu0
        %v1434 = vadd.f32 %v782, %v1433
        %v1435 = vpop.f32.mrb[0].mxu0
        %v1436 = vadd.f32 %v786, %v1435
        %v1437 = vpop.f32.mrb[0].mxu0
        %v1438 = vadd.f32 %v782, %v1437
        %v1439 = vpop.f32.mrb[0].mxu0
        %v1440 = vadd.f32 %v786, %v1439
        %1441 = vmatprep.mubr.bf16.mxu0 %v708
        %1442 = vmatmul.mubr.bf16.gmra.mrb[0].mxu0 %v707
        %v1443 = vpop.f32.mrb[0].mxu0
        %v1444 = vadd.f32 %v782, %v1443
        %v1445 = vpop.f32.mrb[0].mxu0
        %v1446 = vadd.f32 %v786, %v1445
        %v1447 = vpop.f32.mrb[0].mxu0
        %v1448 = vadd.f32 %v782, %v1447
        %v1449 = vpop.f32.mrb[0].mxu0
        %v1450 = vadd.f32 %v786, %v1449
        %1451 = vmatprep.mubr.bf16.mxu0 %v710
        %1452 = vmatmul.mubr.bf16.gmra.mrb[0].mxu0 %v709
        %v1453 = vpop.f32.mrb[0].mxu0
        %v1454 = vadd.f32 %v782, %v1453
        %v1455 = vpop.f32.mrb[0].mxu0
        %v1456 = vadd.f32 %v786, %v1455
        %v1457 = vpop.f32.mrb[0].mxu0
        %v1458 = vadd.f32 %v782, %v1457
        %v1459 = vpop.f32.mrb[0].mxu0
        %v1460 = vadd.f32 %v786, %v1459
        %1461 = vmatprep.mubr.bf16.mxu0 %v712
        %1462 = vmatmul.mubr.bf16.gmra.mrb[0].mxu0 %v711
        %v1463 = vpop.f32.mrb[0].mxu0
        %v1464 = vadd.f32 %v782, %v1463
        %v1465 = vpop.f32.mrb[0].mxu0
        %v1466 = vadd.f32 %v786, %v1465
        %v1467 = vpop.f32.mrb[0].mxu0
        %v1468 = vadd.f32 %v782, %v1467
        %v1469 = vpop.f32.mrb[0].mxu0
        %v1470 = vadd.f32 %v786, %v1469
        %1471 = vdwg.mxu0
        %1472 = vmatprep.subr.bf16.mxu0 %v994
        %1473 = vmatpush1.bf16.msra.mxu0 %v993
        %1474 = vmatprep.subr.bf16.mxu0 %v998
        %1475 = vmatpush1.bf16.msra.mxu0 %v997
        %1476 = vmatprep.subr.bf16.mxu0 %v1002
        %1477 = vmatpush1.bf16.msra.mxu0 %v1001
        %1478 = vmatprep.subr.bf16.mxu0 %v1006
        %1479 = vmatpush1.bf16.msra.mxu0 %v1005
        %1480 = vmatprep.subr.bf16.mxu0 %v1010
        %1481 = vmatpush1.bf16.msra.mxu0 %v1009
        %1482 = vmatprep.subr.bf16.mxu0 %v1014
        %1483 = vmatpush1.bf16.msra.mxu0 %v1013
        %1484 = vmatprep.subr.bf16.mxu0 %v1018
        %1485 = vmatpush1.bf16.msra.mxu0 %v1017
        %1486 = vmatprep.subr.bf16.mxu0 %v1022
        %1487 = vmatpush1.bf16.msra.mxu0 %v1021
        %1488 = vmatprep.subr.bf16.mxu0 %v1026
        %1489 = vmatpush1.bf16.msra.mxu0 %v1025
        %1490 = vmatprep.subr.bf16.mxu0 %v1030
        %1491 = vmatpush1.bf16.msra.mxu0 %v1029
        %1492 = vmatprep.subr.bf16.mxu0 %v1034
        %1493 = vmatpush1.bf16.msra.mxu0 %v1033
        %1494 = vmatprep.subr.bf16.mxu0 %v1038
        %1495 = vmatpush1.bf16.msra.mxu0 %v1037
        %1496 = vmatprep.subr.bf16.mxu0 %v1042
        %1497 = vmatpush1.bf16.msra.mxu0 %v1041
        %1498 = vmatprep.subr.bf16.mxu0 %v1046
        %1499 = vmatpush1.bf16.msra.mxu0 %v1045
        %1500 = vmatprep.subr.bf16.mxu0 %v1050
        %1501 = vmatpush1.bf16.msra.mxu0 %v1049
        %1502 = vmatprep.subr.bf16.mxu0 %v1054
        %1503 = vmatpush1.bf16.msra.mxu0 %v1053
        %1504 = vmatprep.mubr.bf16.mxu0 %v650
        %1505 = vmatmul.mubr.bf16.gmra.mrb[0].mxu0 %v649
        %v1506 = vpop.f32.mrb[0].mxu0
        %v1507 = vadd.f32 %v790, %v1506
        %v1508 = vpop.f32.mrb[0].mxu0
        %v1509 = vadd.f32 %v794, %v1508
        %v1510 = vpop.f32.mrb[0].mxu0
        %v1511 = vadd.f32 %v790, %v1510
        %v1512 = vpop.f32.mrb[0].mxu0
        %v1513 = vadd.f32 %v794, %v1512
        %1514 = vmatprep.mubr.bf16.mxu0 %v652
        %1515 = vmatmul.mubr.bf16.gmra.mrb[0].mxu0 %v651
        %v1516 = vpop.f32.mrb[0].mxu0
        %v1517 = vadd.f32 %v790, %v1516
        %v1518 = vpop.f32.mrb[0].mxu0
        %v1519 = vadd.f32 %v794, %v1518
        %v1520 = vpop.f32.mrb[0].mxu0
        %v1521 = vadd.f32 %v790, %v1520
        %v1522 = vpop.f32.mrb[0].mxu0
        %v1523 = vadd.f32 %v794, %v1522
        %1524 = vmatprep.mubr.bf16.mxu0 %v654
        %1525 = vmatmul.mubr.bf16.gmra.mrb[0].mxu0 %v653
        %v1526 = vpop.f32.mrb[0].mxu0
        %v1527 = vadd.f32 %v790, %v1526
        %v1528 = vpop.f32.mrb[0].mxu0
        %v1529 = vadd.f32 %v794, %v1528
        %v1530 = vpop.f32.mrb[0].mxu0
        %v1531 = vadd.f32 %v790, %v1530
        %v1532 = vpop.f32.mrb[0].mxu0
        %v1533 = vadd.f32 %v794, %v1532
        %1534 = vmatprep.mubr.bf16.mxu0 %v656
        %1535 = vmatmul.mubr.bf16.gmra.mrb[0].mxu0 %v655
        %v1536 = vpop.f32.mrb[0].mxu0
        %v1537 = vadd.f32 %v790, %v1536
        %v1538 = vpop.f32.mrb[0].mxu0
        %v1539 = vadd.f32 %v794, %v1538
        %v1540 = vpop.f32.mrb[0].mxu0
        %v1541 = vadd.f32 %v790, %v1540
        %v1542 = vpop.f32.mrb[0].mxu0
        %v1543 = vadd.f32 %v794, %v1542
        %1544 = vmatprep.mubr.bf16.mxu0 %v658
        %1545 = vmatmul.mubr.bf16.gmra.mrb[0].mxu0 %v657
        %v1546 = vpop.f32.mrb[0].mxu0
        %v1547 = vadd.f32 %v790, %v1546
        %v1548 = vpop.f32.mrb[0].mxu0
        %v1549 = vadd.f32 %v794, %v1548
        %v1550 = vpop.f32.mrb[0].mxu0
        %v1551 = vadd.f32 %v790, %v1550
        %v1552 = vpop.f32.mrb[0].mxu0
        %v1553 = vadd.f32 %v794, %v1552
        %1554 = vmatprep.mubr.bf16.mxu0 %v660
        %1555 = vmatmul.mubr.bf16.gmra.mrb[0].mxu0 %v659
        %v1556 = vpop.f32.mrb[0].mxu0
        %v1557 = vadd.f32 %v790, %v1556
        %v1558 = vpop.f32.mrb[0].mxu0
        %v1559 = vadd.f32 %v794, %v1558
        %v1560 = vpop.f32.mrb[0].mxu0
        %v1561 = vadd.f32 %v790, %v1560
        %v1562 = vpop.f32.mrb[0].mxu0
        %v1563 = vadd.f32 %v794, %v1562
        %1564 = vmatprep.mubr.bf16.mxu0 %v662
        %1565 = vmatmul.mubr.bf16.gmra.mrb[0].mxu0 %v661
        %v1566 = vpop.f32.mrb[0].mxu0
        %v1567 = vadd.f32 %v790, %v1566
        %v1568 = vpop.f32.mrb[0].mxu0
        %v1569 = vadd.f32 %v794, %v1568
        %v1570 = vpop.f32.mrb[0].mxu0
        %v1571 = vadd.f32 %v790, %v1570
        %v1572 = vpop.f32.mrb[0].mxu0
        %v1573 = vadd.f32 %v794, %v1572
        %1574 = vmatprep.mubr.bf16.mxu0 %v664
        %1575 = vmatmul.mubr.bf16.gmra.mrb[0].mxu0 %v663
        %v1576 = vpop.f32.mrb[0].mxu0
        %v1577 = vadd.f32 %v790, %v1576
        %v1578 = vpop.f32.mrb[0].mxu0
        %v1579 = vadd.f32 %v794, %v1578
        %v1580 = vpop.f32.mrb[0].mxu0
        %v1581 = vadd.f32 %v790, %v1580
        %v1582 = vpop.f32.mrb[0].mxu0
        %v1583 = vadd.f32 %v794, %v1582
        %1584 = vmatprep.mubr.bf16.mxu0 %v666
        %1585 = vmatmul.mubr.bf16.gmra.mrb[0].mxu0 %v665
        %v1586 = vpop.f32.mrb[0].mxu0
        %v1587 = vadd.f32 %v790, %v1586
        %v1588 = vpop.f32.mrb[0].mxu0
        %v1589 = vadd.f32 %v794, %v1588
        %v1590 = vpop.f32.mrb[0].mxu0
        %v1591 = vadd.f32 %v790, %v1590
        %v1592 = vpop.f32.mrb[0].mxu0
        %v1593 = vadd.f32 %v794, %v1592
        %1594 = vmatprep.mubr.bf16.mxu0 %v668
        %1595 = vmatmul.mubr.bf16.gmra.mrb[0].mxu0 %v667
        %v1596 = vpop.f32.mrb[0].mxu0
        %v1597 = vadd.f32 %v790, %v1596
        %v1598 = vpop.f32.mrb[0].mxu0
        %v1599 = vadd.f32 %v794, %v1598
        %v1600 = vpop.f32.mrb[0].mxu0
        %v1601 = vadd.f32 %v790, %v1600
        %v1602 = vpop.f32.mrb[0].mxu0
        %v1603 = vadd.f32 %v794, %v1602
        %1604 = vmatprep.mubr.bf16.mxu0 %v670
        %1605 = vmatmul.mubr.bf16.gmra.mrb[0].mxu0 %v669
        %v1606 = vpop.f32.mrb[0].mxu0
        %v1607 = vadd.f32 %v790, %v1606
        %v1608 = vpop.f32.mrb[0].mxu0
        %v1609 = vadd.f32 %v794, %v1608
        %v1610 = vpop.f32.mrb[0].mxu0
        %v1611 = vadd.f32 %v790, %v1610
        %v1612 = vpop.f32.mrb[0].mxu0
        %v1613 = vadd.f32 %v794, %v1612
        %1614 = vmatprep.mubr.bf16.mxu0 %v672
        %1615 = vmatmul.mubr.bf16.gmra.mrb[0].mxu0 %v671
        %v1616 = vpop.f32.mrb[0].mxu0
        %v1617 = vadd.f32 %v790, %v1616
        %v1618 = vpop.f32.mrb[0].mxu0
        %v1619 = vadd.f32 %v794, %v1618
        %v1620 = vpop.f32.mrb[0].mxu0
        %v1621 = vadd.f32 %v790, %v1620
        %v1622 = vpop.f32.mrb[0].mxu0
        %v1623 = vadd.f32 %v794, %v1622
        %1624 = vmatprep.mubr.bf16.mxu0 %v674
        %1625 = vmatmul.mubr.bf16.gmra.mrb[0].mxu0 %v673
        %v1626 = vpop.f32.mrb[0].mxu0
        %v1627 = vadd.f32 %v790, %v1626
        %v1628 = vpop.f32.mrb[0].mxu0
        %v1629 = vadd.f32 %v794, %v1628
        %v1630 = vpop.f32.mrb[0].mxu0
        %v1631 = vadd.f32 %v790, %v1630
        %v1632 = vpop.f32.mrb[0].mxu0
        %v1633 = vadd.f32 %v794, %v1632
        %1634 = vmatprep.mubr.bf16.mxu0 %v676
        %1635 = vmatmul.mubr.bf16.gmra.mrb[0].mxu0 %v675
        %v1636 = vpop.f32.mrb[0].mxu0
        %v1637 = vadd.f32 %v790, %v1636
        %v1638 = vpop.f32.mrb[0].mxu0
        %v1639 = vadd.f32 %v794, %v1638
        %v1640 = vpop.f32.mrb[0].mxu0
        %v1641 = vadd.f32 %v790, %v1640
        %v1642 = vpop.f32.mrb[0].mxu0
        %v1643 = vadd.f32 %v794, %v1642
        %1644 = vmatprep.mubr.bf16.mxu0 %v678
        %1645 = vmatmul.mubr.bf16.gmra.mrb[0].mxu0 %v677
        %v1646 = vpop.f32.mrb[0].mxu0
        %v1647 = vadd.f32 %v790, %v1646
        %v1648 = vpop.f32.mrb[0].mxu0
        %v1649 = vadd.f32 %v794, %v1648
        %v1650 = vpop.f32.mrb[0].mxu0
        %v1651 = vadd.f32 %v790, %v1650
        %v1652 = vpop.f32.mrb[0].mxu0
        %v1653 = vadd.f32 %v794, %v1652
        %1654 = vmatprep.mubr.bf16.mxu0 %v680
        %1655 = vmatmul.mubr.bf16.gmra.mrb[0].mxu0 %v679
        %v1656 = vpop.f32.mrb[0].mxu0
        %v1657 = vadd.f32 %v790, %v1656
        %v1658 = vpop.f32.mrb[0].mxu0
        %v1659 = vadd.f32 %v794, %v1658
        %v1660 = vpop.f32.mrb[0].mxu0
        %v1661 = vadd.f32 %v790, %v1660
        %v1662 = vpop.f32.mrb[0].mxu0
        %v1663 = vadd.f32 %v794, %v1662
        %1664 = vmatprep.mubr.bf16.mxu0 %v682
        %1665 = vmatmul.mubr.bf16.gmra.mrb[0].mxu0 %v681
        %v1666 = vpop.f32.mrb[0].mxu0
        %v1667 = vadd.f32 %v790, %v1666
        %v1668 = vpop.f32.mrb[0].mxu0
        %v1669 = vadd.f32 %v794, %v1668
        %v1670 = vpop.f32.mrb[0].mxu0
        %v1671 = vadd.f32 %v790, %v1670
        %v1672 = vpop.f32.mrb[0].mxu0
        %v1673 = vadd.f32 %v794, %v1672
        %1674 = vmatprep.mubr.bf16.mxu0 %v684
        %1675 = vmatmul.mubr.bf16.gmra.mrb[0].mxu0 %v683
        %v1676 = vpop.f32.mrb[0].mxu0
        %v1677 = vadd.f32 %v790, %v1676
        %v1678 = vpop.f32.mrb[0].mxu0
        %v1679 = vadd.f32 %v794, %v1678
        %v1680 = vpop.f32.mrb[0].mxu0
        %v1681 = vadd.f32 %v790, %v1680
        %v1682 = vpop.f32.mrb[0].mxu0
        %v1683 = vadd.f32 %v794, %v1682
        %1684 = vmatprep.mubr.bf16.mxu0 %v686
        %1685 = vmatmul.mubr.bf16.gmra.mrb[0].mxu0 %v685
        %v1686 = vpop.f32.mrb[0].mxu0
        %v1687 = vadd.f32 %v790, %v1686
        %v1688 = vpop.f32.mrb[0].mxu0
        %v1689 = vadd.f32 %v794, %v1688
        %v1690 = vpop.f32.mrb[0].mxu0
        %v1691 = vadd.f32 %v790, %v1690
        %v1692 = vpop.f32.mrb[0].mxu0
        %v1693 = vadd.f32 %v794, %v1692
        %1694 = vmatprep.mubr.bf16.mxu0 %v688
        %1695 = vmatmul.mubr.bf16.gmra.mrb[0].mxu0 %v687
        %v1696 = vpop.f32.mrb[0].mxu0
        %v1697 = vadd.f32 %v790, %v1696
        %v1698 = vpop.f32.mrb[0].mxu0
        %v1699 = vadd.f32 %v794, %v1698
        %v1700 = vpop.f32.mrb[0].mxu0
        %v1701 = vadd.f32 %v790, %v1700
        %v1702 = vpop.f32.mrb[0].mxu0
        %v1703 = vadd.f32 %v794, %v1702
        %1704 = vmatprep.mubr.bf16.mxu0 %v690
        %1705 = vmatmul.mubr.bf16.gmra.mrb[0].mxu0 %v689
        %v1706 = vpop.f32.mrb[0].mxu0
        %v1707 = vadd.f32 %v790, %v1706
        %v1708 = vpop.f32.mrb[0].mxu0
        %v1709 = vadd.f32 %v794, %v1708
        %v1710 = vpop.f32.mrb[0].mxu0
        %v1711 = vadd.f32 %v790, %v1710
        %v1712 = vpop.f32.mrb[0].mxu0
        %v1713 = vadd.f32 %v794, %v1712
        %1714 = vmatprep.mubr.bf16.mxu0 %v692
        %1715 = vmatmul.mubr.bf16.gmra.mrb[0].mxu0 %v691
        %v1716 = vpop.f32.mrb[0].mxu0
        %v1717 = vadd.f32 %v790, %v1716
        %v1718 = vpop.f32.mrb[0].mxu0
        %v1719 = vadd.f32 %v794, %v1718
        %v1720 = vpop.f32.mrb[0].mxu0
        %v1721 = vadd.f32 %v790, %v1720
        %v1722 = vpop.f32.mrb[0].mxu0
        %v1723 = vadd.f32 %v794, %v1722
        %1724 = vmatprep.mubr.bf16.mxu0 %v694
        %1725 = vmatmul.mubr.bf16.gmra.mrb[0].mxu0 %v693
        %v1726 = vpop.f32.mrb[0].mxu0
        %v1727 = vadd.f32 %v790, %v1726
        %v1728 = vpop.f32.mrb[0].mxu0
        %v1729 = vadd.f32 %v794, %v1728
        %v1730 = vpop.f32.mrb[0].mxu0
        %v1731 = vadd.f32 %v790, %v1730
        %v1732 = vpop.f32.mrb[0].mxu0
        %v1733 = vadd.f32 %v794, %v1732
        %1734 = vmatprep.mubr.bf16.mxu0 %v696
        %1735 = vmatmul.mubr.bf16.gmra.mrb[0].mxu0 %v695
        %v1736 = vpop.f32.mrb[0].mxu0
        %v1737 = vadd.f32 %v790, %v1736
        %v1738 = vpop.f32.mrb[0].mxu0
        %v1739 = vadd.f32 %v794, %v1738
        %v1740 = vpop.f32.mrb[0].mxu0
        %v1741 = vadd.f32 %v790, %v1740
        %v1742 = vpop.f32.mrb[0].mxu0
        %v1743 = vadd.f32 %v794, %v1742
        %1744 = vmatprep.mubr.bf16.mxu0 %v698
        %1745 = vmatmul.mubr.bf16.gmra.mrb[0].mxu0 %v697
        %v1746 = vpop.f32.mrb[0].mxu0
        %v1747 = vadd.f32 %v790, %v1746
        %v1748 = vpop.f32.mrb[0].mxu0
        %v1749 = vadd.f32 %v794, %v1748
        %v1750 = vpop.f32.mrb[0].mxu0
        %v1751 = vadd.f32 %v790, %v1750
        %v1752 = vpop.f32.mrb[0].mxu0
        %v1753 = vadd.f32 %v794, %v1752
        %1754 = vmatprep.mubr.bf16.mxu0 %v700
        %1755 = vmatmul.mubr.bf16.gmra.mrb[0].mxu0 %v699
        %v1756 = vpop.f32.mrb[0].mxu0
        %v1757 = vadd.f32 %v790, %v1756
        %v1758 = vpop.f32.mrb[0].mxu0
        %v1759 = vadd.f32 %v794, %v1758
        %v1760 = vpop.f32.mrb[0].mxu0
        %v1761 = vadd.f32 %v790, %v1760
        %v1762 = vpop.f32.mrb[0].mxu0
        %v1763 = vadd.f32 %v794, %v1762
        %1764 = vmatprep.mubr.bf16.mxu0 %v702
        %1765 = vmatmul.mubr.bf16.gmra.mrb[0].mxu0 %v701
        %v1766 = vpop.f32.mrb[0].mxu0
        %v1767 = vadd.f32 %v790, %v1766
        %v1768 = vpop.f32.mrb[0].mxu0
        %v1769 = vadd.f32 %v794, %v1768
        %v1770 = vpop.f32.mrb[0].mxu0
        %v1771 = vadd.f32 %v790, %v1770
        %v1772 = vpop.f32.mrb[0].mxu0
        %v1773 = vadd.f32 %v794, %v1772
        %1774 = vmatprep.mubr.bf16.mxu0 %v704
        %1775 = vmatmul.mubr.bf16.gmra.mrb[0].mxu0 %v703
        %v1776 = vpop.f32.mrb[0].mxu0
        %v1777 = vadd.f32 %v790, %v1776
        %v1778 = vpop.f32.mrb[0].mxu0
        %v1779 = vadd.f32 %v794, %v1778
        %v1780 = vpop.f32.mrb[0].mxu0
        %v1781 = vadd.f32 %v790, %v1780
        %v1782 = vpop.f32.mrb[0].mxu0
        %v1783 = vadd.f32 %v794, %v1782
        %1784 = vmatprep.mubr.bf16.mxu0 %v706
        %1785 = vmatmul.mubr.bf16.gmra.mrb[0].mxu0 %v705
        %v1786 = vpop.f32.mrb[0].mxu0
        %v1787 = vadd.f32 %v790, %v1786
        %v1788 = vpop.f32.mrb[0].mxu0
        %v1789 = vadd.f32 %v794, %v1788
        %v1790 = vpop.f32.mrb[0].mxu0
        %v1791 = vadd.f32 %v790, %v1790
        %v1792 = vpop.f32.mrb[0].mxu0
        %v1793 = vadd.f32 %v794, %v1792
        %1794 = vmatprep.mubr.bf16.mxu0 %v708
        %1795 = vmatmul.mubr.bf16.gmra.mrb[0].mxu0 %v707
        %v1796 = vpop.f32.mrb[0].mxu0
        %v1797 = vadd.f32 %v790, %v1796
        %v1798 = vpop.f32.mrb[0].mxu0
        %v1799 = vadd.f32 %v794, %v1798
        %v1800 = vpop.f32.mrb[0].mxu0
        %v1801 = vadd.f32 %v790, %v1800
        %v1802 = vpop.f32.mrb[0].mxu0
        %v1803 = vadd.f32 %v794, %v1802
        %1804 = vmatprep.mubr.bf16.mxu0 %v710
        %1805 = vmatmul.mubr.bf16.gmra.mrb[0].mxu0 %v709
        %v1806 = vpop.f32.mrb[0].mxu0
        %v1807 = vadd.f32 %v790, %v1806
        %v1808 = vpop.f32.mrb[0].mxu0
        %v1809 = vadd.f32 %v794, %v1808
        %v1810 = vpop.f32.mrb[0].mxu0
        %v1811 = vadd.f32 %v790, %v1810
        %v1812 = vpop.f32.mrb[0].mxu0
        %v1813 = vadd.f32 %v794, %v1812
        %1814 = vmatprep.mubr.bf16.mxu0 %v712
        %1815 = vmatmul.mubr.bf16.gmra.mrb[0].mxu0 %v711
        %v1816 = vpop.f32.mrb[0].mxu0
        %v1817 = vadd.f32 %v790, %v1816
        %v1818 = vpop.f32.mrb[0].mxu0
        %v1819 = vadd.f32 %v794, %v1818
        %v1820 = vpop.f32.mrb[0].mxu0
        %v1821 = vadd.f32 %v790, %v1820
        %v1822 = vpop.f32.mrb[0].mxu0
        %v1823 = vadd.f32 %v794, %v1822
        %1824 = vdwg.mxu0
        %v1825 = vmax.f32 %v1154, 0.0
        %v1826 = vmax.f32 %v1156, 0.0
        %v1827 = vmax.f32 %v1507, 0.0
        %v1828 = vmax.f32 %v1509, 0.0
        %v1829 = vmax.f32 %v1158, 0.0
        %v1830 = vmax.f32 %v1160, 0.0
        %v1831 = vmax.f32 %v1511, 0.0
        %v1832 = vmax.f32 %v1513, 0.0
        %v1833 = vmax.f32 %v1164, 0.0
        %v1834 = vmax.f32 %v1166, 0.0
        %v1835 = vmax.f32 %v1517, 0.0
        %v1836 = vmax.f32 %v1519, 0.0
        %v1837 = vmax.f32 %v1168, 0.0
        %v1838 = vmax.f32 %v1170, 0.0
        %v1839 = vmax.f32 %v1521, 0.0
        %v1840 = vmax.f32 %v1523, 0.0
        %v1841 = vmax.f32 %v1174, 0.0
        %v1842 = vmax.f32 %v1176, 0.0
        %v1843 = vmax.f32 %v1527, 0.0
        %v1844 = vmax.f32 %v1529, 0.0
        %v1845 = vmax.f32 %v1178, 0.0
        %v1846 = vmax.f32 %v1180, 0.0
        %v1847 = vmax.f32 %v1531, 0.0
        %v1848 = vmax.f32 %v1533, 0.0
        %v1849 = vmax.f32 %v1184, 0.0
        %v1850 = vmax.f32 %v1186, 0.0
        %v1851 = vmax.f32 %v1537, 0.0
        %v1852 = vmax.f32 %v1539, 0.0
        %v1853 = vmax.f32 %v1188, 0.0
        %v1854 = vmax.f32 %v1190, 0.0
        %v1855 = vmax.f32 %v1541, 0.0
        %v1856 = vmax.f32 %v1543, 0.0
        %v1857 = vmax.f32 %v1194, 0.0
        %v1858 = vmax.f32 %v1196, 0.0
        %v1859 = vmax.f32 %v1547, 0.0
        %v1860 = vmax.f32 %v1549, 0.0
        %v1861 = vmax.f32 %v1198, 0.0
        %v1862 = vmax.f32 %v1200, 0.0
        %v1863 = vmax.f32 %v1551, 0.0
        %v1864 = vmax.f32 %v1553, 0.0
        %v1865 = vmax.f32 %v1204, 0.0
        %v1866 = vmax.f32 %v1206, 0.0
        %v1867 = vmax.f32 %v1557, 0.0
        %v1868 = vmax.f32 %v1559, 0.0
        %v1869 = vmax.f32 %v1208, 0.0
        %v1870 = vmax.f32 %v1210, 0.0
        %v1871 = vmax.f32 %v1561, 0.0
        %v1872 = vmax.f32 %v1563, 0.0
        %v1873 = vmax.f32 %v1214, 0.0
        %v1874 = vmax.f32 %v1216, 0.0
        %v1875 = vmax.f32 %v1567, 0.0
        %v1876 = vmax.f32 %v1569, 0.0
        %v1877 = vmax.f32 %v1218, 0.0
        %v1878 = vmax.f32 %v1220, 0.0
        %v1879 = vmax.f32 %v1571, 0.0
        %v1880 = vmax.f32 %v1573, 0.0
        %v1881 = vmax.f32 %v1224, 0.0
        %v1882 = vmax.f32 %v1226, 0.0
        %v1883 = vmax.f32 %v1577, 0.0
        %v1884 = vmax.f32 %v1579, 0.0
        %v1885 = vmax.f32 %v1228, 0.0
        %v1886 = vmax.f32 %v1230, 0.0
        %v1887 = vmax.f32 %v1581, 0.0
        %v1888 = vmax.f32 %v1583, 0.0
        %v1889 = vmax.f32 %v1234, 0.0
        %v1890 = vmax.f32 %v1236, 0.0
        %v1891 = vmax.f32 %v1587, 0.0
        %v1892 = vmax.f32 %v1589, 0.0
        %v1893 = vmax.f32 %v1238, 0.0
        %v1894 = vmax.f32 %v1240, 0.0
        %v1895 = vmax.f32 %v1591, 0.0
        %v1896 = vmax.f32 %v1593, 0.0
        %v1897 = vmax.f32 %v1244, 0.0
        %v1898 = vmax.f32 %v1246, 0.0
        %v1899 = vmax.f32 %v1597, 0.0
        %v1900 = vmax.f32 %v1599, 0.0
        %v1901 = vmax.f32 %v1248, 0.0
        %v1902 = vmax.f32 %v1250, 0.0
        %v1903 = vmax.f32 %v1601, 0.0
        %v1904 = vmax.f32 %v1603, 0.0
        %v1905 = vmax.f32 %v1254, 0.0
        %v1906 = vmax.f32 %v1256, 0.0
        %v1907 = vmax.f32 %v1607, 0.0
        %v1908 = vmax.f32 %v1609, 0.0
        %v1909 = vmax.f32 %v1258, 0.0
        %v1910 = vmax.f32 %v1260, 0.0
        %v1911 = vmax.f32 %v1611, 0.0
        %v1912 = vmax.f32 %v1613, 0.0
        %v1913 = vmax.f32 %v1264, 0.0
        %v1914 = vmax.f32 %v1266, 0.0
        %v1915 = vmax.f32 %v1617, 0.0
        %v1916 = vmax.f32 %v1619, 0.0
        %v1917 = vmax.f32 %v1268, 0.0
        %v1918 = vmax.f32 %v1270, 0.0
        %v1919 = vmax.f32 %v1621, 0.0
        %v1920 = vmax.f32 %v1623, 0.0
        %v1921 = vmax.f32 %v1274, 0.0
        %v1922 = vmax.f32 %v1276, 0.0
        %v1923 = vmax.f32 %v1627, 0.0
        %v1924 = vmax.f32 %v1629, 0.0
        %v1925 = vmax.f32 %v1278, 0.0
        %v1926 = vmax.f32 %v1280, 0.0
        %v1927 = vmax.f32 %v1631, 0.0
        %v1928 = vmax.f32 %v1633, 0.0
        %v1929 = vmax.f32 %v1284, 0.0
        %v1930 = vmax.f32 %v1286, 0.0
        %v1931 = vmax.f32 %v1637, 0.0
        %v1932 = vmax.f32 %v1639, 0.0
        %v1933 = vmax.f32 %v1288, 0.0
        %v1934 = vmax.f32 %v1290, 0.0
        %v1935 = vmax.f32 %v1641, 0.0
        %v1936 = vmax.f32 %v1643, 0.0
        %v1937 = vmax.f32 %v1294, 0.0
        %v1938 = vmax.f32 %v1296, 0.0
        %v1939 = vmax.f32 %v1647, 0.0
        %v1940 = vmax.f32 %v1649, 0.0
        %v1941 = vmax.f32 %v1298, 0.0
        %v1942 = vmax.f32 %v1300, 0.0
        %v1943 = vmax.f32 %v1651, 0.0
        %v1944 = vmax.f32 %v1653, 0.0
        %v1945 = vmax.f32 %v1304, 0.0
        %v1946 = vmax.f32 %v1306, 0.0
        %v1947 = vmax.f32 %v1657, 0.0
        %v1948 = vmax.f32 %v1659, 0.0
        %v1949 = vmax.f32 %v1308, 0.0
        %v1950 = vmax.f32 %v1310, 0.0
        %v1951 = vmax.f32 %v1661, 0.0
        %v1952 = vmax.f32 %v1663, 0.0
        %v1953 = vmax.f32 %v1314, 0.0
        %v1954 = vmax.f32 %v1316, 0.0
        %v1955 = vmax.f32 %v1667, 0.0
        %v1956 = vmax.f32 %v1669, 0.0
        %v1957 = vmax.f32 %v1318, 0.0
        %v1958 = vmax.f32 %v1320, 0.0
        %v1959 = vmax.f32 %v1671, 0.0
        %v1960 = vmax.f32 %v1673, 0.0
        %v1961 = vmax.f32 %v1324, 0.0
        %v1962 = vmax.f32 %v1326, 0.0
        %v1963 = vmax.f32 %v1677, 0.0
        %v1964 = vmax.f32 %v1679, 0.0
        %v1965 = vmax.f32 %v1328, 0.0
        %v1966 = vmax.f32 %v1330, 0.0
        %v1967 = vmax.f32 %v1681, 0.0
        %v1968 = vmax.f32 %v1683, 0.0
        %v1969 = vmax.f32 %v1334, 0.0
        %v1970 = vmax.f32 %v1336, 0.0
        %v1971 = vmax.f32 %v1687, 0.0
        %v1972 = vmax.f32 %v1689, 0.0
        %v1973 = vmax.f32 %v1338, 0.0
        %v1974 = vmax.f32 %v1340, 0.0
        %v1975 = vmax.f32 %v1691, 0.0
        %v1976 = vmax.f32 %v1693, 0.0
        %v1977 = vmax.f32 %v1344, 0.0
        %v1978 = vmax.f32 %v1346, 0.0
        %v1979 = vmax.f32 %v1697, 0.0
        %v1980 = vmax.f32 %v1699, 0.0
        %v1981 = vmax.f32 %v1348, 0.0
        %v1982 = vmax.f32 %v1350, 0.0
        %v1983 = vmax.f32 %v1701, 0.0
        %v1984 = vmax.f32 %v1703, 0.0
        %v1985 = vmax.f32 %v1354, 0.0
        %v1986 = vmax.f32 %v1356, 0.0
        %v1987 = vmax.f32 %v1707, 0.0
        %v1988 = vmax.f32 %v1709, 0.0
        %v1989 = vmax.f32 %v1358, 0.0
        %v1990 = vmax.f32 %v1360, 0.0
        %v1991 = vmax.f32 %v1711, 0.0
        %v1992 = vmax.f32 %v1713, 0.0
        %v1993 = vmax.f32 %v1364, 0.0
        %v1994 = vmax.f32 %v1366, 0.0
        %v1995 = vmax.f32 %v1717, 0.0
        %v1996 = vmax.f32 %v1719, 0.0
        %v1997 = vmax.f32 %v1368, 0.0
        %v1998 = vmax.f32 %v1370, 0.0
        %v1999 = vmax.f32 %v1721, 0.0
        %v2000 = vmax.f32 %v1723, 0.0
        %v2001 = vmax.f32 %v1374, 0.0
        %v2002 = vmax.f32 %v1376, 0.0
        %v2003 = vmax.f32 %v1727, 0.0
        %v2004 = vmax.f32 %v1729, 0.0
        %v2005 = vmax.f32 %v1378, 0.0
        %v2006 = vmax.f32 %v1380, 0.0
        %v2007 = vmax.f32 %v1731, 0.0
        %v2008 = vmax.f32 %v1733, 0.0
        %v2009 = vmax.f32 %v1384, 0.0
        %v2010 = vmax.f32 %v1386, 0.0
        %v2011 = vmax.f32 %v1737, 0.0
        %v2012 = vmax.f32 %v1739, 0.0
        %v2013 = vmax.f32 %v1388, 0.0
        %v2014 = vmax.f32 %v1390, 0.0
        %v2015 = vmax.f32 %v1741, 0.0
        %v2016 = vmax.f32 %v1743, 0.0
        %v2017 = vmax.f32 %v1394, 0.0
        %v2018 = vmax.f32 %v1396, 0.0
        %v2019 = vmax.f32 %v1747, 0.0
        %v2020 = vmax.f32 %v1749, 0.0
        %v2021 = vmax.f32 %v1398, 0.0
        %v2022 = vmax.f32 %v1400, 0.0
        %v2023 = vmax.f32 %v1751, 0.0
        %v2024 = vmax.f32 %v1753, 0.0
        %v2025 = vmax.f32 %v1404, 0.0
        %v2026 = vmax.f32 %v1406, 0.0
        %v2027 = vmax.f32 %v1757, 0.0
        %v2028 = vmax.f32 %v1759, 0.0
        %v2029 = vmax.f32 %v1408, 0.0
        %v2030 = vmax.f32 %v1410, 0.0
        %v2031 = vmax.f32 %v1761, 0.0
        %v2032 = vmax.f32 %v1763, 0.0
        %v2033 = vmax.f32 %v1414, 0.0
        %v2034 = vmax.f32 %v1416, 0.0
        %v2035 = vmax.f32 %v1767, 0.0
        %v2036 = vmax.f32 %v1769, 0.0
        %v2037 = vmax.f32 %v1418, 0.0
        %v2038 = vmax.f32 %v1420, 0.0
        %v2039 = vmax.f32 %v1771, 0.0
        %v2040 = vmax.f32 %v1773, 0.0
        %v2041 = vmax.f32 %v1424, 0.0
        %v2042 = vmax.f32 %v1426, 0.0
        %v2043 = vmax.f32 %v1777, 0.0
        %v2044 = vmax.f32 %v1779, 0.0
        %v2045 = vmax.f32 %v1428, 0.0
        %v2046 = vmax.f32 %v1430, 0.0
        %v2047 = vmax.f32 %v1781, 0.0
        %v2048 = vmax.f32 %v1783, 0.0
        %v2049 = vmax.f32 %v1434, 0.0
        %v2050 = vmax.f32 %v1436, 0.0
        %v2051 = vmax.f32 %v1787, 0.0
        %v2052 = vmax.f32 %v1789, 0.0
        %v2053 = vmax.f32 %v1438, 0.0
        %v2054 = vmax.f32 %v1440, 0.0
        %v2055 = vmax.f32 %v1791, 0.0
        %v2056 = vmax.f32 %v1793, 0.0
        %v2057 = vmax.f32 %v1444, 0.0
        %v2058 = vmax.f32 %v1446, 0.0
        %v2059 = vmax.f32 %v1797, 0.0
        %v2060 = vmax.f32 %v1799, 0.0
        %v2061 = vmax.f32 %v1448, 0.0
        %v2062 = vmax.f32 %v1450, 0.0
        %v2063 = vmax.f32 %v1801, 0.0
        %v2064 = vmax.f32 %v1803, 0.0
        %v2065 = vmax.f32 %v1454, 0.0
        %v2066 = vmax.f32 %v1456, 0.0
        %v2067 = vmax.f32 %v1807, 0.0
        %v2068 = vmax.f32 %v1809, 0.0
        %v2069 = vmax.f32 %v1458, 0.0
        %v2070 = vmax.f32 %v1460, 0.0
        %v2071 = vmax.f32 %v1811, 0.0
        %v2072 = vmax.f32 %v1813, 0.0
        %v2073 = vmax.f32 %v1464, 0.0
        %v2074 = vmax.f32 %v1466, 0.0
        %v2075 = vmax.f32 %v1817, 0.0
        %v2076 = vmax.f32 %v1819, 0.0
        %v2077 = vmax.f32 %v1468, 0.0
        %v2078 = vmax.f32 %v1470, 0.0
        %v2079 = vmax.f32 %v1821, 0.0
        %v2080 = vmax.f32 %v1823, 0.0
        %v2081 = vld [vmem:[#allocation2] sm:$0xff]
        %v2082 = vld [vmem:[#allocation2 + $0x8] sm:$0xff]
        %v2083 = vld [vmem:[#allocation2 + $0x10] sm:$0xff]
        %v2084 = vld [vmem:[#allocation2 + $0x18] sm:$0xff]
        %v2085 = vld [vmem:[#allocation2 + $0x20] sm:$0xff]
        %v2086 = vld [vmem:[#allocation2 + $0x28] sm:$0xff]
        %v2087 = vld [vmem:[#allocation2 + $0x30] sm:$0xff]
        %v2088 = vld [vmem:[#allocation2 + $0x38] sm:$0xff]
        %v2089 = vld [vmem:[#allocation2 + $0x40] sm:$0xff]
        %v2090 = vld [vmem:[#allocation2 + $0x48] sm:$0xff]
        %v2091 = vld [vmem:[#allocation2 + $0x50] sm:$0xff]
        %v2092 = vld [vmem:[#allocation2 + $0x58] sm:$0xff]
        %v2093 = vld [vmem:[#allocation2 + $0x60] sm:$0xff]
        %v2094 = vld [vmem:[#allocation2 + $0x68] sm:$0xff]
        %v2095 = vld [vmem:[#allocation2 + $0x70] sm:$0xff]
        %v2096 = vld [vmem:[#allocation2 + $0x78] sm:$0xff]
        %v2097 = vld [vmem:[#allocation2 + $0x80] sm:$0xff]
        %v2098 = vld [vmem:[#allocation2 + $0x88] sm:$0xff]
        %v2099 = vld [vmem:[#allocation2 + $0x90] sm:$0xff]
        %v2100 = vld [vmem:[#allocation2 + $0x98] sm:$0xff]
        %v2101 = vld [vmem:[#allocation2 + $0xa0] sm:$0xff]
        %v2102 = vld [vmem:[#allocation2 + $0xa8] sm:$0xff]
        %v2103 = vld [vmem:[#allocation2 + $0xb0] sm:$0xff]
        %v2104 = vld [vmem:[#allocation2 + $0xb8] sm:$0xff]
        %v2105 = vld [vmem:[#allocation2 + $0xc0] sm:$0xff]
        %v2106 = vld [vmem:[#allocation2 + $0xc8] sm:$0xff]
        %v2107 = vld [vmem:[#allocation2 + $0xd0] sm:$0xff]
        %v2108 = vld [vmem:[#allocation2 + $0xd8] sm:$0xff]
        %v2109 = vld [vmem:[#allocation2 + $0xe0] sm:$0xff]
        %v2110 = vld [vmem:[#allocation2 + $0xe8] sm:$0xff]
        %v2111 = vld [vmem:[#allocation2 + $0xf0] sm:$0xff]
        %v2112 = vld [vmem:[#allocation2 + $0xf8] sm:$0xff]
        %v2113 = vld [vmem:[#allocation2 + $0x100] sm:$0xff]
        %v2114 = vld [vmem:[#allocation2 + $0x108] sm:$0xff]
        %v2115 = vld [vmem:[#allocation2 + $0x110] sm:$0xff]
        %v2116 = vld [vmem:[#allocation2 + $0x118] sm:$0xff]
        %v2117 = vld [vmem:[#allocation2 + $0x120] sm:$0xff]
        %v2118 = vld [vmem:[#allocation2 + $0x128] sm:$0xff]
        %v2119 = vld [vmem:[#allocation2 + $0x130] sm:$0xff]
        %v2120 = vld [vmem:[#allocation2 + $0x138] sm:$0xff]
        %v2121 = vld [vmem:[#allocation2 + $0x140] sm:$0xff]
        %v2122 = vld [vmem:[#allocation2 + $0x148] sm:$0xff]
        %v2123 = vld [vmem:[#allocation2 + $0x150] sm:$0xff]
        %v2124 = vld [vmem:[#allocation2 + $0x158] sm:$0xff]
        %v2125 = vld [vmem:[#allocation2 + $0x160] sm:$0xff]
        %v2126 = vld [vmem:[#allocation2 + $0x168] sm:$0xff]
        %v2127 = vld [vmem:[#allocation2 + $0x170] sm:$0xff]
        %v2128 = vld [vmem:[#allocation2 + $0x178] sm:$0xff]
        %v2129 = vld [vmem:[#allocation2 + $0x180] sm:$0xff]
        %v2130 = vld [vmem:[#allocation2 + $0x188] sm:$0xff]
        %v2131 = vld [vmem:[#allocation2 + $0x190] sm:$0xff]
        %v2132 = vld [vmem:[#allocation2 + $0x198] sm:$0xff]
        %v2133 = vld [vmem:[#allocation2 + $0x1a0] sm:$0xff]
        %v2134 = vld [vmem:[#allocation2 + $0x1a8] sm:$0xff]
        %v2135 = vld [vmem:[#allocation2 + $0x1b0] sm:$0xff]
        %v2136 = vld [vmem:[#allocation2 + $0x1b8] sm:$0xff]
        %v2137 = vld [vmem:[#allocation2 + $0x1c0] sm:$0xff]
        %v2138 = vld [vmem:[#allocation2 + $0x1c8] sm:$0xff]
        %v2139 = vld [vmem:[#allocation2 + $0x1d0] sm:$0xff]
        %v2140 = vld [vmem:[#allocation2 + $0x1d8] sm:$0xff]
        %v2141 = vld [vmem:[#allocation2 + $0x1e0] sm:$0xff]
        %v2142 = vld [vmem:[#allocation2 + $0x1e8] sm:$0xff]
        %v2143 = vld [vmem:[#allocation2 + $0x1f0] sm:$0xff]
        %v2144 = vld [vmem:[#allocation2 + $0x1f8] sm:$0xff]
        %v2145 = vld [vmem:[#allocation2 + $0x200] sm:$0xff]
        %v2146 = vld [vmem:[#allocation2 + $0x208] sm:$0xff]
        %v2147 = vld [vmem:[#allocation2 + $0x210] sm:$0xff]
        %v2148 = vld [vmem:[#allocation2 + $0x218] sm:$0xff]
        %v2149 = vld [vmem:[#allocation2 + $0x220] sm:$0xff]
        %v2150 = vld [vmem:[#allocation2 + $0x228] sm:$0xff]
        %v2151 = vld [vmem:[#allocation2 + $0x230] sm:$0xff]
        %v2152 = vld [vmem:[#allocation2 + $0x238] sm:$0xff]
        %v2153 = vld [vmem:[#allocation2 + $0x240] sm:$0xff]
        %v2154 = vld [vmem:[#allocation2 + $0x248] sm:$0xff]
        %v2155 = vld [vmem:[#allocation2 + $0x250] sm:$0xff]
        %v2156 = vld [vmem:[#allocation2 + $0x258] sm:$0xff]
        %v2157 = vld [vmem:[#allocation2 + $0x260] sm:$0xff]
        %v2158 = vld [vmem:[#allocation2 + $0x268] sm:$0xff]
        %v2159 = vld [vmem:[#allocation2 + $0x270] sm:$0xff]
        %v2160 = vld [vmem:[#allocation2 + $0x278] sm:$0xff]
        %v2161 = vld [vmem:[#allocation2 + $0x280] sm:$0xff]
        %v2162 = vld [vmem:[#allocation2 + $0x288] sm:$0xff]
        %v2163 = vld [vmem:[#allocation2 + $0x290] sm:$0xff]
        %v2164 = vld [vmem:[#allocation2 + $0x298] sm:$0xff]
        %v2165 = vld [vmem:[#allocation2 + $0x2a0] sm:$0xff]
        %v2166 = vld [vmem:[#allocation2 + $0x2a8] sm:$0xff]
        %v2167 = vld [vmem:[#allocation2 + $0x2b0] sm:$0xff]
        %v2168 = vld [vmem:[#allocation2 + $0x2b8] sm:$0xff]
        %v2169 = vld [vmem:[#allocation2 + $0x2c0] sm:$0xff]
        %v2170 = vld [vmem:[#allocation2 + $0x2c8] sm:$0xff]
        %v2171 = vld [vmem:[#allocation2 + $0x2d0] sm:$0xff]
        %v2172 = vld [vmem:[#allocation2 + $0x2d8] sm:$0xff]
        %v2173 = vld [vmem:[#allocation2 + $0x2e0] sm:$0xff]
        %v2174 = vld [vmem:[#allocation2 + $0x2e8] sm:$0xff]
        %v2175 = vld [vmem:[#allocation2 + $0x2f0] sm:$0xff]
        %v2176 = vld [vmem:[#allocation2 + $0x2f8] sm:$0xff]
        %v2177 = vld [vmem:[#allocation2 + $0x300] sm:$0xff]
        %v2178 = vld [vmem:[#allocation2 + $0x308] sm:$0xff]
        %v2179 = vld [vmem:[#allocation2 + $0x310] sm:$0xff]
        %v2180 = vld [vmem:[#allocation2 + $0x318] sm:$0xff]
        %v2181 = vld [vmem:[#allocation2 + $0x320] sm:$0xff]
        %v2182 = vld [vmem:[#allocation2 + $0x328] sm:$0xff]
        %v2183 = vld [vmem:[#allocation2 + $0x330] sm:$0xff]
        %v2184 = vld [vmem:[#allocation2 + $0x338] sm:$0xff]
        %v2185 = vld [vmem:[#allocation2 + $0x340] sm:$0xff]
        %v2186 = vld [vmem:[#allocation2 + $0x348] sm:$0xff]
        %v2187 = vld [vmem:[#allocation2 + $0x350] sm:$0xff]
        %v2188 = vld [vmem:[#allocation2 + $0x358] sm:$0xff]
        %v2189 = vld [vmem:[#allocation2 + $0x360] sm:$0xff]
        %v2190 = vld [vmem:[#allocation2 + $0x368] sm:$0xff]
        %v2191 = vld [vmem:[#allocation2 + $0x370] sm:$0xff]
        %v2192 = vld [vmem:[#allocation2 + $0x378] sm:$0xff]
        %v2193 = vld [vmem:[#allocation2 + $0x380] sm:$0xff]
        %v2194 = vld [vmem:[#allocation2 + $0x388] sm:$0xff]
        %v2195 = vld [vmem:[#allocation2 + $0x390] sm:$0xff]
        %v2196 = vld [vmem:[#allocation2 + $0x398] sm:$0xff]
        %v2197 = vld [vmem:[#allocation2 + $0x3a0] sm:$0xff]
        %v2198 = vld [vmem:[#allocation2 + $0x3a8] sm:$0xff]
        %v2199 = vld [vmem:[#allocation2 + $0x3b0] sm:$0xff]
        %v2200 = vld [vmem:[#allocation2 + $0x3b8] sm:$0xff]
        %v2201 = vld [vmem:[#allocation2 + $0x3c0] sm:$0xff]
        %v2202 = vld [vmem:[#allocation2 + $0x3c8] sm:$0xff]
        %v2203 = vld [vmem:[#allocation2 + $0x3d0] sm:$0xff]
        %v2204 = vld [vmem:[#allocation2 + $0x3d8] sm:$0xff]
        %v2205 = vld [vmem:[#allocation2 + $0x3e0] sm:$0xff]
        %v2206 = vld [vmem:[#allocation2 + $0x3e8] sm:$0xff]
        %v2207 = vld [vmem:[#allocation2 + $0x3f0] sm:$0xff]
        %v2208 = vld [vmem:[#allocation2 + $0x3f8] sm:$0xff]
        %v2209 = vpack.c.bf16 %v1829, %v1825
        %v2210 = vpack.c.bf16 %v1830, %v1826
        %v2211 = vpack.c.bf16 %v1831, %v1827
        %v2212 = vpack.c.bf16 %v1832, %v1828
        %v2213 = vpack.c.bf16 %v1837, %v1833
        %v2214 = vpack.c.bf16 %v1838, %v1834
        %v2215 = vpack.c.bf16 %v1839, %v1835
        %v2216 = vpack.c.bf16 %v1840, %v1836
        %v2217 = vpack.c.bf16 %v1845, %v1841
        %v2218 = vpack.c.bf16 %v1846, %v1842
        %v2219 = vpack.c.bf16 %v1847, %v1843
        %v2220 = vpack.c.bf16 %v1848, %v1844
        %v2221 = vpack.c.bf16 %v1853, %v1849
        %v2222 = vpack.c.bf16 %v1854, %v1850
        %v2223 = vpack.c.bf16 %v1855, %v1851
        %v2224 = vpack.c.bf16 %v1856, %v1852
        %v2225 = vpack.c.bf16 %v1861, %v1857
        %v2226 = vpack.c.bf16 %v1862, %v1858
        %v2227 = vpack.c.bf16 %v1863, %v1859
        %v2228 = vpack.c.bf16 %v1864, %v1860
        %v2229 = vpack.c.bf16 %v1869, %v1865
        %v2230 = vpack.c.bf16 %v1870, %v1866
        %v2231 = vpack.c.bf16 %v1871, %v1867
        %v2232 = vpack.c.bf16 %v1872, %v1868
        %v2233 = vpack.c.bf16 %v1877, %v1873
        %v2234 = vpack.c.bf16 %v1878, %v1874
        %v2235 = vpack.c.bf16 %v1879, %v1875
        %v2236 = vpack.c.bf16 %v1880, %v1876
        %v2237 = vpack.c.bf16 %v1885, %v1881
        %v2238 = vpack.c.bf16 %v1886, %v1882
        %v2239 = vpack.c.bf16 %v1887, %v1883
        %v2240 = vpack.c.bf16 %v1888, %v1884
        %v2241 = vpack.c.bf16 %v1893, %v1889
        %v2242 = vpack.c.bf16 %v1894, %v1890
        %v2243 = vpack.c.bf16 %v1895, %v1891
        %v2244 = vpack.c.bf16 %v1896, %v1892
        %v2245 = vpack.c.bf16 %v1901, %v1897
        %v2246 = vpack.c.bf16 %v1902, %v1898
        %v2247 = vpack.c.bf16 %v1903, %v1899
        %v2248 = vpack.c.bf16 %v1904, %v1900
        %v2249 = vpack.c.bf16 %v1909, %v1905
        %v2250 = vpack.c.bf16 %v1910, %v1906
        %v2251 = vpack.c.bf16 %v1911, %v1907
        %v2252 = vpack.c.bf16 %v1912, %v1908
        %v2253 = vpack.c.bf16 %v1917, %v1913
        %v2254 = vpack.c.bf16 %v1918, %v1914
        %v2255 = vpack.c.bf16 %v1919, %v1915
        %v2256 = vpack.c.bf16 %v1920, %v1916
        %v2257 = vpack.c.bf16 %v1925, %v1921
        %v2258 = vpack.c.bf16 %v1926, %v1922
        %v2259 = vpack.c.bf16 %v1927, %v1923
        %v2260 = vpack.c.bf16 %v1928, %v1924
        %v2261 = vpack.c.bf16 %v1933, %v1929
        %v2262 = vpack.c.bf16 %v1934, %v1930
        %v2263 = vpack.c.bf16 %v1935, %v1931
        %v2264 = vpack.c.bf16 %v1936, %v1932
        %v2265 = vpack.c.bf16 %v1941, %v1937
        %v2266 = vpack.c.bf16 %v1942, %v1938
        %v2267 = vpack.c.bf16 %v1943, %v1939
        %v2268 = vpack.c.bf16 %v1944, %v1940
        %v2269 = vpack.c.bf16 %v1949, %v1945
        %v2270 = vpack.c.bf16 %v1950, %v1946
        %v2271 = vpack.c.bf16 %v1951, %v1947
        %v2272 = vpack.c.bf16 %v1952, %v1948
        %v2273 = vpack.c.bf16 %v1957, %v1953
        %v2274 = vpack.c.bf16 %v1958, %v1954
        %v2275 = vpack.c.bf16 %v1959, %v1955
        %v2276 = vpack.c.bf16 %v1960, %v1956
        %v2277 = vpack.c.bf16 %v1965, %v1961
        %v2278 = vpack.c.bf16 %v1966, %v1962
        %v2279 = vpack.c.bf16 %v1967, %v1963
        %v2280 = vpack.c.bf16 %v1968, %v1964
        %v2281 = vpack.c.bf16 %v1973, %v1969
        %v2282 = vpack.c.bf16 %v1974, %v1970
        %v2283 = vpack.c.bf16 %v1975, %v1971
        %v2284 = vpack.c.bf16 %v1976, %v1972
        %v2285 = vpack.c.bf16 %v1981, %v1977
        %v2286 = vpack.c.bf16 %v1982, %v1978
        %v2287 = vpack.c.bf16 %v1983, %v1979
        %v2288 = vpack.c.bf16 %v1984, %v1980
        %v2289 = vpack.c.bf16 %v1989, %v1985
        %v2290 = vpack.c.bf16 %v1990, %v1986
        %v2291 = vpack.c.bf16 %v1991, %v1987
        %v2292 = vpack.c.bf16 %v1992, %v1988
        %v2293 = vpack.c.bf16 %v1997, %v1993
        %v2294 = vpack.c.bf16 %v1998, %v1994
        %v2295 = vpack.c.bf16 %v1999, %v1995
        %v2296 = vpack.c.bf16 %v2000, %v1996
        %v2297 = vpack.c.bf16 %v2005, %v2001
        %v2298 = vpack.c.bf16 %v2006, %v2002
        %v2299 = vpack.c.bf16 %v2007, %v2003
        %v2300 = vpack.c.bf16 %v2008, %v2004
        %v2301 = vpack.c.bf16 %v2013, %v2009
        %v2302 = vpack.c.bf16 %v2014, %v2010
        %v2303 = vpack.c.bf16 %v2015, %v2011
        %v2304 = vpack.c.bf16 %v2016, %v2012
        %v2305 = vpack.c.bf16 %v2021, %v2017
        %v2306 = vpack.c.bf16 %v2022, %v2018
        %v2307 = vpack.c.bf16 %v2023, %v2019
        %v2308 = vpack.c.bf16 %v2024, %v2020
        %v2309 = vpack.c.bf16 %v2029, %v2025
        %v2310 = vpack.c.bf16 %v2030, %v2026
        %v2311 = vpack.c.bf16 %v2031, %v2027
        %v2312 = vpack.c.bf16 %v2032, %v2028
        %v2313 = vpack.c.bf16 %v2037, %v2033
        %v2314 = vpack.c.bf16 %v2038, %v2034
        %v2315 = vpack.c.bf16 %v2039, %v2035
        %v2316 = vpack.c.bf16 %v2040, %v2036
        %v2317 = vpack.c.bf16 %v2045, %v2041
        %v2318 = vpack.c.bf16 %v2046, %v2042
        %v2319 = vpack.c.bf16 %v2047, %v2043
        %v2320 = vpack.c.bf16 %v2048, %v2044
        %v2321 = vpack.c.bf16 %v2053, %v2049
        %v2322 = vpack.c.bf16 %v2054, %v2050
        %v2323 = vpack.c.bf16 %v2055, %v2051
        %v2324 = vpack.c.bf16 %v2056, %v2052
        %v2325 = vpack.c.bf16 %v2061, %v2057
        %v2326 = vpack.c.bf16 %v2062, %v2058
        %v2327 = vpack.c.bf16 %v2063, %v2059
        %v2328 = vpack.c.bf16 %v2064, %v2060
        %v2329 = vpack.c.bf16 %v2069, %v2065
        %v2330 = vpack.c.bf16 %v2070, %v2066
        %v2331 = vpack.c.bf16 %v2071, %v2067
        %v2332 = vpack.c.bf16 %v2072, %v2068
        %v2333 = vpack.c.bf16 %v2077, %v2073
        %v2334 = vpack.c.bf16 %v2078, %v2074
        %v2335 = vpack.c.bf16 %v2079, %v2075
        %v2336 = vpack.c.bf16 %v2080, %v2076
        %v2337 = vld [vmem:[%s338] sm:$0xff]
        %v2338 = vld [vmem:[%s338 + $0x8] sm:$0xff]
        %v2339 = vld [vmem:[%s338 + $0x10] sm:$0xff]
        %v2340 = vld [vmem:[%s338 + $0x18] sm:$0xff]
        %v2341 = vld [vmem:[%s338 + $0x20] sm:$0xff]
        %v2342 = vld [vmem:[%s338 + $0x28] sm:$0xff]
        %v2343 = vld [vmem:[%s338 + $0x30] sm:$0xff]
        %v2344 = vld [vmem:[%s338 + $0x38] sm:$0xff]
        %v2345 = vld [vmem:[%s338 + $0x40] sm:$0xff]
        %v2346 = vld [vmem:[%s338 + $0x48] sm:$0xff]
        %v2347 = vld [vmem:[%s338 + $0x50] sm:$0xff]
        %v2348 = vld [vmem:[%s338 + $0x58] sm:$0xff]
        %v2349 = vld [vmem:[%s338 + $0x60] sm:$0xff]
        %v2350 = vld [vmem:[%s338 + $0x68] sm:$0xff]
        %v2351 = vld [vmem:[%s338 + $0x70] sm:$0xff]
        %v2352 = vld [vmem:[%s338 + $0x78] sm:$0xff]
        %v2353 = vld [vmem:[%s338 + $0x80] sm:$0xff]
        %v2354 = vld [vmem:[%s338 + $0x88] sm:$0xff]
        %v2355 = vld [vmem:[%s338 + $0x90] sm:$0xff]
        %v2356 = vld [vmem:[%s338 + $0x98] sm:$0xff]
        %v2357 = vld [vmem:[%s338 + $0xa0] sm:$0xff]
        %v2358 = vld [vmem:[%s338 + $0xa8] sm:$0xff]
        %v2359 = vld [vmem:[%s338 + $0xb0] sm:$0xff]
        %v2360 = vld [vmem:[%s338 + $0xb8] sm:$0xff]
        %v2361 = vld [vmem:[%s338 + $0xc0] sm:$0xff]
        %v2362 = vld [vmem:[%s338 + $0xc8] sm:$0xff]
        %v2363 = vld [vmem:[%s338 + $0xd0] sm:$0xff]
        %v2364 = vld [vmem:[%s338 + $0xd8] sm:$0xff]
        %v2365 = vld [vmem:[%s338 + $0xe0] sm:$0xff]
        %v2366 = vld [vmem:[%s338 + $0xe8] sm:$0xff]
        %v2367 = vld [vmem:[%s338 + $0xf0] sm:$0xff]
        %v2368 = vld [vmem:[%s338 + $0xf8] sm:$0xff]
        %v2369 = vld [vmem:[%s338 + $0x100] sm:$0xff]
        %v2370 = vld [vmem:[%s338 + $0x108] sm:$0xff]
        %v2371 = vld [vmem:[%s338 + $0x110] sm:$0xff]
        %v2372 = vld [vmem:[%s338 + $0x118] sm:$0xff]
        %v2373 = vld [vmem:[%s338 + $0x120] sm:$0xff]
        %v2374 = vld [vmem:[%s338 + $0x128] sm:$0xff]
        %v2375 = vld [vmem:[%s338 + $0x130] sm:$0xff]
        %v2376 = vld [vmem:[%s338 + $0x138] sm:$0xff]
        %v2377 = vld [vmem:[%s338 + $0x140] sm:$0xff]
        %v2378 = vld [vmem:[%s338 + $0x148] sm:$0xff]
        %v2379 = vld [vmem:[%s338 + $0x150] sm:$0xff]
        %v2380 = vld [vmem:[%s338 + $0x158] sm:$0xff]
        %v2381 = vld [vmem:[%s338 + $0x160] sm:$0xff]
        %v2382 = vld [vmem:[%s338 + $0x168] sm:$0xff]
        %v2383 = vld [vmem:[%s338 + $0x170] sm:$0xff]
        %v2384 = vld [vmem:[%s338 + $0x178] sm:$0xff]
        %v2385 = vld [vmem:[%s338 + $0x180] sm:$0xff]
        %v2386 = vld [vmem:[%s338 + $0x188] sm:$0xff]
        %v2387 = vld [vmem:[%s338 + $0x190] sm:$0xff]
        %v2388 = vld [vmem:[%s338 + $0x198] sm:$0xff]
        %v2389 = vld [vmem:[%s338 + $0x1a0] sm:$0xff]
        %v2390 = vld [vmem:[%s338 + $0x1a8] sm:$0xff]
        %v2391 = vld [vmem:[%s338 + $0x1b0] sm:$0xff]
        %v2392 = vld [vmem:[%s338 + $0x1b8] sm:$0xff]
        %v2393 = vld [vmem:[%s338 + $0x1c0] sm:$0xff]
        %v2394 = vld [vmem:[%s338 + $0x1c8] sm:$0xff]
        %v2395 = vld [vmem:[%s338 + $0x1d0] sm:$0xff]
        %v2396 = vld [vmem:[%s338 + $0x1d8] sm:$0xff]
        %v2397 = vld [vmem:[%s338 + $0x1e0] sm:$0xff]
        %v2398 = vld [vmem:[%s338 + $0x1e8] sm:$0xff]
        %v2399 = vld [vmem:[%s338 + $0x1f0] sm:$0xff]
        %v2400 = vld [vmem:[%s338 + $0x1f8] sm:$0xff]
        %v2465 = vunpack.c.l.b16 %v2337
        %v2466 = vunpack.c.h.b16 %v2337
        %v2467 = vunpack.c.l.b16 %v2338
        %v2468 = vunpack.c.h.b16 %v2338
        %v2469 = vunpack.c.l.b16 %v2339
        %v2470 = vunpack.c.h.b16 %v2339
        %v2471 = vunpack.c.l.b16 %v2340
        %v2472 = vunpack.c.h.b16 %v2340
        %v2473 = vunpack.c.l.b16 %v2341
        %v2474 = vunpack.c.h.b16 %v2341
        %v2475 = vunpack.c.l.b16 %v2342
        %v2476 = vunpack.c.h.b16 %v2342
        %v2477 = vunpack.c.l.b16 %v2343
        %v2478 = vunpack.c.h.b16 %v2343
        %v2479 = vunpack.c.l.b16 %v2344
        %v2480 = vunpack.c.h.b16 %v2344
        %v2481 = vunpack.c.l.b16 %v2345
        %v2482 = vunpack.c.h.b16 %v2345
        %v2483 = vunpack.c.l.b16 %v2346
        %v2484 = vunpack.c.h.b16 %v2346
        %v2485 = vunpack.c.l.b16 %v2347
        %v2486 = vunpack.c.h.b16 %v2347
        %v2487 = vunpack.c.l.b16 %v2348
        %v2488 = vunpack.c.h.b16 %v2348
        %v2489 = vunpack.c.l.b16 %v2349
        %v2490 = vunpack.c.h.b16 %v2349
        %v2491 = vunpack.c.l.b16 %v2350
        %v2492 = vunpack.c.h.b16 %v2350
        %v2493 = vunpack.c.l.b16 %v2351
        %v2494 = vunpack.c.h.b16 %v2351
        %v2495 = vunpack.c.l.b16 %v2352
        %v2496 = vunpack.c.h.b16 %v2352
        %v2497 = vunpack.c.l.b16 %v2353
        %v2498 = vunpack.c.h.b16 %v2353
        %v2499 = vunpack.c.l.b16 %v2354
        %v2500 = vunpack.c.h.b16 %v2354
        %v2501 = vunpack.c.l.b16 %v2355
        %v2502 = vunpack.c.h.b16 %v2355
        %v2503 = vunpack.c.l.b16 %v2356
        %v2504 = vunpack.c.h.b16 %v2356
        %v2505 = vunpack.c.l.b16 %v2357
        %v2506 = vunpack.c.h.b16 %v2357
        %v2507 = vunpack.c.l.b16 %v2358
        %v2508 = vunpack.c.h.b16 %v2358
        %v2509 = vunpack.c.l.b16 %v2359
        %v2510 = vunpack.c.h.b16 %v2359
        %v2511 = vunpack.c.l.b16 %v2360
        %v2512 = vunpack.c.h.b16 %v2360
        %v2513 = vunpack.c.l.b16 %v2361
        %v2514 = vunpack.c.h.b16 %v2361
        %v2515 = vunpack.c.l.b16 %v2362
        %v2516 = vunpack.c.h.b16 %v2362
        %v2517 = vunpack.c.l.b16 %v2363
        %v2518 = vunpack.c.h.b16 %v2363
        %v2519 = vunpack.c.l.b16 %v2364
        %v2520 = vunpack.c.h.b16 %v2364
        %v2521 = vunpack.c.l.b16 %v2365
        %v2522 = vunpack.c.h.b16 %v2365
        %v2523 = vunpack.c.l.b16 %v2366
        %v2524 = vunpack.c.h.b16 %v2366
        %v2525 = vunpack.c.l.b16 %v2367
        %v2526 = vunpack.c.h.b16 %v2367
        %v2527 = vunpack.c.l.b16 %v2368
        %v2528 = vunpack.c.h.b16 %v2368
        %v2529 = vunpack.c.l.b16 %v2369
        %v2530 = vunpack.c.h.b16 %v2369
        %v2531 = vunpack.c.l.b16 %v2370
        %v2532 = vunpack.c.h.b16 %v2370
        %v2533 = vunpack.c.l.b16 %v2371
        %v2534 = vunpack.c.h.b16 %v2371
        %v2535 = vunpack.c.l.b16 %v2372
        %v2536 = vunpack.c.h.b16 %v2372
        %v2537 = vunpack.c.l.b16 %v2373
        %v2538 = vunpack.c.h.b16 %v2373
        %v2539 = vunpack.c.l.b16 %v2374
        %v2540 = vunpack.c.h.b16 %v2374
        %v2541 = vunpack.c.l.b16 %v2375
        %v2542 = vunpack.c.h.b16 %v2375
        %v2543 = vunpack.c.l.b16 %v2376
        %v2544 = vunpack.c.h.b16 %v2376
        %v2545 = vunpack.c.l.b16 %v2377
        %v2546 = vunpack.c.h.b16 %v2377
        %v2547 = vunpack.c.l.b16 %v2378
        %v2548 = vunpack.c.h.b16 %v2378
        %v2549 = vunpack.c.l.b16 %v2379
        %v2550 = vunpack.c.h.b16 %v2379
        %v2551 = vunpack.c.l.b16 %v2380
        %v2552 = vunpack.c.h.b16 %v2380
        %v2553 = vunpack.c.l.b16 %v2381
        %v2554 = vunpack.c.h.b16 %v2381
        %v2555 = vunpack.c.l.b16 %v2382
        %v2556 = vunpack.c.h.b16 %v2382
        %v2557 = vunpack.c.l.b16 %v2383
        %v2558 = vunpack.c.h.b16 %v2383
        %v2559 = vunpack.c.l.b16 %v2384
        %v2560 = vunpack.c.h.b16 %v2384
        %v2561 = vunpack.c.l.b16 %v2385
        %v2562 = vunpack.c.h.b16 %v2385
        %v2563 = vunpack.c.l.b16 %v2386
        %v2564 = vunpack.c.h.b16 %v2386
        %v2565 = vunpack.c.l.b16 %v2387
        %v2566 = vunpack.c.h.b16 %v2387
        %v2567 = vunpack.c.l.b16 %v2388
        %v2568 = vunpack.c.h.b16 %v2388
        %v2569 = vunpack.c.l.b16 %v2389
        %v2570 = vunpack.c.h.b16 %v2389
        %v2571 = vunpack.c.l.b16 %v2390
        %v2572 = vunpack.c.h.b16 %v2390
        %v2573 = vunpack.c.l.b16 %v2391
        %v2574 = vunpack.c.h.b16 %v2391
        %v2575 = vunpack.c.l.b16 %v2392
        %v2576 = vunpack.c.h.b16 %v2392
        %v2577 = vunpack.c.l.b16 %v2393
        %v2578 = vunpack.c.h.b16 %v2393
        %v2579 = vunpack.c.l.b16 %v2394
        %v2580 = vunpack.c.h.b16 %v2394
        %v2581 = vunpack.c.l.b16 %v2395
        %v2582 = vunpack.c.h.b16 %v2395
        %v2583 = vunpack.c.l.b16 %v2396
        %v2584 = vunpack.c.h.b16 %v2396
        %v2585 = vunpack.c.l.b16 %v2397
        %v2586 = vunpack.c.h.b16 %v2397
        %v2587 = vunpack.c.l.b16 %v2398
        %v2588 = vunpack.c.h.b16 %v2398
        %v2589 = vunpack.c.l.b16 %v2399
        %v2590 = vunpack.c.h.b16 %v2399
        %v2591 = vunpack.c.l.b16 %v2400
        %v2592 = vunpack.c.h.b16 %v2400
        %v2593 = vpack.c.b16 %v2467, %v2465
        %v2594 = vpack.c.b16 %v2468, %v2466
        %v2595 = vpack.c.b16 %v2471, %v2469
        %v2596 = vpack.c.b16 %v2472, %v2470
        %v2597 = vpack.c.b16 %v2475, %v2473
        %v2598 = vpack.c.b16 %v2476, %v2474
        %v2599 = vpack.c.b16 %v2479, %v2477
        %v2600 = vpack.c.b16 %v2480, %v2478
        %v2601 = vpack.c.b16 %v2483, %v2481
        %v2602 = vpack.c.b16 %v2484, %v2482
        %v2603 = vpack.c.b16 %v2487, %v2485
        %v2604 = vpack.c.b16 %v2488, %v2486
        %v2605 = vpack.c.b16 %v2491, %v2489
        %v2606 = vpack.c.b16 %v2492, %v2490
        %v2607 = vpack.c.b16 %v2495, %v2493
        %v2608 = vpack.c.b16 %v2496, %v2494
        %v2609 = vpack.c.b16 %v2499, %v2497
        %v2610 = vpack.c.b16 %v2500, %v2498
        %v2611 = vpack.c.b16 %v2503, %v2501
        %v2612 = vpack.c.b16 %v2504, %v2502
        %v2613 = vpack.c.b16 %v2507, %v2505
        %v2614 = vpack.c.b16 %v2508, %v2506
        %v2615 = vpack.c.b16 %v2511, %v2509
        %v2616 = vpack.c.b16 %v2512, %v2510
        %v2617 = vpack.c.b16 %v2515, %v2513
        %v2618 = vpack.c.b16 %v2516, %v2514
        %v2619 = vpack.c.b16 %v2519, %v2517
        %v2620 = vpack.c.b16 %v2520, %v2518
        %v2621 = vpack.c.b16 %v2523, %v2521
        %v2622 = vpack.c.b16 %v2524, %v2522
        %v2623 = vpack.c.b16 %v2527, %v2525
        %v2624 = vpack.c.b16 %v2528, %v2526
        %v2625 = vpack.c.b16 %v2531, %v2529
        %v2626 = vpack.c.b16 %v2532, %v2530
        %v2627 = vpack.c.b16 %v2535, %v2533
        %v2628 = vpack.c.b16 %v2536, %v2534
        %v2629 = vpack.c.b16 %v2539, %v2537
        %v2630 = vpack.c.b16 %v2540, %v2538
        %v2631 = vpack.c.b16 %v2543, %v2541
        %v2632 = vpack.c.b16 %v2544, %v2542
        %v2633 = vpack.c.b16 %v2547, %v2545
        %v2634 = vpack.c.b16 %v2548, %v2546
        %v2635 = vpack.c.b16 %v2551, %v2549
        %v2636 = vpack.c.b16 %v2552, %v2550
        %v2637 = vpack.c.b16 %v2555, %v2553
        %v2638 = vpack.c.b16 %v2556, %v2554
        %v2639 = vpack.c.b16 %v2559, %v2557
        %v2640 = vpack.c.b16 %v2560, %v2558
        %v2641 = vpack.c.b16 %v2563, %v2561
        %v2642 = vpack.c.b16 %v2564, %v2562
        %v2643 = vpack.c.b16 %v2567, %v2565
        %v2644 = vpack.c.b16 %v2568, %v2566
        %v2645 = vpack.c.b16 %v2571, %v2569
        %v2646 = vpack.c.b16 %v2572, %v2570
        %v2647 = vpack.c.b16 %v2575, %v2573
        %v2648 = vpack.c.b16 %v2576, %v2574
        %v2649 = vpack.c.b16 %v2579, %v2577
        %v2650 = vpack.c.b16 %v2580, %v2578
        %v2651 = vpack.c.b16 %v2583, %v2581
        %v2652 = vpack.c.b16 %v2584, %v2582
        %v2653 = vpack.c.b16 %v2587, %v2585
        %v2654 = vpack.c.b16 %v2588, %v2586
        %v2655 = vpack.c.b16 %v2591, %v2589
        %v2656 = vpack.c.b16 %v2592, %v2590
        %2721 = vmatprep.subr.bf16.mxu0 %v2594
        %2722 = vmatpush1.bf16.msra.mxu0 %v2593
        %2723 = vmatprep.subr.bf16.mxu0 %v2596
        %2724 = vmatpush1.bf16.msra.mxu0 %v2595
        %2725 = vmatprep.subr.bf16.mxu0 %v2598
        %2726 = vmatpush1.bf16.msra.mxu0 %v2597
        %2727 = vmatprep.subr.bf16.mxu0 %v2600
        %2728 = vmatpush1.bf16.msra.mxu0 %v2599
        %2729 = vmatprep.subr.bf16.mxu0 %v2602
        %2730 = vmatpush1.bf16.msra.mxu0 %v2601
        %2731 = vmatprep.subr.bf16.mxu0 %v2604
        %2732 = vmatpush1.bf16.msra.mxu0 %v2603
        %2733 = vmatprep.subr.bf16.mxu0 %v2606
        %2734 = vmatpush1.bf16.msra.mxu0 %v2605
        %2735 = vmatprep.subr.bf16.mxu0 %v2608
        %2736 = vmatpush1.bf16.msra.mxu0 %v2607
        %2737 = vmatprep.subr.bf16.mxu0 %v2610
        %2738 = vmatpush1.bf16.msra.mxu0 %v2609
        %2739 = vmatprep.subr.bf16.mxu0 %v2612
        %2740 = vmatpush1.bf16.msra.mxu0 %v2611
        %2741 = vmatprep.subr.bf16.mxu0 %v2614
        %2742 = vmatpush1.bf16.msra.mxu0 %v2613
        %2743 = vmatprep.subr.bf16.mxu0 %v2616
        %2744 = vmatpush1.bf16.msra.mxu0 %v2615
        %2745 = vmatprep.subr.bf16.mxu0 %v2618
        %2746 = vmatpush1.bf16.msra.mxu0 %v2617
        %2747 = vmatprep.subr.bf16.mxu0 %v2620
        %2748 = vmatpush1.bf16.msra.mxu0 %v2619
        %2749 = vmatprep.subr.bf16.mxu0 %v2622
        %2750 = vmatpush1.bf16.msra.mxu0 %v2621
        %2751 = vmatprep.subr.bf16.mxu0 %v2624
        %2752 = vmatpush1.bf16.msra.mxu0 %v2623
        %2753 = vmatprep.mubr.bf16.mxu0 %v2210
        %2754 = vmatmul.mubr.bf16.gmra.mrb[0].mxu0 %v2209
        %v2755 = vpop.f32.mrb[0].mxu0
        %v2756 = vadd.f32 0.0, %v2755
        %v2757 = vpop.f32.mrb[0].mxu0
        %v2758 = vadd.f32 0.0, %v2757
        %v2759 = vpop.f32.mrb[0].mxu0
        %v2760 = vadd.f32 0.0, %v2759
        %v2761 = vpop.f32.mrb[0].mxu0
        %v2762 = vadd.f32 0.0, %v2761
        %2763 = vmatprep.mubr.bf16.mxu0 %v2214
        %2764 = vmatmul.mubr.bf16.gmra.mrb[0].mxu0 %v2213
        %v2765 = vpop.f32.mrb[0].mxu0
        %v2766 = vadd.f32 0.0, %v2765
        %v2767 = vpop.f32.mrb[0].mxu0
        %v2768 = vadd.f32 0.0, %v2767
        %v2769 = vpop.f32.mrb[0].mxu0
        %v2770 = vadd.f32 0.0, %v2769
        %v2771 = vpop.f32.mrb[0].mxu0
        %v2772 = vadd.f32 0.0, %v2771
        %2773 = vmatprep.mubr.bf16.mxu0 %v2218
        %2774 = vmatmul.mubr.bf16.gmra.mrb[0].mxu0 %v2217
        %v2775 = vpop.f32.mrb[0].mxu0
        %v2776 = vadd.f32 0.0, %v2775
        %v2777 = vpop.f32.mrb[0].mxu0
        %v2778 = vadd.f32 0.0, %v2777
        %v2779 = vpop.f32.mrb[0].mxu0
        %v2780 = vadd.f32 0.0, %v2779
        %v2781 = vpop.f32.mrb[0].mxu0
        %v2782 = vadd.f32 0.0, %v2781
        %2783 = vmatprep.mubr.bf16.mxu0 %v2222
        %2784 = vmatmul.mubr.bf16.gmra.mrb[0].mxu0 %v2221
        %v2785 = vpop.f32.mrb[0].mxu0
        %v2786 = vadd.f32 0.0, %v2785
        %v2787 = vpop.f32.mrb[0].mxu0
        %v2788 = vadd.f32 0.0, %v2787
        %v2789 = vpop.f32.mrb[0].mxu0
        %v2790 = vadd.f32 0.0, %v2789
        %v2791 = vpop.f32.mrb[0].mxu0
        %v2792 = vadd.f32 0.0, %v2791
        %2793 = vmatprep.mubr.bf16.mxu0 %v2226
        %2794 = vmatmul.mubr.bf16.gmra.mrb[0].mxu0 %v2225
        %v2795 = vpop.f32.mrb[0].mxu0
        %v2796 = vadd.f32 0.0, %v2795
        %v2797 = vpop.f32.mrb[0].mxu0
        %v2798 = vadd.f32 0.0, %v2797
        %v2799 = vpop.f32.mrb[0].mxu0
        %v2800 = vadd.f32 0.0, %v2799
        %v2801 = vpop.f32.mrb[0].mxu0
        %v2802 = vadd.f32 0.0, %v2801
        %2803 = vmatprep.mubr.bf16.mxu0 %v2230
        %2804 = vmatmul.mubr.bf16.gmra.mrb[0].mxu0 %v2229
        %v2805 = vpop.f32.mrb[0].mxu0
        %v2806 = vadd.f32 0.0, %v2805
        %v2807 = vpop.f32.mrb[0].mxu0
        %v2808 = vadd.f32 0.0, %v2807
        %v2809 = vpop.f32.mrb[0].mxu0
        %v2810 = vadd.f32 0.0, %v2809
        %v2811 = vpop.f32.mrb[0].mxu0
        %v2812 = vadd.f32 0.0, %v2811
        %2813 = vmatprep.mubr.bf16.mxu0 %v2234
        %2814 = vmatmul.mubr.bf16.gmra.mrb[0].mxu0 %v2233
        %v2815 = vpop.f32.mrb[0].mxu0
        %v2816 = vadd.f32 0.0, %v2815
        %v2817 = vpop.f32.mrb[0].mxu0
        %v2818 = vadd.f32 0.0, %v2817
        %v2819 = vpop.f32.mrb[0].mxu0
        %v2820 = vadd.f32 0.0, %v2819
        %v2821 = vpop.f32.mrb[0].mxu0
        %v2822 = vadd.f32 0.0, %v2821
        %2823 = vmatprep.mubr.bf16.mxu0 %v2238
        %2824 = vmatmul.mubr.bf16.gmra.mrb[0].mxu0 %v2237
        %v2825 = vpop.f32.mrb[0].mxu0
        %v2826 = vadd.f32 0.0, %v2825
        %v2827 = vpop.f32.mrb[0].mxu0
        %v2828 = vadd.f32 0.0, %v2827
        %v2829 = vpop.f32.mrb[0].mxu0
        %v2830 = vadd.f32 0.0, %v2829
        %v2831 = vpop.f32.mrb[0].mxu0
        %v2832 = vadd.f32 0.0, %v2831
        %2833 = vmatprep.mubr.bf16.mxu0 %v2242
        %2834 = vmatmul.mubr.bf16.gmra.mrb[0].mxu0 %v2241
        %v2835 = vpop.f32.mrb[0].mxu0
        %v2836 = vadd.f32 0.0, %v2835
        %v2837 = vpop.f32.mrb[0].mxu0
        %v2838 = vadd.f32 0.0, %v2837
        %v2839 = vpop.f32.mrb[0].mxu0
        %v2840 = vadd.f32 0.0, %v2839
        %v2841 = vpop.f32.mrb[0].mxu0
        %v2842 = vadd.f32 0.0, %v2841
        %2843 = vmatprep.mubr.bf16.mxu0 %v2246
        %2844 = vmatmul.mubr.bf16.gmra.mrb[0].mxu0 %v2245
        %v2845 = vpop.f32.mrb[0].mxu0
        %v2846 = vadd.f32 0.0, %v2845
        %v2847 = vpop.f32.mrb[0].mxu0
        %v2848 = vadd.f32 0.0, %v2847
        %v2849 = vpop.f32.mrb[0].mxu0
        %v2850 = vadd.f32 0.0, %v2849
        %v2851 = vpop.f32.mrb[0].mxu0
        %v2852 = vadd.f32 0.0, %v2851
        %2853 = vmatprep.mubr.bf16.mxu0 %v2250
        %2854 = vmatmul.mubr.bf16.gmra.mrb[0].mxu0 %v2249
        %v2855 = vpop.f32.mrb[0].mxu0
        %v2856 = vadd.f32 0.0, %v2855
        %v2857 = vpop.f32.mrb[0].mxu0
        %v2858 = vadd.f32 0.0, %v2857
        %v2859 = vpop.f32.mrb[0].mxu0
        %v2860 = vadd.f32 0.0, %v2859
        %v2861 = vpop.f32.mrb[0].mxu0
        %v2862 = vadd.f32 0.0, %v2861
        %2863 = vmatprep.mubr.bf16.mxu0 %v2254
        %2864 = vmatmul.mubr.bf16.gmra.mrb[0].mxu0 %v2253
        %v2865 = vpop.f32.mrb[0].mxu0
        %v2866 = vadd.f32 0.0, %v2865
        %v2867 = vpop.f32.mrb[0].mxu0
        %v2868 = vadd.f32 0.0, %v2867
        %v2869 = vpop.f32.mrb[0].mxu0
        %v2870 = vadd.f32 0.0, %v2869
        %v2871 = vpop.f32.mrb[0].mxu0
        %v2872 = vadd.f32 0.0, %v2871
        %2873 = vmatprep.mubr.bf16.mxu0 %v2258
        %2874 = vmatmul.mubr.bf16.gmra.mrb[0].mxu0 %v2257
        %v2875 = vpop.f32.mrb[0].mxu0
        %v2876 = vadd.f32 0.0, %v2875
        %v2877 = vpop.f32.mrb[0].mxu0
        %v2878 = vadd.f32 0.0, %v2877
        %v2879 = vpop.f32.mrb[0].mxu0
        %v2880 = vadd.f32 0.0, %v2879
        %v2881 = vpop.f32.mrb[0].mxu0
        %v2882 = vadd.f32 0.0, %v2881
        %2883 = vmatprep.mubr.bf16.mxu0 %v2262
        %2884 = vmatmul.mubr.bf16.gmra.mrb[0].mxu0 %v2261
        %v2885 = vpop.f32.mrb[0].mxu0
        %v2886 = vadd.f32 0.0, %v2885
        %v2887 = vpop.f32.mrb[0].mxu0
        %v2888 = vadd.f32 0.0, %v2887
        %v2889 = vpop.f32.mrb[0].mxu0
        %v2890 = vadd.f32 0.0, %v2889
        %v2891 = vpop.f32.mrb[0].mxu0
        %v2892 = vadd.f32 0.0, %v2891
        %2893 = vmatprep.mubr.bf16.mxu0 %v2266
        %2894 = vmatmul.mubr.bf16.gmra.mrb[0].mxu0 %v2265
        %v2895 = vpop.f32.mrb[0].mxu0
        %v2896 = vadd.f32 0.0, %v2895
        %v2897 = vpop.f32.mrb[0].mxu0
        %v2898 = vadd.f32 0.0, %v2897
        %v2899 = vpop.f32.mrb[0].mxu0
        %v2900 = vadd.f32 0.0, %v2899
        %v2901 = vpop.f32.mrb[0].mxu0
        %v2902 = vadd.f32 0.0, %v2901
        %2903 = vmatprep.mubr.bf16.mxu0 %v2270
        %2904 = vmatmul.mubr.bf16.gmra.mrb[0].mxu0 %v2269
        %v2905 = vpop.f32.mrb[0].mxu0
        %v2906 = vadd.f32 0.0, %v2905
        %v2907 = vpop.f32.mrb[0].mxu0
        %v2908 = vadd.f32 0.0, %v2907
        %v2909 = vpop.f32.mrb[0].mxu0
        %v2910 = vadd.f32 0.0, %v2909
        %v2911 = vpop.f32.mrb[0].mxu0
        %v2912 = vadd.f32 0.0, %v2911
        %2913 = vmatprep.mubr.bf16.mxu0 %v2274
        %2914 = vmatmul.mubr.bf16.gmra.mrb[0].mxu0 %v2273
        %v2915 = vpop.f32.mrb[0].mxu0
        %v2916 = vadd.f32 0.0, %v2915
        %v2917 = vpop.f32.mrb[0].mxu0
        %v2918 = vadd.f32 0.0, %v2917
        %v2919 = vpop.f32.mrb[0].mxu0
        %v2920 = vadd.f32 0.0, %v2919
        %v2921 = vpop.f32.mrb[0].mxu0
        %v2922 = vadd.f32 0.0, %v2921
        %2923 = vmatprep.mubr.bf16.mxu0 %v2278
        %2924 = vmatmul.mubr.bf16.gmra.mrb[0].mxu0 %v2277
        %v2925 = vpop.f32.mrb[0].mxu0
        %v2926 = vadd.f32 0.0, %v2925
        %v2927 = vpop.f32.mrb[0].mxu0
        %v2928 = vadd.f32 0.0, %v2927
        %v2929 = vpop.f32.mrb[0].mxu0
        %v2930 = vadd.f32 0.0, %v2929
        %v2931 = vpop.f32.mrb[0].mxu0
        %v2932 = vadd.f32 0.0, %v2931
        %2933 = vmatprep.mubr.bf16.mxu0 %v2282
        %2934 = vmatmul.mubr.bf16.gmra.mrb[0].mxu0 %v2281
        %v2935 = vpop.f32.mrb[0].mxu0
        %v2936 = vadd.f32 0.0, %v2935
        %v2937 = vpop.f32.mrb[0].mxu0
        %v2938 = vadd.f32 0.0, %v2937
        %v2939 = vpop.f32.mrb[0].mxu0
        %v2940 = vadd.f32 0.0, %v2939
        %v2941 = vpop.f32.mrb[0].mxu0
        %v2942 = vadd.f32 0.0, %v2941
        %2943 = vmatprep.mubr.bf16.mxu0 %v2286
        %2944 = vmatmul.mubr.bf16.gmra.mrb[0].mxu0 %v2285
        %v2945 = vpop.f32.mrb[0].mxu0
        %v2946 = vadd.f32 0.0, %v2945
        %v2947 = vpop.f32.mrb[0].mxu0
        %v2948 = vadd.f32 0.0, %v2947
        %v2949 = vpop.f32.mrb[0].mxu0
        %v2950 = vadd.f32 0.0, %v2949
        %v2951 = vpop.f32.mrb[0].mxu0
        %v2952 = vadd.f32 0.0, %v2951
        %2953 = vmatprep.mubr.bf16.mxu0 %v2290
        %2954 = vmatmul.mubr.bf16.gmra.mrb[0].mxu0 %v2289
        %v2955 = vpop.f32.mrb[0].mxu0
        %v2956 = vadd.f32 0.0, %v2955
        %v2957 = vpop.f32.mrb[0].mxu0
        %v2958 = vadd.f32 0.0, %v2957
        %v2959 = vpop.f32.mrb[0].mxu0
        %v2960 = vadd.f32 0.0, %v2959
        %v2961 = vpop.f32.mrb[0].mxu0
        %v2962 = vadd.f32 0.0, %v2961
        %2963 = vmatprep.mubr.bf16.mxu0 %v2294
        %2964 = vmatmul.mubr.bf16.gmra.mrb[0].mxu0 %v2293
        %v2965 = vpop.f32.mrb[0].mxu0
        %v2966 = vadd.f32 0.0, %v2965
        %v2967 = vpop.f32.mrb[0].mxu0
        %v2968 = vadd.f32 0.0, %v2967
        %v2969 = vpop.f32.mrb[0].mxu0
        %v2970 = vadd.f32 0.0, %v2969
        %v2971 = vpop.f32.mrb[0].mxu0
        %v2972 = vadd.f32 0.0, %v2971
        %2973 = vmatprep.mubr.bf16.mxu0 %v2298
        %2974 = vmatmul.mubr.bf16.gmra.mrb[0].mxu0 %v2297
        %v2975 = vpop.f32.mrb[0].mxu0
        %v2976 = vadd.f32 0.0, %v2975
        %v2977 = vpop.f32.mrb[0].mxu0
        %v2978 = vadd.f32 0.0, %v2977
        %v2979 = vpop.f32.mrb[0].mxu0
        %v2980 = vadd.f32 0.0, %v2979
        %v2981 = vpop.f32.mrb[0].mxu0
        %v2982 = vadd.f32 0.0, %v2981
        %2983 = vmatprep.mubr.bf16.mxu0 %v2302
        %2984 = vmatmul.mubr.bf16.gmra.mrb[0].mxu0 %v2301
        %v2985 = vpop.f32.mrb[0].mxu0
        %v2986 = vadd.f32 0.0, %v2985
        %v2987 = vpop.f32.mrb[0].mxu0
        %v2988 = vadd.f32 0.0, %v2987
        %v2989 = vpop.f32.mrb[0].mxu0
        %v2990 = vadd.f32 0.0, %v2989
        %v2991 = vpop.f32.mrb[0].mxu0
        %v2992 = vadd.f32 0.0, %v2991
        %2993 = vmatprep.mubr.bf16.mxu0 %v2306
        %2994 = vmatmul.mubr.bf16.gmra.mrb[0].mxu0 %v2305
        %v2995 = vpop.f32.mrb[0].mxu0
        %v2996 = vadd.f32 0.0, %v2995
        %v2997 = vpop.f32.mrb[0].mxu0
        %v2998 = vadd.f32 0.0, %v2997
        %v2999 = vpop.f32.mrb[0].mxu0
        %v3000 = vadd.f32 0.0, %v2999
        %v3001 = vpop.f32.mrb[0].mxu0
        %v3002 = vadd.f32 0.0, %v3001
        %3003 = vmatprep.mubr.bf16.mxu0 %v2310
        %3004 = vmatmul.mubr.bf16.gmra.mrb[0].mxu0 %v2309
        %v3005 = vpop.f32.mrb[0].mxu0
        %v3006 = vadd.f32 0.0, %v3005
        %v3007 = vpop.f32.mrb[0].mxu0
        %v3008 = vadd.f32 0.0, %v3007
        %v3009 = vpop.f32.mrb[0].mxu0
        %v3010 = vadd.f32 0.0, %v3009
        %v3011 = vpop.f32.mrb[0].mxu0
        %v3012 = vadd.f32 0.0, %v3011
        %3013 = vmatprep.mubr.bf16.mxu0 %v2314
        %3014 = vmatmul.mubr.bf16.gmra.mrb[0].mxu0 %v2313
        %v3015 = vpop.f32.mrb[0].mxu0
        %v3016 = vadd.f32 0.0, %v3015
        %v3017 = vpop.f32.mrb[0].mxu0
        %v3018 = vadd.f32 0.0, %v3017
        %v3019 = vpop.f32.mrb[0].mxu0
        %v3020 = vadd.f32 0.0, %v3019
        %v3021 = vpop.f32.mrb[0].mxu0
        %v3022 = vadd.f32 0.0, %v3021
        %3023 = vmatprep.mubr.bf16.mxu0 %v2318
        %3024 = vmatmul.mubr.bf16.gmra.mrb[0].mxu0 %v2317
        %v3025 = vpop.f32.mrb[0].mxu0
        %v3026 = vadd.f32 0.0, %v3025
        %v3027 = vpop.f32.mrb[0].mxu0
        %v3028 = vadd.f32 0.0, %v3027
        %v3029 = vpop.f32.mrb[0].mxu0
        %v3030 = vadd.f32 0.0, %v3029
        %v3031 = vpop.f32.mrb[0].mxu0
        %v3032 = vadd.f32 0.0, %v3031
        %3033 = vmatprep.mubr.bf16.mxu0 %v2322
        %3034 = vmatmul.mubr.bf16.gmra.mrb[0].mxu0 %v2321
        %v3035 = vpop.f32.mrb[0].mxu0
        %v3036 = vadd.f32 0.0, %v3035
        %v3037 = vpop.f32.mrb[0].mxu0
        %v3038 = vadd.f32 0.0, %v3037
        %v3039 = vpop.f32.mrb[0].mxu0
        %v3040 = vadd.f32 0.0, %v3039
        %v3041 = vpop.f32.mrb[0].mxu0
        %v3042 = vadd.f32 0.0, %v3041
        %3043 = vmatprep.mubr.bf16.mxu0 %v2326
        %3044 = vmatmul.mubr.bf16.gmra.mrb[0].mxu0 %v2325
        %v3045 = vpop.f32.mrb[0].mxu0
        %v3046 = vadd.f32 0.0, %v3045
        %v3047 = vpop.f32.mrb[0].mxu0
        %v3048 = vadd.f32 0.0, %v3047
        %v3049 = vpop.f32.mrb[0].mxu0
        %v3050 = vadd.f32 0.0, %v3049
        %v3051 = vpop.f32.mrb[0].mxu0
        %v3052 = vadd.f32 0.0, %v3051
        %3053 = vmatprep.mubr.bf16.mxu0 %v2330
        %3054 = vmatmul.mubr.bf16.gmra.mrb[0].mxu0 %v2329
        %v3055 = vpop.f32.mrb[0].mxu0
        %v3056 = vadd.f32 0.0, %v3055
        %v3057 = vpop.f32.mrb[0].mxu0
        %v3058 = vadd.f32 0.0, %v3057
        %v3059 = vpop.f32.mrb[0].mxu0
        %v3060 = vadd.f32 0.0, %v3059
        %v3061 = vpop.f32.mrb[0].mxu0
        %v3062 = vadd.f32 0.0, %v3061
        %3063 = vmatprep.mubr.bf16.mxu0 %v2334
        %3064 = vmatmul.mubr.bf16.gmra.mrb[0].mxu0 %v2333
        %v3065 = vpop.f32.mrb[0].mxu0
        %v3066 = vadd.f32 0.0, %v3065
        %v3067 = vpop.f32.mrb[0].mxu0
        %v3068 = vadd.f32 0.0, %v3067
        %v3069 = vpop.f32.mrb[0].mxu0
        %v3070 = vadd.f32 0.0, %v3069
        %v3071 = vpop.f32.mrb[0].mxu0
        %v3072 = vadd.f32 0.0, %v3071
        %3073 = vdwg.mxu0
        %3074 = vmatprep.subr.bf16.mxu0 %v2626
        %3075 = vmatpush1.bf16.msra.mxu0 %v2625
        %3076 = vmatprep.subr.bf16.mxu0 %v2628
        %3077 = vmatpush1.bf16.msra.mxu0 %v2627
        %3078 = vmatprep.subr.bf16.mxu0 %v2630
        %3079 = vmatpush1.bf16.msra.mxu0 %v2629
        %3080 = vmatprep.subr.bf16.mxu0 %v2632
        %3081 = vmatpush1.bf16.msra.mxu0 %v2631
        %3082 = vmatprep.subr.bf16.mxu0 %v2634
        %3083 = vmatpush1.bf16.msra.mxu0 %v2633
        %3084 = vmatprep.subr.bf16.mxu0 %v2636
        %3085 = vmatpush1.bf16.msra.mxu0 %v2635
        %3086 = vmatprep.subr.bf16.mxu0 %v2638
        %3087 = vmatpush1.bf16.msra.mxu0 %v2637
        %3088 = vmatprep.subr.bf16.mxu0 %v2640
        %3089 = vmatpush1.bf16.msra.mxu0 %v2639
        %3090 = vmatprep.subr.bf16.mxu0 %v2642
        %3091 = vmatpush1.bf16.msra.mxu0 %v2641
        %3092 = vmatprep.subr.bf16.mxu0 %v2644
        %3093 = vmatpush1.bf16.msra.mxu0 %v2643
        %3094 = vmatprep.subr.bf16.mxu0 %v2646
        %3095 = vmatpush1.bf16.msra.mxu0 %v2645
        %3096 = vmatprep.subr.bf16.mxu0 %v2648
        %3097 = vmatpush1.bf16.msra.mxu0 %v2647
        %3098 = vmatprep.subr.bf16.mxu0 %v2650
        %3099 = vmatpush1.bf16.msra.mxu0 %v2649
        %3100 = vmatprep.subr.bf16.mxu0 %v2652
        %3101 = vmatpush1.bf16.msra.mxu0 %v2651
        %3102 = vmatprep.subr.bf16.mxu0 %v2654
        %3103 = vmatpush1.bf16.msra.mxu0 %v2653
        %3104 = vmatprep.subr.bf16.mxu0 %v2656
        %3105 = vmatpush1.bf16.msra.mxu0 %v2655
        %3106 = vmatprep.mubr.bf16.mxu0 %v2212
        %3107 = vmatmul.mubr.bf16.gmra.mrb[0].mxu0 %v2211
        %v3108 = vpop.f32.mrb[0].mxu0
        %v3109 = vadd.f32 %v2756, %v3108
        %v3110 = vpop.f32.mrb[0].mxu0
        %v3111 = vadd.f32 %v2758, %v3110
        %v3112 = vpop.f32.mrb[0].mxu0
        %v3113 = vadd.f32 %v2760, %v3112
        %v3114 = vpop.f32.mrb[0].mxu0
        %v3115 = vadd.f32 %v2762, %v3114
        %3116 = vmatprep.mubr.bf16.mxu0 %v2216
        %3117 = vmatmul.mubr.bf16.gmra.mrb[0].mxu0 %v2215
        %v3118 = vpop.f32.mrb[0].mxu0
        %v3119 = vadd.f32 %v2766, %v3118
        %v3120 = vpop.f32.mrb[0].mxu0
        %v3121 = vadd.f32 %v2768, %v3120
        %v3122 = vpop.f32.mrb[0].mxu0
        %v3123 = vadd.f32 %v2770, %v3122
        %v3124 = vpop.f32.mrb[0].mxu0
        %v3125 = vadd.f32 %v2772, %v3124
        %3126 = vmatprep.mubr.bf16.mxu0 %v2220
        %3127 = vmatmul.mubr.bf16.gmra.mrb[0].mxu0 %v2219
        %v3128 = vpop.f32.mrb[0].mxu0
        %v3129 = vadd.f32 %v2776, %v3128
        %v3130 = vpop.f32.mrb[0].mxu0
        %v3131 = vadd.f32 %v2778, %v3130
        %v3132 = vpop.f32.mrb[0].mxu0
        %v3133 = vadd.f32 %v2780, %v3132
        %v3134 = vpop.f32.mrb[0].mxu0
        %v3135 = vadd.f32 %v2782, %v3134
        %3136 = vmatprep.mubr.bf16.mxu0 %v2224
        %3137 = vmatmul.mubr.bf16.gmra.mrb[0].mxu0 %v2223
        %v3138 = vpop.f32.mrb[0].mxu0
        %v3139 = vadd.f32 %v2786, %v3138
        %v3140 = vpop.f32.mrb[0].mxu0
        %v3141 = vadd.f32 %v2788, %v3140
        %v3142 = vpop.f32.mrb[0].mxu0
        %v3143 = vadd.f32 %v2790, %v3142
        %v3144 = vpop.f32.mrb[0].mxu0
        %v3145 = vadd.f32 %v2792, %v3144
        %3146 = vmatprep.mubr.bf16.mxu0 %v2228
        %3147 = vmatmul.mubr.bf16.gmra.mrb[0].mxu0 %v2227
        %v3148 = vpop.f32.mrb[0].mxu0
        %v3149 = vadd.f32 %v2796, %v3148
        %v3150 = vpop.f32.mrb[0].mxu0
        %v3151 = vadd.f32 %v2798, %v3150
        %v3152 = vpop.f32.mrb[0].mxu0
        %v3153 = vadd.f32 %v2800, %v3152
        %v3154 = vpop.f32.mrb[0].mxu0
        %v3155 = vadd.f32 %v2802, %v3154
        %3156 = vmatprep.mubr.bf16.mxu0 %v2232
        %3157 = vmatmul.mubr.bf16.gmra.mrb[0].mxu0 %v2231
        %v3158 = vpop.f32.mrb[0].mxu0
        %v3159 = vadd.f32 %v2806, %v3158
        %v3160 = vpop.f32.mrb[0].mxu0
        %v3161 = vadd.f32 %v2808, %v3160
        %v3162 = vpop.f32.mrb[0].mxu0
        %v3163 = vadd.f32 %v2810, %v3162
        %v3164 = vpop.f32.mrb[0].mxu0
        %v3165 = vadd.f32 %v2812, %v3164
        %3166 = vmatprep.mubr.bf16.mxu0 %v2236
        %3167 = vmatmul.mubr.bf16.gmra.mrb[0].mxu0 %v2235
        %v3168 = vpop.f32.mrb[0].mxu0
        %v3169 = vadd.f32 %v2816, %v3168
        %v3170 = vpop.f32.mrb[0].mxu0
        %v3171 = vadd.f32 %v2818, %v3170
        %v3172 = vpop.f32.mrb[0].mxu0
        %v3173 = vadd.f32 %v2820, %v3172
        %v3174 = vpop.f32.mrb[0].mxu0
        %v3175 = vadd.f32 %v2822, %v3174
        %3176 = vmatprep.mubr.bf16.mxu0 %v2240
        %3177 = vmatmul.mubr.bf16.gmra.mrb[0].mxu0 %v2239
        %v3178 = vpop.f32.mrb[0].mxu0
        %v3179 = vadd.f32 %v2826, %v3178
        %v3180 = vpop.f32.mrb[0].mxu0
        %v3181 = vadd.f32 %v2828, %v3180
        %v3182 = vpop.f32.mrb[0].mxu0
        %v3183 = vadd.f32 %v2830, %v3182
        %v3184 = vpop.f32.mrb[0].mxu0
        %v3185 = vadd.f32 %v2832, %v3184
        %3186 = vmatprep.mubr.bf16.mxu0 %v2244
        %3187 = vmatmul.mubr.bf16.gmra.mrb[0].mxu0 %v2243
        %v3188 = vpop.f32.mrb[0].mxu0
        %v3189 = vadd.f32 %v2836, %v3188
        %v3190 = vpop.f32.mrb[0].mxu0
        %v3191 = vadd.f32 %v2838, %v3190
        %v3192 = vpop.f32.mrb[0].mxu0
        %v3193 = vadd.f32 %v2840, %v3192
        %v3194 = vpop.f32.mrb[0].mxu0
        %v3195 = vadd.f32 %v2842, %v3194
        %3196 = vmatprep.mubr.bf16.mxu0 %v2248
        %3197 = vmatmul.mubr.bf16.gmra.mrb[0].mxu0 %v2247
        %v3198 = vpop.f32.mrb[0].mxu0
        %v3199 = vadd.f32 %v2846, %v3198
        %v3200 = vpop.f32.mrb[0].mxu0
        %v3201 = vadd.f32 %v2848, %v3200
        %v3202 = vpop.f32.mrb[0].mxu0
        %v3203 = vadd.f32 %v2850, %v3202
        %v3204 = vpop.f32.mrb[0].mxu0
        %v3205 = vadd.f32 %v2852, %v3204
        %3206 = vmatprep.mubr.bf16.mxu0 %v2252
        %3207 = vmatmul.mubr.bf16.gmra.mrb[0].mxu0 %v2251
        %v3208 = vpop.f32.mrb[0].mxu0
        %v3209 = vadd.f32 %v2856, %v3208
        %v3210 = vpop.f32.mrb[0].mxu0
        %v3211 = vadd.f32 %v2858, %v3210
        %v3212 = vpop.f32.mrb[0].mxu0
        %v3213 = vadd.f32 %v2860, %v3212
        %v3214 = vpop.f32.mrb[0].mxu0
        %v3215 = vadd.f32 %v2862, %v3214
        %3216 = vmatprep.mubr.bf16.mxu0 %v2256
        %3217 = vmatmul.mubr.bf16.gmra.mrb[0].mxu0 %v2255
        %v3218 = vpop.f32.mrb[0].mxu0
        %v3219 = vadd.f32 %v2866, %v3218
        %v3220 = vpop.f32.mrb[0].mxu0
        %v3221 = vadd.f32 %v2868, %v3220
        %v3222 = vpop.f32.mrb[0].mxu0
        %v3223 = vadd.f32 %v2870, %v3222
        %v3224 = vpop.f32.mrb[0].mxu0
        %v3225 = vadd.f32 %v2872, %v3224
        %3226 = vmatprep.mubr.bf16.mxu0 %v2260
        %3227 = vmatmul.mubr.bf16.gmra.mrb[0].mxu0 %v2259
        %v3228 = vpop.f32.mrb[0].mxu0
        %v3229 = vadd.f32 %v2876, %v3228
        %v3230 = vpop.f32.mrb[0].mxu0
        %v3231 = vadd.f32 %v2878, %v3230
        %v3232 = vpop.f32.mrb[0].mxu0
        %v3233 = vadd.f32 %v2880, %v3232
        %v3234 = vpop.f32.mrb[0].mxu0
        %v3235 = vadd.f32 %v2882, %v3234
        %3236 = vmatprep.mubr.bf16.mxu0 %v2264
        %3237 = vmatmul.mubr.bf16.gmra.mrb[0].mxu0 %v2263
        %v3238 = vpop.f32.mrb[0].mxu0
        %v3239 = vadd.f32 %v2886, %v3238
        %v3240 = vpop.f32.mrb[0].mxu0
        %v3241 = vadd.f32 %v2888, %v3240
        %v3242 = vpop.f32.mrb[0].mxu0
        %v3243 = vadd.f32 %v2890, %v3242
        %v3244 = vpop.f32.mrb[0].mxu0
        %v3245 = vadd.f32 %v2892, %v3244
        %3246 = vmatprep.mubr.bf16.mxu0 %v2268
        %3247 = vmatmul.mubr.bf16.gmra.mrb[0].mxu0 %v2267
        %v3248 = vpop.f32.mrb[0].mxu0
        %v3249 = vadd.f32 %v2896, %v3248
        %v3250 = vpop.f32.mrb[0].mxu0
        %v3251 = vadd.f32 %v2898, %v3250
        %v3252 = vpop.f32.mrb[0].mxu0
        %v3253 = vadd.f32 %v2900, %v3252
        %v3254 = vpop.f32.mrb[0].mxu0
        %v3255 = vadd.f32 %v2902, %v3254
        %3256 = vmatprep.mubr.bf16.mxu0 %v2272
        %3257 = vmatmul.mubr.bf16.gmra.mrb[0].mxu0 %v2271
        %v3258 = vpop.f32.mrb[0].mxu0
        %v3259 = vadd.f32 %v2906, %v3258
        %v3260 = vpop.f32.mrb[0].mxu0
        %v3261 = vadd.f32 %v2908, %v3260
        %v3262 = vpop.f32.mrb[0].mxu0
        %v3263 = vadd.f32 %v2910, %v3262
        %v3264 = vpop.f32.mrb[0].mxu0
        %v3265 = vadd.f32 %v2912, %v3264
        %3266 = vmatprep.mubr.bf16.mxu0 %v2276
        %3267 = vmatmul.mubr.bf16.gmra.mrb[0].mxu0 %v2275
        %v3268 = vpop.f32.mrb[0].mxu0
        %v3269 = vadd.f32 %v2916, %v3268
        %v3270 = vpop.f32.mrb[0].mxu0
        %v3271 = vadd.f32 %v2918, %v3270
        %v3272 = vpop.f32.mrb[0].mxu0
        %v3273 = vadd.f32 %v2920, %v3272
        %v3274 = vpop.f32.mrb[0].mxu0
        %v3275 = vadd.f32 %v2922, %v3274
        %3276 = vmatprep.mubr.bf16.mxu0 %v2280
        %3277 = vmatmul.mubr.bf16.gmra.mrb[0].mxu0 %v2279
        %v3278 = vpop.f32.mrb[0].mxu0
        %v3279 = vadd.f32 %v2926, %v3278
        %v3280 = vpop.f32.mrb[0].mxu0
        %v3281 = vadd.f32 %v2928, %v3280
        %v3282 = vpop.f32.mrb[0].mxu0
        %v3283 = vadd.f32 %v2930, %v3282
        %v3284 = vpop.f32.mrb[0].mxu0
        %v3285 = vadd.f32 %v2932, %v3284
        %3286 = vmatprep.mubr.bf16.mxu0 %v2284
        %3287 = vmatmul.mubr.bf16.gmra.mrb[0].mxu0 %v2283
        %v3288 = vpop.f32.mrb[0].mxu0
        %v3289 = vadd.f32 %v2936, %v3288
        %v3290 = vpop.f32.mrb[0].mxu0
        %v3291 = vadd.f32 %v2938, %v3290
        %v3292 = vpop.f32.mrb[0].mxu0
        %v3293 = vadd.f32 %v2940, %v3292
        %v3294 = vpop.f32.mrb[0].mxu0
        %v3295 = vadd.f32 %v2942, %v3294
        %3296 = vmatprep.mubr.bf16.mxu0 %v2288
        %3297 = vmatmul.mubr.bf16.gmra.mrb[0].mxu0 %v2287
        %v3298 = vpop.f32.mrb[0].mxu0
        %v3299 = vadd.f32 %v2946, %v3298
        %v3300 = vpop.f32.mrb[0].mxu0
        %v3301 = vadd.f32 %v2948, %v3300
        %v3302 = vpop.f32.mrb[0].mxu0
        %v3303 = vadd.f32 %v2950, %v3302
        %v3304 = vpop.f32.mrb[0].mxu0
        %v3305 = vadd.f32 %v2952, %v3304
        %3306 = vmatprep.mubr.bf16.mxu0 %v2292
        %3307 = vmatmul.mubr.bf16.gmra.mrb[0].mxu0 %v2291
        %v3308 = vpop.f32.mrb[0].mxu0
        %v3309 = vadd.f32 %v2956, %v3308
        %v3310 = vpop.f32.mrb[0].mxu0
        %v3311 = vadd.f32 %v2958, %v3310
        %v3312 = vpop.f32.mrb[0].mxu0
        %v3313 = vadd.f32 %v2960, %v3312
        %v3314 = vpop.f32.mrb[0].mxu0
        %v3315 = vadd.f32 %v2962, %v3314
        %3316 = vmatprep.mubr.bf16.mxu0 %v2296
        %3317 = vmatmul.mubr.bf16.gmra.mrb[0].mxu0 %v2295
        %v3318 = vpop.f32.mrb[0].mxu0
        %v3319 = vadd.f32 %v2966, %v3318
        %v3320 = vpop.f32.mrb[0].mxu0
        %v3321 = vadd.f32 %v2968, %v3320
        %v3322 = vpop.f32.mrb[0].mxu0
        %v3323 = vadd.f32 %v2970, %v3322
        %v3324 = vpop.f32.mrb[0].mxu0
        %v3325 = vadd.f32 %v2972, %v3324
        %3326 = vmatprep.mubr.bf16.mxu0 %v2300
        %3327 = vmatmul.mubr.bf16.gmra.mrb[0].mxu0 %v2299
        %v3328 = vpop.f32.mrb[0].mxu0
        %v3329 = vadd.f32 %v2976, %v3328
        %v3330 = vpop.f32.mrb[0].mxu0
        %v3331 = vadd.f32 %v2978, %v3330
        %v3332 = vpop.f32.mrb[0].mxu0
        %v3333 = vadd.f32 %v2980, %v3332
        %v3334 = vpop.f32.mrb[0].mxu0
        %v3335 = vadd.f32 %v2982, %v3334
        %3336 = vmatprep.mubr.bf16.mxu0 %v2304
        %3337 = vmatmul.mubr.bf16.gmra.mrb[0].mxu0 %v2303
        %v3338 = vpop.f32.mrb[0].mxu0
        %v3339 = vadd.f32 %v2986, %v3338
        %v3340 = vpop.f32.mrb[0].mxu0
        %v3341 = vadd.f32 %v2988, %v3340
        %v3342 = vpop.f32.mrb[0].mxu0
        %v3343 = vadd.f32 %v2990, %v3342
        %v3344 = vpop.f32.mrb[0].mxu0
        %v3345 = vadd.f32 %v2992, %v3344
        %3346 = vmatprep.mubr.bf16.mxu0 %v2308
        %3347 = vmatmul.mubr.bf16.gmra.mrb[0].mxu0 %v2307
        %v3348 = vpop.f32.mrb[0].mxu0
        %v3349 = vadd.f32 %v2996, %v3348
        %v3350 = vpop.f32.mrb[0].mxu0
        %v3351 = vadd.f32 %v2998, %v3350
        %v3352 = vpop.f32.mrb[0].mxu0
        %v3353 = vadd.f32 %v3000, %v3352
        %v3354 = vpop.f32.mrb[0].mxu0
        %v3355 = vadd.f32 %v3002, %v3354
        %3356 = vmatprep.mubr.bf16.mxu0 %v2312
        %3357 = vmatmul.mubr.bf16.gmra.mrb[0].mxu0 %v2311
        %v3358 = vpop.f32.mrb[0].mxu0
        %v3359 = vadd.f32 %v3006, %v3358
        %v3360 = vpop.f32.mrb[0].mxu0
        %v3361 = vadd.f32 %v3008, %v3360
        %v3362 = vpop.f32.mrb[0].mxu0
        %v3363 = vadd.f32 %v3010, %v3362
        %v3364 = vpop.f32.mrb[0].mxu0
        %v3365 = vadd.f32 %v3012, %v3364
        %3366 = vmatprep.mubr.bf16.mxu0 %v2316
        %3367 = vmatmul.mubr.bf16.gmra.mrb[0].mxu0 %v2315
        %v3368 = vpop.f32.mrb[0].mxu0
        %v3369 = vadd.f32 %v3016, %v3368
        %v3370 = vpop.f32.mrb[0].mxu0
        %v3371 = vadd.f32 %v3018, %v3370
        %v3372 = vpop.f32.mrb[0].mxu0
        %v3373 = vadd.f32 %v3020, %v3372
        %v3374 = vpop.f32.mrb[0].mxu0
        %v3375 = vadd.f32 %v3022, %v3374
        %3376 = vmatprep.mubr.bf16.mxu0 %v2320
        %3377 = vmatmul.mubr.bf16.gmra.mrb[0].mxu0 %v2319
        %v3378 = vpop.f32.mrb[0].mxu0
        %v3379 = vadd.f32 %v3026, %v3378
        %v3380 = vpop.f32.mrb[0].mxu0
        %v3381 = vadd.f32 %v3028, %v3380
        %v3382 = vpop.f32.mrb[0].mxu0
        %v3383 = vadd.f32 %v3030, %v3382
        %v3384 = vpop.f32.mrb[0].mxu0
        %v3385 = vadd.f32 %v3032, %v3384
        %3386 = vmatprep.mubr.bf16.mxu0 %v2324
        %3387 = vmatmul.mubr.bf16.gmra.mrb[0].mxu0 %v2323
        %v3388 = vpop.f32.mrb[0].mxu0
        %v3389 = vadd.f32 %v3036, %v3388
        %v3390 = vpop.f32.mrb[0].mxu0
        %v3391 = vadd.f32 %v3038, %v3390
        %v3392 = vpop.f32.mrb[0].mxu0
        %v3393 = vadd.f32 %v3040, %v3392
        %v3394 = vpop.f32.mrb[0].mxu0
        %v3395 = vadd.f32 %v3042, %v3394
        %3396 = vmatprep.mubr.bf16.mxu0 %v2328
        %3397 = vmatmul.mubr.bf16.gmra.mrb[0].mxu0 %v2327
        %v3398 = vpop.f32.mrb[0].mxu0
        %v3399 = vadd.f32 %v3046, %v3398
        %v3400 = vpop.f32.mrb[0].mxu0
        %v3401 = vadd.f32 %v3048, %v3400
        %v3402 = vpop.f32.mrb[0].mxu0
        %v3403 = vadd.f32 %v3050, %v3402
        %v3404 = vpop.f32.mrb[0].mxu0
        %v3405 = vadd.f32 %v3052, %v3404
        %3406 = vmatprep.mubr.bf16.mxu0 %v2332
        %3407 = vmatmul.mubr.bf16.gmra.mrb[0].mxu0 %v2331
        %v3408 = vpop.f32.mrb[0].mxu0
        %v3409 = vadd.f32 %v3056, %v3408
        %v3410 = vpop.f32.mrb[0].mxu0
        %v3411 = vadd.f32 %v3058, %v3410
        %v3412 = vpop.f32.mrb[0].mxu0
        %v3413 = vadd.f32 %v3060, %v3412
        %v3414 = vpop.f32.mrb[0].mxu0
        %v3415 = vadd.f32 %v3062, %v3414
        %3416 = vmatprep.mubr.bf16.mxu0 %v2336
        %3417 = vmatmul.mubr.bf16.gmra.mrb[0].mxu0 %v2335
        %v3418 = vpop.f32.mrb[0].mxu0
        %v3419 = vadd.f32 %v3066, %v3418
        %v3420 = vpop.f32.mrb[0].mxu0
        %v3421 = vadd.f32 %v3068, %v3420
        %v3422 = vpop.f32.mrb[0].mxu0
        %v3423 = vadd.f32 %v3070, %v3422
        %v3424 = vpop.f32.mrb[0].mxu0
        %v3425 = vadd.f32 %v3072, %v3424
        %3426 = vdwg.mxu0
        %v3427 = vadd.f32 %v2081, %v3109
        %v3428 = vadd.f32 %v2082, %v3111
        %v3429 = vadd.f32 %v2083, %v3113
        %v3430 = vadd.f32 %v2084, %v3115
        %v3431 = vadd.f32 %v2085, %v3119
        %v3432 = vadd.f32 %v2086, %v3121
        %v3433 = vadd.f32 %v2087, %v3123
        %v3434 = vadd.f32 %v2088, %v3125
        %v3435 = vadd.f32 %v2089, %v3129
        %v3436 = vadd.f32 %v2090, %v3131
        %v3437 = vadd.f32 %v2091, %v3133
        %v3438 = vadd.f32 %v2092, %v3135
        %v3439 = vadd.f32 %v2093, %v3139
        %v3440 = vadd.f32 %v2094, %v3141
        %v3441 = vadd.f32 %v2095, %v3143
        %v3442 = vadd.f32 %v2096, %v3145
        %v3443 = vadd.f32 %v2097, %v3149
        %v3444 = vadd.f32 %v2098, %v3151
        %v3445 = vadd.f32 %v2099, %v3153
        %v3446 = vadd.f32 %v2100, %v3155
        %v3447 = vadd.f32 %v2101, %v3159
        %v3448 = vadd.f32 %v2102, %v3161
        %v3449 = vadd.f32 %v2103, %v3163
        %v3450 = vadd.f32 %v2104, %v3165
        %v3451 = vadd.f32 %v2105, %v3169
        %v3452 = vadd.f32 %v2106, %v3171
        %v3453 = vadd.f32 %v2107, %v3173
        %v3454 = vadd.f32 %v2108, %v3175
        %v3455 = vadd.f32 %v2109, %v3179
        %v3456 = vadd.f32 %v2110, %v3181
        %v3457 = vadd.f32 %v2111, %v3183
        %v3458 = vadd.f32 %v2112, %v3185
        %v3459 = vadd.f32 %v2113, %v3189
        %v3460 = vadd.f32 %v2114, %v3191
        %v3461 = vadd.f32 %v2115, %v3193
        %v3462 = vadd.f32 %v2116, %v3195
        %v3463 = vadd.f32 %v2117, %v3199
        %v3464 = vadd.f32 %v2118, %v3201
        %v3465 = vadd.f32 %v2119, %v3203
        %v3466 = vadd.f32 %v2120, %v3205
        %v3467 = vadd.f32 %v2121, %v3209
        %v3468 = vadd.f32 %v2122, %v3211
        %v3469 = vadd.f32 %v2123, %v3213
        %v3470 = vadd.f32 %v2124, %v3215
        %v3471 = vadd.f32 %v2125, %v3219
        %v3472 = vadd.f32 %v2126, %v3221
        %v3473 = vadd.f32 %v2127, %v3223
        %v3474 = vadd.f32 %v2128, %v3225
        %v3475 = vadd.f32 %v2129, %v3229
        %v3476 = vadd.f32 %v2130, %v3231
        %v3477 = vadd.f32 %v2131, %v3233
        %v3478 = vadd.f32 %v2132, %v3235
        %v3479 = vadd.f32 %v2133, %v3239
        %v3480 = vadd.f32 %v2134, %v3241
        %v3481 = vadd.f32 %v2135, %v3243
        %v3482 = vadd.f32 %v2136, %v3245
        %v3483 = vadd.f32 %v2137, %v3249
        %v3484 = vadd.f32 %v2138, %v3251
        %v3485 = vadd.f32 %v2139, %v3253
        %v3486 = vadd.f32 %v2140, %v3255
        %v3487 = vadd.f32 %v2141, %v3259
        %v3488 = vadd.f32 %v2142, %v3261
        %v3489 = vadd.f32 %v2143, %v3263
        %v3490 = vadd.f32 %v2144, %v3265
        %v3491 = vadd.f32 %v2145, %v3269
        %v3492 = vadd.f32 %v2146, %v3271
        %v3493 = vadd.f32 %v2147, %v3273
        %v3494 = vadd.f32 %v2148, %v3275
        %v3495 = vadd.f32 %v2149, %v3279
        %v3496 = vadd.f32 %v2150, %v3281
        %v3497 = vadd.f32 %v2151, %v3283
        %v3498 = vadd.f32 %v2152, %v3285
        %v3499 = vadd.f32 %v2153, %v3289
        %v3500 = vadd.f32 %v2154, %v3291
        %v3501 = vadd.f32 %v2155, %v3293
        %v3502 = vadd.f32 %v2156, %v3295
        %v3503 = vadd.f32 %v2157, %v3299
        %v3504 = vadd.f32 %v2158, %v3301
        %v3505 = vadd.f32 %v2159, %v3303
        %v3506 = vadd.f32 %v2160, %v3305
        %v3507 = vadd.f32 %v2161, %v3309
        %v3508 = vadd.f32 %v2162, %v3311
        %v3509 = vadd.f32 %v2163, %v3313
        %v3510 = vadd.f32 %v2164, %v3315
        %v3511 = vadd.f32 %v2165, %v3319
        %v3512 = vadd.f32 %v2166, %v3321
        %v3513 = vadd.f32 %v2167, %v3323
        %v3514 = vadd.f32 %v2168, %v3325
        %v3515 = vadd.f32 %v2169, %v3329
        %v3516 = vadd.f32 %v2170, %v3331
        %v3517 = vadd.f32 %v2171, %v3333
        %v3518 = vadd.f32 %v2172, %v3335
        %v3519 = vadd.f32 %v2173, %v3339
        %v3520 = vadd.f32 %v2174, %v3341
        %v3521 = vadd.f32 %v2175, %v3343
        %v3522 = vadd.f32 %v2176, %v3345
        %v3523 = vadd.f32 %v2177, %v3349
        %v3524 = vadd.f32 %v2178, %v3351
        %v3525 = vadd.f32 %v2179, %v3353
        %v3526 = vadd.f32 %v2180, %v3355
        %v3527 = vadd.f32 %v2181, %v3359
        %v3528 = vadd.f32 %v2182, %v3361
        %v3529 = vadd.f32 %v2183, %v3363
        %v3530 = vadd.f32 %v2184, %v3365
        %v3531 = vadd.f32 %v2185, %v3369
        %v3532 = vadd.f32 %v2186, %v3371
        %v3533 = vadd.f32 %v2187, %v3373
        %v3534 = vadd.f32 %v2188, %v3375
        %v3535 = vadd.f32 %v2189, %v3379
        %v3536 = vadd.f32 %v2190, %v3381
        %v3537 = vadd.f32 %v2191, %v3383
        %v3538 = vadd.f32 %v2192, %v3385
        %v3539 = vadd.f32 %v2193, %v3389
        %v3540 = vadd.f32 %v2194, %v3391
        %v3541 = vadd.f32 %v2195, %v3393
        %v3542 = vadd.f32 %v2196, %v3395
        %v3543 = vadd.f32 %v2197, %v3399
        %v3544 = vadd.f32 %v2198, %v3401
        %v3545 = vadd.f32 %v2199, %v3403
        %v3546 = vadd.f32 %v2200, %v3405
        %v3547 = vadd.f32 %v2201, %v3409
        %v3548 = vadd.f32 %v2202, %v3411
        %v3549 = vadd.f32 %v2203, %v3413
        %v3550 = vadd.f32 %v2204, %v3415
        %v3551 = vadd.f32 %v2205, %v3419
        %v3552 = vadd.f32 %v2206, %v3421
        %v3553 = vadd.f32 %v2207, %v3423
        %v3554 = vadd.f32 %v2208, %v3425
        %3555 = vst [vmem:[#allocation2] sm:$0xff] %v3427
        %3556 = vst [vmem:[#allocation2 + $0x8] sm:$0xff] %v3428
        %3557 = vst [vmem:[#allocation2 + $0x10] sm:$0xff] %v3429
        %3558 = vst [vmem:[#allocation2 + $0x18] sm:$0xff] %v3430
        %3559 = vst [vmem:[#allocation2 + $0x20] sm:$0xff] %v3431
        %3560 = vst [vmem:[#allocation2 + $0x28] sm:$0xff] %v3432
        %3561 = vst [vmem:[#allocation2 + $0x30] sm:$0xff] %v3433
        %3562 = vst [vmem:[#allocation2 + $0x38] sm:$0xff] %v3434
        %3563 = vst [vmem:[#allocation2 + $0x40] sm:$0xff] %v3435
        %3564 = vst [vmem:[#allocation2 + $0x48] sm:$0xff] %v3436
        %3565 = vst [vmem:[#allocation2 + $0x50] sm:$0xff] %v3437
        %3566 = vst [vmem:[#allocation2 + $0x58] sm:$0xff] %v3438
        %3567 = vst [vmem:[#allocation2 + $0x60] sm:$0xff] %v3439
        %3568 = vst [vmem:[#allocation2 + $0x68] sm:$0xff] %v3440
        %3569 = vst [vmem:[#allocation2 + $0x70] sm:$0xff] %v3441
        %3570 = vst [vmem:[#allocation2 + $0x78] sm:$0xff] %v3442
        %3571 = vst [vmem:[#allocation2 + $0x80] sm:$0xff] %v3443
        %3572 = vst [vmem:[#allocation2 + $0x88] sm:$0xff] %v3444
        %3573 = vst [vmem:[#allocation2 + $0x90] sm:$0xff] %v3445
        %3574 = vst [vmem:[#allocation2 + $0x98] sm:$0xff] %v3446
        %3575 = vst [vmem:[#allocation2 + $0xa0] sm:$0xff] %v3447
        %3576 = vst [vmem:[#allocation2 + $0xa8] sm:$0xff] %v3448
        %3577 = vst [vmem:[#allocation2 + $0xb0] sm:$0xff] %v3449
        %3578 = vst [vmem:[#allocation2 + $0xb8] sm:$0xff] %v3450
        %3579 = vst [vmem:[#allocation2 + $0xc0] sm:$0xff] %v3451
        %3580 = vst [vmem:[#allocation2 + $0xc8] sm:$0xff] %v3452
        %3581 = vst [vmem:[#allocation2 + $0xd0] sm:$0xff] %v3453
        %3582 = vst [vmem:[#allocation2 + $0xd8] sm:$0xff] %v3454
        %3583 = vst [vmem:[#allocation2 + $0xe0] sm:$0xff] %v3455
        %3584 = vst [vmem:[#allocation2 + $0xe8] sm:$0xff] %v3456
        %3585 = vst [vmem:[#allocation2 + $0xf0] sm:$0xff] %v3457
        %3586 = vst [vmem:[#allocation2 + $0xf8] sm:$0xff] %v3458
        %3587 = vst [vmem:[#allocation2 + $0x100] sm:$0xff] %v3459
        %3588 = vst [vmem:[#allocation2 + $0x108] sm:$0xff] %v3460
        %3589 = vst [vmem:[#allocation2 + $0x110] sm:$0xff] %v3461
        %3590 = vst [vmem:[#allocation2 + $0x118] sm:$0xff] %v3462
        %3591 = vst [vmem:[#allocation2 + $0x120] sm:$0xff] %v3463
        %3592 = vst [vmem:[#allocation2 + $0x128] sm:$0xff] %v3464
        %3593 = vst [vmem:[#allocation2 + $0x130] sm:$0xff] %v3465
        %3594 = vst [vmem:[#allocation2 + $0x138] sm:$0xff] %v3466
        %3595 = vst [vmem:[#allocation2 + $0x140] sm:$0xff] %v3467
        %3596 = vst [vmem:[#allocation2 + $0x148] sm:$0xff] %v3468
        %3597 = vst [vmem:[#allocation2 + $0x150] sm:$0xff] %v3469
        %3598 = vst [vmem:[#allocation2 + $0x158] sm:$0xff] %v3470
        %3599 = vst [vmem:[#allocation2 + $0x160] sm:$0xff] %v3471
        %3600 = vst [vmem:[#allocation2 + $0x168] sm:$0xff] %v3472
        %3601 = vst [vmem:[#allocation2 + $0x170] sm:$0xff] %v3473
        %3602 = vst [vmem:[#allocation2 + $0x178] sm:$0xff] %v3474
        %3603 = vst [vmem:[#allocation2 + $0x180] sm:$0xff] %v3475
        %3604 = vst [vmem:[#allocation2 + $0x188] sm:$0xff] %v3476
        %3605 = vst [vmem:[#allocation2 + $0x190] sm:$0xff] %v3477
        %3606 = vst [vmem:[#allocation2 + $0x198] sm:$0xff] %v3478
        %3607 = vst [vmem:[#allocation2 + $0x1a0] sm:$0xff] %v3479
        %3608 = vst [vmem:[#allocation2 + $0x1a8] sm:$0xff] %v3480
        %3609 = vst [vmem:[#allocation2 + $0x1b0] sm:$0xff] %v3481
        %3610 = vst [vmem:[#allocation2 + $0x1b8] sm:$0xff] %v3482
        %3611 = vst [vmem:[#allocation2 + $0x1c0] sm:$0xff] %v3483
        %3612 = vst [vmem:[#allocation2 + $0x1c8] sm:$0xff] %v3484
        %3613 = vst [vmem:[#allocation2 + $0x1d0] sm:$0xff] %v3485
        %3614 = vst [vmem:[#allocation2 + $0x1d8] sm:$0xff] %v3486
        %3615 = vst [vmem:[#allocation2 + $0x1e0] sm:$0xff] %v3487
        %3616 = vst [vmem:[#allocation2 + $0x1e8] sm:$0xff] %v3488
        %3617 = vst [vmem:[#allocation2 + $0x1f0] sm:$0xff] %v3489
        %3618 = vst [vmem:[#allocation2 + $0x1f8] sm:$0xff] %v3490
        %3619 = vst [vmem:[#allocation2 + $0x200] sm:$0xff] %v3491
        %3620 = vst [vmem:[#allocation2 + $0x208] sm:$0xff] %v3492
        %3621 = vst [vmem:[#allocation2 + $0x210] sm:$0xff] %v3493
        %3622 = vst [vmem:[#allocation2 + $0x218] sm:$0xff] %v3494
        %3623 = vst [vmem:[#allocation2 + $0x220] sm:$0xff] %v3495
        %3624 = vst [vmem:[#allocation2 + $0x228] sm:$0xff] %v3496
        %3625 = vst [vmem:[#allocation2 + $0x230] sm:$0xff] %v3497
        %3626 = vst [vmem:[#allocation2 + $0x238] sm:$0xff] %v3498
        %3627 = vst [vmem:[#allocation2 + $0x240] sm:$0xff] %v3499
        %3628 = vst [vmem:[#allocation2 + $0x248] sm:$0xff] %v3500
        %3629 = vst [vmem:[#allocation2 + $0x250] sm:$0xff] %v3501
        %3630 = vst [vmem:[#allocation2 + $0x258] sm:$0xff] %v3502
        %3631 = vst [vmem:[#allocation2 + $0x260] sm:$0xff] %v3503
        %3632 = vst [vmem:[#allocation2 + $0x268] sm:$0xff] %v3504
        %3633 = vst [vmem:[#allocation2 + $0x270] sm:$0xff] %v3505
        %3634 = vst [vmem:[#allocation2 + $0x278] sm:$0xff] %v3506
        %3635 = vst [vmem:[#allocation2 + $0x280] sm:$0xff] %v3507
        %3636 = vst [vmem:[#allocation2 + $0x288] sm:$0xff] %v3508
        %3637 = vst [vmem:[#allocation2 + $0x290] sm:$0xff] %v3509
        %3638 = vst [vmem:[#allocation2 + $0x298] sm:$0xff] %v3510
        %3639 = vst [vmem:[#allocation2 + $0x2a0] sm:$0xff] %v3511
        %3640 = vst [vmem:[#allocation2 + $0x2a8] sm:$0xff] %v3512
        %3641 = vst [vmem:[#allocation2 + $0x2b0] sm:$0xff] %v3513
        %3642 = vst [vmem:[#allocation2 + $0x2b8] sm:$0xff] %v3514
        %3643 = vst [vmem:[#allocation2 + $0x2c0] sm:$0xff] %v3515
        %3644 = vst [vmem:[#allocation2 + $0x2c8] sm:$0xff] %v3516
        %3645 = vst [vmem:[#allocation2 + $0x2d0] sm:$0xff] %v3517
        %3646 = vst [vmem:[#allocation2 + $0x2d8] sm:$0xff] %v3518
        %3647 = vst [vmem:[#allocation2 + $0x2e0] sm:$0xff] %v3519
        %3648 = vst [vmem:[#allocation2 + $0x2e8] sm:$0xff] %v3520
        %3649 = vst [vmem:[#allocation2 + $0x2f0] sm:$0xff] %v3521
        %3650 = vst [vmem:[#allocation2 + $0x2f8] sm:$0xff] %v3522
        %3651 = vst [vmem:[#allocation2 + $0x300] sm:$0xff] %v3523
        %3652 = vst [vmem:[#allocation2 + $0x308] sm:$0xff] %v3524
        %3653 = vst [vmem:[#allocation2 + $0x310] sm:$0xff] %v3525
        %3654 = vst [vmem:[#allocation2 + $0x318] sm:$0xff] %v3526
        %3655 = vst [vmem:[#allocation2 + $0x320] sm:$0xff] %v3527
        %3656 = vst [vmem:[#allocation2 + $0x328] sm:$0xff] %v3528
        %3657 = vst [vmem:[#allocation2 + $0x330] sm:$0xff] %v3529
        %3658 = vst [vmem:[#allocation2 + $0x338] sm:$0xff] %v3530
        %3659 = vst [vmem:[#allocation2 + $0x340] sm:$0xff] %v3531
        %3660 = vst [vmem:[#allocation2 + $0x348] sm:$0xff] %v3532
        %3661 = vst [vmem:[#allocation2 + $0x350] sm:$0xff] %v3533
        %3662 = vst [vmem:[#allocation2 + $0x358] sm:$0xff] %v3534
        %3663 = vst [vmem:[#allocation2 + $0x360] sm:$0xff] %v3535
        %3664 = vst [vmem:[#allocation2 + $0x368] sm:$0xff] %v3536
        %3665 = vst [vmem:[#allocation2 + $0x370] sm:$0xff] %v3537
        %3666 = vst [vmem:[#allocation2 + $0x378] sm:$0xff] %v3538
        %3667 = vst [vmem:[#allocation2 + $0x380] sm:$0xff] %v3539
        %3668 = vst [vmem:[#allocation2 + $0x388] sm:$0xff] %v3540
        %3669 = vst [vmem:[#allocation2 + $0x390] sm:$0xff] %v3541
        %3670 = vst [vmem:[#allocation2 + $0x398] sm:$0xff] %v3542
        %3671 = vst [vmem:[#allocation2 + $0x3a0] sm:$0xff] %v3543
        %3672 = vst [vmem:[#allocation2 + $0x3a8] sm:$0xff] %v3544
        %3673 = vst [vmem:[#allocation2 + $0x3b0] sm:$0xff] %v3545
        %3674 = vst [vmem:[#allocation2 + $0x3b8] sm:$0xff] %v3546
        %3675 = vst [vmem:[#allocation2 + $0x3c0] sm:$0xff] %v3547
        %3676 = vst [vmem:[#allocation2 + $0x3c8] sm:$0xff] %v3548
        %3677 = vst [vmem:[#allocation2 + $0x3d0] sm:$0xff] %v3549
        %3678 = vst [vmem:[#allocation2 + $0x3d8] sm:$0xff] %v3550
        %3679 = vst [vmem:[#allocation2 + $0x3e0] sm:$0xff] %v3551
        %3680 = vst [vmem:[#allocation2 + $0x3e8] sm:$0xff] %v3552
        %3681 = vst [vmem:[#allocation2 + $0x3f0] sm:$0xff] %v3553
        %3682 = vst [vmem:[#allocation2 + $0x3f8] sm:$0xff] %v3554
        %p3683 = scmp.eq.s32.totalorder %s33, 1
        // Predicated region
        $region65: #{feed_forward.1} parent=39 // pred_check
          %p3684 = pneg %p3683
        $region66: #{feed_forward.1} parent=39 // pred_check_branch
          %3686 = sbr.rel (%p3684) target = $region68
        $region67: #{feed_forward.1} parent=39 // pred_region
          %v3687 = vld [vmem:[#allocation2] sm:$0xff]
          %v3688 = vld [vmem:[#allocation2 + $0x8] sm:$0xff]
          %v3689 = vld [vmem:[#allocation2 + $0x10] sm:$0xff]
          %v3690 = vld [vmem:[#allocation2 + $0x18] sm:$0xff]
          %v3691 = vld [vmem:[#allocation2 + $0x20] sm:$0xff]
          %v3692 = vld [vmem:[#allocation2 + $0x28] sm:$0xff]
          %v3693 = vld [vmem:[#allocation2 + $0x30] sm:$0xff]
          %v3694 = vld [vmem:[#allocation2 + $0x38] sm:$0xff]
          %v3695 = vld [vmem:[#allocation2 + $0x40] sm:$0xff]
          %v3696 = vld [vmem:[#allocation2 + $0x48] sm:$0xff]
          %v3697 = vld [vmem:[#allocation2 + $0x50] sm:$0xff]
          %v3698 = vld [vmem:[#allocation2 + $0x58] sm:$0xff]
          %v3699 = vld [vmem:[#allocation2 + $0x60] sm:$0xff]
          %v3700 = vld [vmem:[#allocation2 + $0x68] sm:$0xff]
          %v3701 = vld [vmem:[#allocation2 + $0x70] sm:$0xff]
          %v3702 = vld [vmem:[#allocation2 + $0x78] sm:$0xff]
          %v3703 = vld [vmem:[#allocation2 + $0x80] sm:$0xff]
          %v3704 = vld [vmem:[#allocation2 + $0x88] sm:$0xff]
          %v3705 = vld [vmem:[#allocation2 + $0x90] sm:$0xff]
          %v3706 = vld [vmem:[#allocation2 + $0x98] sm:$0xff]
          %v3707 = vld [vmem:[#allocation2 + $0xa0] sm:$0xff]
          %v3708 = vld [vmem:[#allocation2 + $0xa8] sm:$0xff]
          %v3709 = vld [vmem:[#allocation2 + $0xb0] sm:$0xff]
          %v3710 = vld [vmem:[#allocation2 + $0xb8] sm:$0xff]
          %v3711 = vld [vmem:[#allocation2 + $0xc0] sm:$0xff]
          %v3712 = vld [vmem:[#allocation2 + $0xc8] sm:$0xff]
          %v3713 = vld [vmem:[#allocation2 + $0xd0] sm:$0xff]
          %v3714 = vld [vmem:[#allocation2 + $0xd8] sm:$0xff]
          %v3715 = vld [vmem:[#allocation2 + $0xe0] sm:$0xff]
          %v3716 = vld [vmem:[#allocation2 + $0xe8] sm:$0xff]
          %v3717 = vld [vmem:[#allocation2 + $0xf0] sm:$0xff]
          %v3718 = vld [vmem:[#allocation2 + $0xf8] sm:$0xff]
          %v3719 = vld [vmem:[#allocation2 + $0x100] sm:$0xff]
          %v3720 = vld [vmem:[#allocation2 + $0x108] sm:$0xff]
          %v3721 = vld [vmem:[#allocation2 + $0x110] sm:$0xff]
          %v3722 = vld [vmem:[#allocation2 + $0x118] sm:$0xff]
          %v3723 = vld [vmem:[#allocation2 + $0x120] sm:$0xff]
          %v3724 = vld [vmem:[#allocation2 + $0x128] sm:$0xff]
          %v3725 = vld [vmem:[#allocation2 + $0x130] sm:$0xff]
          %v3726 = vld [vmem:[#allocation2 + $0x138] sm:$0xff]
          %v3727 = vld [vmem:[#allocation2 + $0x140] sm:$0xff]
          %v3728 = vld [vmem:[#allocation2 + $0x148] sm:$0xff]
          %v3729 = vld [vmem:[#allocation2 + $0x150] sm:$0xff]
          %v3730 = vld [vmem:[#allocation2 + $0x158] sm:$0xff]
          %v3731 = vld [vmem:[#allocation2 + $0x160] sm:$0xff]
          %v3732 = vld [vmem:[#allocation2 + $0x168] sm:$0xff]
          %v3733 = vld [vmem:[#allocation2 + $0x170] sm:$0xff]
          %v3734 = vld [vmem:[#allocation2 + $0x178] sm:$0xff]
          %v3735 = vld [vmem:[#allocation2 + $0x180] sm:$0xff]
          %v3736 = vld [vmem:[#allocation2 + $0x188] sm:$0xff]
          %v3737 = vld [vmem:[#allocation2 + $0x190] sm:$0xff]
          %v3738 = vld [vmem:[#allocation2 + $0x198] sm:$0xff]
          %v3739 = vld [vmem:[#allocation2 + $0x1a0] sm:$0xff]
          %v3740 = vld [vmem:[#allocation2 + $0x1a8] sm:$0xff]
          %v3741 = vld [vmem:[#allocation2 + $0x1b0] sm:$0xff]
          %v3742 = vld [vmem:[#allocation2 + $0x1b8] sm:$0xff]
          %v3743 = vld [vmem:[#allocation2 + $0x1c0] sm:$0xff]
          %v3744 = vld [vmem:[#allocation2 + $0x1c8] sm:$0xff]
          %v3745 = vld [vmem:[#allocation2 + $0x1d0] sm:$0xff]
          %v3746 = vld [vmem:[#allocation2 + $0x1d8] sm:$0xff]
          %v3747 = vld [vmem:[#allocation2 + $0x1e0] sm:$0xff]
          %v3748 = vld [vmem:[#allocation2 + $0x1e8] sm:$0xff]
          %v3749 = vld [vmem:[#allocation2 + $0x1f0] sm:$0xff]
          %v3750 = vld [vmem:[#allocation2 + $0x1f8] sm:$0xff]
          %v3751 = vld [vmem:[#allocation2 + $0x200] sm:$0xff]
          %v3752 = vld [vmem:[#allocation2 + $0x208] sm:$0xff]
          %v3753 = vld [vmem:[#allocation2 + $0x210] sm:$0xff]
          %v3754 = vld [vmem:[#allocation2 + $0x218] sm:$0xff]
          %v3755 = vld [vmem:[#allocation2 + $0x220] sm:$0xff]
          %v3756 = vld [vmem:[#allocation2 + $0x228] sm:$0xff]
          %v3757 = vld [vmem:[#allocation2 + $0x230] sm:$0xff]
          %v3758 = vld [vmem:[#allocation2 + $0x238] sm:$0xff]
          %v3759 = vld [vmem:[#allocation2 + $0x240] sm:$0xff]
          %v3760 = vld [vmem:[#allocation2 + $0x248] sm:$0xff]
          %v3761 = vld [vmem:[#allocation2 + $0x250] sm:$0xff]
          %v3762 = vld [vmem:[#allocation2 + $0x258] sm:$0xff]
          %v3763 = vld [vmem:[#allocation2 + $0x260] sm:$0xff]
          %v3764 = vld [vmem:[#allocation2 + $0x268] sm:$0xff]
          %v3765 = vld [vmem:[#allocation2 + $0x270] sm:$0xff]
          %v3766 = vld [vmem:[#allocation2 + $0x278] sm:$0xff]
          %v3767 = vld [vmem:[#allocation2 + $0x280] sm:$0xff]
          %v3768 = vld [vmem:[#allocation2 + $0x288] sm:$0xff]
          %v3769 = vld [vmem:[#allocation2 + $0x290] sm:$0xff]
          %v3770 = vld [vmem:[#allocation2 + $0x298] sm:$0xff]
          %v3771 = vld [vmem:[#allocation2 + $0x2a0] sm:$0xff]
          %v3772 = vld [vmem:[#allocation2 + $0x2a8] sm:$0xff]
          %v3773 = vld [vmem:[#allocation2 + $0x2b0] sm:$0xff]
          %v3774 = vld [vmem:[#allocation2 + $0x2b8] sm:$0xff]
          %v3775 = vld [vmem:[#allocation2 + $0x2c0] sm:$0xff]
          %v3776 = vld [vmem:[#allocation2 + $0x2c8] sm:$0xff]
          %v3777 = vld [vmem:[#allocation2 + $0x2d0] sm:$0xff]
          %v3778 = vld [vmem:[#allocation2 + $0x2d8] sm:$0xff]
          %v3779 = vld [vmem:[#allocation2 + $0x2e0] sm:$0xff]
          %v3780 = vld [vmem:[#allocation2 + $0x2e8] sm:$0xff]
          %v3781 = vld [vmem:[#allocation2 + $0x2f0] sm:$0xff]
          %v3782 = vld [vmem:[#allocation2 + $0x2f8] sm:$0xff]
          %v3783 = vld [vmem:[#allocation2 + $0x300] sm:$0xff]
          %v3784 = vld [vmem:[#allocation2 + $0x308] sm:$0xff]
          %v3785 = vld [vmem:[#allocation2 + $0x310] sm:$0xff]
          %v3786 = vld [vmem:[#allocation2 + $0x318] sm:$0xff]
          %v3787 = vld [vmem:[#allocation2 + $0x320] sm:$0xff]
          %v3788 = vld [vmem:[#allocation2 + $0x328] sm:$0xff]
          %v3789 = vld [vmem:[#allocation2 + $0x330] sm:$0xff]
          %v3790 = vld [vmem:[#allocation2 + $0x338] sm:$0xff]
          %v3791 = vld [vmem:[#allocation2 + $0x340] sm:$0xff]
          %v3792 = vld [vmem:[#allocation2 + $0x348] sm:$0xff]
          %v3793 = vld [vmem:[#allocation2 + $0x350] sm:$0xff]
          %v3794 = vld [vmem:[#allocation2 + $0x358] sm:$0xff]
          %v3795 = vld [vmem:[#allocation2 + $0x360] sm:$0xff]
          %v3796 = vld [vmem:[#allocation2 + $0x368] sm:$0xff]
          %v3797 = vld [vmem:[#allocation2 + $0x370] sm:$0xff]
          %v3798 = vld [vmem:[#allocation2 + $0x378] sm:$0xff]
          %v3799 = vld [vmem:[#allocation2 + $0x380] sm:$0xff]
          %v3800 = vld [vmem:[#allocation2 + $0x388] sm:$0xff]
          %v3801 = vld [vmem:[#allocation2 + $0x390] sm:$0xff]
          %v3802 = vld [vmem:[#allocation2 + $0x398] sm:$0xff]
          %v3803 = vld [vmem:[#allocation2 + $0x3a0] sm:$0xff]
          %v3804 = vld [vmem:[#allocation2 + $0x3a8] sm:$0xff]
          %v3805 = vld [vmem:[#allocation2 + $0x3b0] sm:$0xff]
          %v3806 = vld [vmem:[#allocation2 + $0x3b8] sm:$0xff]
          %v3807 = vld [vmem:[#allocation2 + $0x3c0] sm:$0xff]
          %v3808 = vld [vmem:[#allocation2 + $0x3c8] sm:$0xff]
          %v3809 = vld [vmem:[#allocation2 + $0x3d0] sm:$0xff]
          %v3810 = vld [vmem:[#allocation2 + $0x3d8] sm:$0xff]
          %v3811 = vld [vmem:[#allocation2 + $0x3e0] sm:$0xff]
          %v3812 = vld [vmem:[#allocation2 + $0x3e8] sm:$0xff]
          %v3813 = vld [vmem:[#allocation2 + $0x3f0] sm:$0xff]
          %v3814 = vld [vmem:[#allocation2 + $0x3f8] sm:$0xff]
          %v3815 = vld [vmem:[#allocation11] sm:$0x3]
          %v3817 = vlaneseq
          %v3818 = vshrl.u32 %v3817, 7
          %v3819 = vsub.s32 0, %v3818
          %v3820 = vrot.slane %v3815, %v3819
          %v3821 = vlaneseq
          %v3822 = vshrl.u32 %v3821, 7
          %v3823 = vsub.s32 1, %v3822
          %v3824 = vrot.slane %v3815, %v3823
          %v3827 = vadd.f32 %v3687, %v3820
          %v3828 = vadd.f32 %v3688, %v3824
          %v3829 = vadd.f32 %v3689, %v3820
          %v3830 = vadd.f32 %v3690, %v3824
          %v3831 = vadd.f32 %v3691, %v3820
          %v3832 = vadd.f32 %v3692, %v3824
          %v3833 = vadd.f32 %v3693, %v3820
          %v3834 = vadd.f32 %v3694, %v3824
          %v3835 = vadd.f32 %v3695, %v3820
          %v3836 = vadd.f32 %v3696, %v3824
          %v3837 = vadd.f32 %v3697, %v3820
          %v3838 = vadd.f32 %v3698, %v3824
          %v3839 = vadd.f32 %v3699, %v3820
          %v3840 = vadd.f32 %v3700, %v3824
          %v3841 = vadd.f32 %v3701, %v3820
          %v3842 = vadd.f32 %v3702, %v3824
          %v3843 = vadd.f32 %v3703, %v3820
          %v3844 = vadd.f32 %v3704, %v3824
          %v3845 = vadd.f32 %v3705, %v3820
          %v3846 = vadd.f32 %v3706, %v3824
          %v3847 = vadd.f32 %v3707, %v3820
          %v3848 = vadd.f32 %v3708, %v3824
          %v3849 = vadd.f32 %v3709, %v3820
          %v3850 = vadd.f32 %v3710, %v3824
          %v3851 = vadd.f32 %v3711, %v3820
          %v3852 = vadd.f32 %v3712, %v3824
          %v3853 = vadd.f32 %v3713, %v3820
          %v3854 = vadd.f32 %v3714, %v3824
          %v3855 = vadd.f32 %v3715, %v3820
          %v3856 = vadd.f32 %v3716, %v3824
          %v3857 = vadd.f32 %v3717, %v3820
          %v3858 = vadd.f32 %v3718, %v3824
          %v3859 = vadd.f32 %v3719, %v3820
          %v3860 = vadd.f32 %v3720, %v3824
          %v3861 = vadd.f32 %v3721, %v3820
          %v3862 = vadd.f32 %v3722, %v3824
          %v3863 = vadd.f32 %v3723, %v3820
          %v3864 = vadd.f32 %v3724, %v3824
          %v3865 = vadd.f32 %v3725, %v3820
          %v3866 = vadd.f32 %v3726, %v3824
          %v3867 = vadd.f32 %v3727, %v3820
          %v3868 = vadd.f32 %v3728, %v3824
          %v3869 = vadd.f32 %v3729, %v3820
          %v3870 = vadd.f32 %v3730, %v3824
          %v3871 = vadd.f32 %v3731, %v3820
          %v3872 = vadd.f32 %v3732, %v3824
          %v3873 = vadd.f32 %v3733, %v3820
          %v3874 = vadd.f32 %v3734, %v3824
          %v3875 = vadd.f32 %v3735, %v3820
          %v3876 = vadd.f32 %v3736, %v3824
          %v3877 = vadd.f32 %v3737, %v3820
          %v3878 = vadd.f32 %v3738, %v3824
          %v3879 = vadd.f32 %v3739, %v3820
          %v3880 = vadd.f32 %v3740, %v3824
          %v3881 = vadd.f32 %v3741, %v3820
          %v3882 = vadd.f32 %v3742, %v3824
          %v3883 = vadd.f32 %v3743, %v3820
          %v3884 = vadd.f32 %v3744, %v3824
          %v3885 = vadd.f32 %v3745, %v3820
          %v3886 = vadd.f32 %v3746, %v3824
          %v3887 = vadd.f32 %v3747, %v3820
          %v3888 = vadd.f32 %v3748, %v3824
          %v3889 = vadd.f32 %v3749, %v3820
          %v3890 = vadd.f32 %v3750, %v3824
          %v3891 = vadd.f32 %v3751, %v3820
          %v3892 = vadd.f32 %v3752, %v3824
          %v3893 = vadd.f32 %v3753, %v3820
          %v3894 = vadd.f32 %v3754, %v3824
          %v3895 = vadd.f32 %v3755, %v3820
          %v3896 = vadd.f32 %v3756, %v3824
          %v3897 = vadd.f32 %v3757, %v3820
          %v3898 = vadd.f32 %v3758, %v3824
          %v3899 = vadd.f32 %v3759, %v3820
          %v3900 = vadd.f32 %v3760, %v3824
          %v3901 = vadd.f32 %v3761, %v3820
          %v3902 = vadd.f32 %v3762, %v3824
          %v3903 = vadd.f32 %v3763, %v3820
          %v3904 = vadd.f32 %v3764, %v3824
          %v3905 = vadd.f32 %v3765, %v3820
          %v3906 = vadd.f32 %v3766, %v3824
          %v3907 = vadd.f32 %v3767, %v3820
          %v3908 = vadd.f32 %v3768, %v3824
          %v3909 = vadd.f32 %v3769, %v3820
          %v3910 = vadd.f32 %v3770, %v3824
          %v3911 = vadd.f32 %v3771, %v3820
          %v3912 = vadd.f32 %v3772, %v3824
          %v3913 = vadd.f32 %v3773, %v3820
          %v3914 = vadd.f32 %v3774, %v3824
          %v3915 = vadd.f32 %v3775, %v3820
          %v3916 = vadd.f32 %v3776, %v3824
          %v3917 = vadd.f32 %v3777, %v3820
          %v3918 = vadd.f32 %v3778, %v3824
          %v3919 = vadd.f32 %v3779, %v3820
          %v3920 = vadd.f32 %v3780, %v3824
          %v3921 = vadd.f32 %v3781, %v3820
          %v3922 = vadd.f32 %v3782, %v3824
          %v3923 = vadd.f32 %v3783, %v3820
          %v3924 = vadd.f32 %v3784, %v3824
          %v3925 = vadd.f32 %v3785, %v3820
          %v3926 = vadd.f32 %v3786, %v3824
          %v3927 = vadd.f32 %v3787, %v3820
          %v3928 = vadd.f32 %v3788, %v3824
          %v3929 = vadd.f32 %v3789, %v3820
          %v3930 = vadd.f32 %v3790, %v3824
          %v3931 = vadd.f32 %v3791, %v3820
          %v3932 = vadd.f32 %v3792, %v3824
          %v3933 = vadd.f32 %v3793, %v3820
          %v3934 = vadd.f32 %v3794, %v3824
          %v3935 = vadd.f32 %v3795, %v3820
          %v3936 = vadd.f32 %v3796, %v3824
          %v3937 = vadd.f32 %v3797, %v3820
          %v3938 = vadd.f32 %v3798, %v3824
          %v3939 = vadd.f32 %v3799, %v3820
          %v3940 = vadd.f32 %v3800, %v3824
          %v3941 = vadd.f32 %v3801, %v3820
          %v3942 = vadd.f32 %v3802, %v3824
          %v3943 = vadd.f32 %v3803, %v3820
          %v3944 = vadd.f32 %v3804, %v3824
          %v3945 = vadd.f32 %v3805, %v3820
          %v3946 = vadd.f32 %v3806, %v3824
          %v3947 = vadd.f32 %v3807, %v3820
          %v3948 = vadd.f32 %v3808, %v3824
          %v3949 = vadd.f32 %v3809, %v3820
          %v3950 = vadd.f32 %v3810, %v3824
          %v3951 = vadd.f32 %v3811, %v3820
          %v3952 = vadd.f32 %v3812, %v3824
          %v3953 = vadd.f32 %v3813, %v3820
          %v3954 = vadd.f32 %v3814, %v3824
          %3955 = vst [vmem:[%s383] sm:$0xff] %v3827
          %3956 = vst [vmem:[%s383 + $0x8] sm:$0xff] %v3828
          %3957 = vst [vmem:[%s383 + $0x10] sm:$0xff] %v3829
          %3958 = vst [vmem:[%s383 + $0x18] sm:$0xff] %v3830
          %3959 = vst [vmem:[%s383 + $0x20] sm:$0xff] %v3831
          %3960 = vst [vmem:[%s383 + $0x28] sm:$0xff] %v3832
          %3961 = vst [vmem:[%s383 + $0x30] sm:$0xff] %v3833
          %3962 = vst [vmem:[%s383 + $0x38] sm:$0xff] %v3834
          %3963 = vst [vmem:[%s383 + $0x40] sm:$0xff] %v3835
          %3964 = vst [vmem:[%s383 + $0x48] sm:$0xff] %v3836
          %3965 = vst [vmem:[%s383 + $0x50] sm:$0xff] %v3837
          %3966 = vst [vmem:[%s383 + $0x58] sm:$0xff] %v3838
          %3967 = vst [vmem:[%s383 + $0x60] sm:$0xff] %v3839
          %3968 = vst [vmem:[%s383 + $0x68] sm:$0xff] %v3840
          %3969 = vst [vmem:[%s383 + $0x70] sm:$0xff] %v3841
          %3970 = vst [vmem:[%s383 + $0x78] sm:$0xff] %v3842
          %3971 = vst [vmem:[%s383 + $0x80] sm:$0xff] %v3843
          %3972 = vst [vmem:[%s383 + $0x88] sm:$0xff] %v3844
          %3973 = vst [vmem:[%s383 + $0x90] sm:$0xff] %v3845
          %3974 = vst [vmem:[%s383 + $0x98] sm:$0xff] %v3846
          %3975 = vst [vmem:[%s383 + $0xa0] sm:$0xff] %v3847
          %3976 = vst [vmem:[%s383 + $0xa8] sm:$0xff] %v3848
          %3977 = vst [vmem:[%s383 + $0xb0] sm:$0xff] %v3849
          %3978 = vst [vmem:[%s383 + $0xb8] sm:$0xff] %v3850
          %3979 = vst [vmem:[%s383 + $0xc0] sm:$0xff] %v3851
          %3980 = vst [vmem:[%s383 + $0xc8] sm:$0xff] %v3852
          %3981 = vst [vmem:[%s383 + $0xd0] sm:$0xff] %v3853
          %3982 = vst [vmem:[%s383 + $0xd8] sm:$0xff] %v3854
          %3983 = vst [vmem:[%s383 + $0xe0] sm:$0xff] %v3855
          %3984 = vst [vmem:[%s383 + $0xe8] sm:$0xff] %v3856
          %3985 = vst [vmem:[%s383 + $0xf0] sm:$0xff] %v3857
          %3986 = vst [vmem:[%s383 + $0xf8] sm:$0xff] %v3858
          %3987 = vst [vmem:[%s383 + $0x100] sm:$0xff] %v3859
          %3988 = vst [vmem:[%s383 + $0x108] sm:$0xff] %v3860
          %3989 = vst [vmem:[%s383 + $0x110] sm:$0xff] %v3861
          %3990 = vst [vmem:[%s383 + $0x118] sm:$0xff] %v3862
          %3991 = vst [vmem:[%s383 + $0x120] sm:$0xff] %v3863
          %3992 = vst [vmem:[%s383 + $0x128] sm:$0xff] %v3864
          %3993 = vst [vmem:[%s383 + $0x130] sm:$0xff] %v3865
          %3994 = vst [vmem:[%s383 + $0x138] sm:$0xff] %v3866
          %3995 = vst [vmem:[%s383 + $0x140] sm:$0xff] %v3867
          %3996 = vst [vmem:[%s383 + $0x148] sm:$0xff] %v3868
          %3997 = vst [vmem:[%s383 + $0x150] sm:$0xff] %v3869
          %3998 = vst [vmem:[%s383 + $0x158] sm:$0xff] %v3870
          %3999 = vst [vmem:[%s383 + $0x160] sm:$0xff] %v3871
          %4000 = vst [vmem:[%s383 + $0x168] sm:$0xff] %v3872
          %4001 = vst [vmem:[%s383 + $0x170] sm:$0xff] %v3873
          %4002 = vst [vmem:[%s383 + $0x178] sm:$0xff] %v3874
          %4003 = vst [vmem:[%s383 + $0x180] sm:$0xff] %v3875
          %4004 = vst [vmem:[%s383 + $0x188] sm:$0xff] %v3876
          %4005 = vst [vmem:[%s383 + $0x190] sm:$0xff] %v3877
          %4006 = vst [vmem:[%s383 + $0x198] sm:$0xff] %v3878
          %4007 = vst [vmem:[%s383 + $0x1a0] sm:$0xff] %v3879
          %4008 = vst [vmem:[%s383 + $0x1a8] sm:$0xff] %v3880
          %4009 = vst [vmem:[%s383 + $0x1b0] sm:$0xff] %v3881
          %4010 = vst [vmem:[%s383 + $0x1b8] sm:$0xff] %v3882
          %4011 = vst [vmem:[%s383 + $0x1c0] sm:$0xff] %v3883
          %4012 = vst [vmem:[%s383 + $0x1c8] sm:$0xff] %v3884
          %4013 = vst [vmem:[%s383 + $0x1d0] sm:$0xff] %v3885
          %4014 = vst [vmem:[%s383 + $0x1d8] sm:$0xff] %v3886
          %4015 = vst [vmem:[%s383 + $0x1e0] sm:$0xff] %v3887
          %4016 = vst [vmem:[%s383 + $0x1e8] sm:$0xff] %v3888
          %4017 = vst [vmem:[%s383 + $0x1f0] sm:$0xff] %v3889
          %4018 = vst [vmem:[%s383 + $0x1f8] sm:$0xff] %v3890
          %4019 = vst [vmem:[%s383 + $0x200] sm:$0xff] %v3891
          %4020 = vst [vmem:[%s383 + $0x208] sm:$0xff] %v3892
          %4021 = vst [vmem:[%s383 + $0x210] sm:$0xff] %v3893
          %4022 = vst [vmem:[%s383 + $0x218] sm:$0xff] %v3894
          %4023 = vst [vmem:[%s383 + $0x220] sm:$0xff] %v3895
          %4024 = vst [vmem:[%s383 + $0x228] sm:$0xff] %v3896
          %4025 = vst [vmem:[%s383 + $0x230] sm:$0xff] %v3897
          %4026 = vst [vmem:[%s383 + $0x238] sm:$0xff] %v3898
          %4027 = vst [vmem:[%s383 + $0x240] sm:$0xff] %v3899
          %4028 = vst [vmem:[%s383 + $0x248] sm:$0xff] %v3900
          %4029 = vst [vmem:[%s383 + $0x250] sm:$0xff] %v3901
          %4030 = vst [vmem:[%s383 + $0x258] sm:$0xff] %v3902
          %4031 = vst [vmem:[%s383 + $0x260] sm:$0xff] %v3903
          %4032 = vst [vmem:[%s383 + $0x268] sm:$0xff] %v3904
          %4033 = vst [vmem:[%s383 + $0x270] sm:$0xff] %v3905
          %4034 = vst [vmem:[%s383 + $0x278] sm:$0xff] %v3906
          %4035 = vst [vmem:[%s383 + $0x280] sm:$0xff] %v3907
          %4036 = vst [vmem:[%s383 + $0x288] sm:$0xff] %v3908
          %4037 = vst [vmem:[%s383 + $0x290] sm:$0xff] %v3909
          %4038 = vst [vmem:[%s383 + $0x298] sm:$0xff] %v3910
          %4039 = vst [vmem:[%s383 + $0x2a0] sm:$0xff] %v3911
          %4040 = vst [vmem:[%s383 + $0x2a8] sm:$0xff] %v3912
          %4041 = vst [vmem:[%s383 + $0x2b0] sm:$0xff] %v3913
          %4042 = vst [vmem:[%s383 + $0x2b8] sm:$0xff] %v3914
          %4043 = vst [vmem:[%s383 + $0x2c0] sm:$0xff] %v3915
          %4044 = vst [vmem:[%s383 + $0x2c8] sm:$0xff] %v3916
          %4045 = vst [vmem:[%s383 + $0x2d0] sm:$0xff] %v3917
          %4046 = vst [vmem:[%s383 + $0x2d8] sm:$0xff] %v3918
          %4047 = vst [vmem:[%s383 + $0x2e0] sm:$0xff] %v3919
          %4048 = vst [vmem:[%s383 + $0x2e8] sm:$0xff] %v3920
          %4049 = vst [vmem:[%s383 + $0x2f0] sm:$0xff] %v3921
          %4050 = vst [vmem:[%s383 + $0x2f8] sm:$0xff] %v3922
          %4051 = vst [vmem:[%s383 + $0x300] sm:$0xff] %v3923
          %4052 = vst [vmem:[%s383 + $0x308] sm:$0xff] %v3924
          %4053 = vst [vmem:[%s383 + $0x310] sm:$0xff] %v3925
          %4054 = vst [vmem:[%s383 + $0x318] sm:$0xff] %v3926
          %4055 = vst [vmem:[%s383 + $0x320] sm:$0xff] %v3927
          %4056 = vst [vmem:[%s383 + $0x328] sm:$0xff] %v3928
          %4057 = vst [vmem:[%s383 + $0x330] sm:$0xff] %v3929
          %4058 = vst [vmem:[%s383 + $0x338] sm:$0xff] %v3930
          %4059 = vst [vmem:[%s383 + $0x340] sm:$0xff] %v3931
          %4060 = vst [vmem:[%s383 + $0x348] sm:$0xff] %v3932
          %4061 = vst [vmem:[%s383 + $0x350] sm:$0xff] %v3933
          %4062 = vst [vmem:[%s383 + $0x358] sm:$0xff] %v3934
          %4063 = vst [vmem:[%s383 + $0x360] sm:$0xff] %v3935
          %4064 = vst [vmem:[%s383 + $0x368] sm:$0xff] %v3936
          %4065 = vst [vmem:[%s383 + $0x370] sm:$0xff] %v3937
          %4066 = vst [vmem:[%s383 + $0x378] sm:$0xff] %v3938
          %4067 = vst [vmem:[%s383 + $0x380] sm:$0xff] %v3939
          %4068 = vst [vmem:[%s383 + $0x388] sm:$0xff] %v3940
          %4069 = vst [vmem:[%s383 + $0x390] sm:$0xff] %v3941
          %4070 = vst [vmem:[%s383 + $0x398] sm:$0xff] %v3942
          %4071 = vst [vmem:[%s383 + $0x3a0] sm:$0xff] %v3943
          %4072 = vst [vmem:[%s383 + $0x3a8] sm:$0xff] %v3944
          %4073 = vst [vmem:[%s383 + $0x3b0] sm:$0xff] %v3945
          %4074 = vst [vmem:[%s383 + $0x3b8] sm:$0xff] %v3946
          %4075 = vst [vmem:[%s383 + $0x3c0] sm:$0xff] %v3947
          %4076 = vst [vmem:[%s383 + $0x3c8] sm:$0xff] %v3948
          %4077 = vst [vmem:[%s383 + $0x3d0] sm:$0xff] %v3949
          %4078 = vst [vmem:[%s383 + $0x3d8] sm:$0xff] %v3950
          %4079 = vst [vmem:[%s383 + $0x3e0] sm:$0xff] %v3951
          %4080 = vst [vmem:[%s383 + $0x3e8] sm:$0xff] %v3952
          %4081 = vst [vmem:[%s383 + $0x3f0] sm:$0xff] %v3953
          %4082 = vst [vmem:[%s383 + $0x3f8] sm:$0xff] %v3954
        $region68: #{feed_forward.1} parent=39 // pred_fallthru
          _
        %s4083 = sand.u32 %s173, 1
        %s4084 = scalar_lea.sflag [#allocation5], %s4083
        %s4085 = sand.u32 %s173, 1
        %s4086 = smul.addr %s4085, 1024
        %s4087 = scalar_lea.vmem [#allocation12], %s4086
        // Predicated region
        $region69: #{feed_forward.1} parent=39 // pred_check
          %p4088 = pneg %p183
        $region70: #{feed_forward.1} parent=39 // pred_check_branch
          %4090 = sbr.rel (%p4088) target = $region72
        $region71: #{feed_forward.1} parent=39 // pred_region
          %s4091 = smul.u32 64, %s32
          %s4093 = ssub.s32 16384, 16384
          %4094 = vsyncadd %s4084, %s4093
          %s4095 = smul.addr %s4091, 2
          %s4096 = smul.addr %s4095, 128
          %s4097 = scalar_lea.hbm %s5, %s4096
          %s4098 = sshll.u32 %s4087, 4
          %s4099 = int_to_ptr.vmem [resolvable:$true] %s4098
          %4104 = dma.vmem_to_hbm [thread:$0]  %s4099, 16384, %s4097, %s4084, 256, 256, 16
        $region72: #{feed_forward.1} parent=39 // pred_fallthru
          _
      $region40: #{feed_forward.1} parent=5 // pred_fallthru
        _
      %p4105 = scmp.le.s32.totalorder 2, %s23
      // Predicated region
      $region73: #{feed_forward.1} parent=5 // pred_check
        %p4106 = pneg %p4105
      $region74: #{feed_forward.1} parent=5 // pred_check_branch
        %4108 = sbr.rel (%p4106) target = $region76
      $region75: #{feed_forward.1} parent=5 // pred_region
        %s4109 = ssub.s32 %s23, 2
        // Predicated region
        $region77: #{feed_forward.1} parent=75 // pred_check
          %p4110 = pneg %p189
        $region78: #{feed_forward.1} parent=75 // pred_check_branch
          %4112 = sbr.rel (%p4110) target = $region80
        $region79: #{feed_forward.1} parent=75 // pred_region
          %s4113 = sand.u32 %s174, 1
          %s4114 = scalar_lea.sflag [#allocation5], %s4113
          %s4115 = sand.u32 %s174, 1
          %s4116 = smul.addr %s4115, 1024
          %s4117 = scalar_lea.vmem [#allocation12], %s4116
          %4118 = dma.done %s4114, 16384
        $region80: #{feed_forward.1} parent=75 // pred_fallthru
          _
      $region76: #{feed_forward.1} parent=5 // pred_fallthru
        _
    $region6: #{feed_forward.1} parent=1 // loop_footer
      %s27 = sadd.s32 1, %s23
    $region7: #{feed_forward.1} parent=1 // loop_footer_branch
      %22 = sbr.rel target = $region3
    $region8: #{feed_forward.1} parent=1 // loop_exit
      _
    %4119 = vsyncpa [#allocation4], 1
    %s4120 = scalar_lea.sflag [#allocation4], 1
    %4121 = vsyncpa %s4120, 1
    %4122 = vsyncpa [#allocation7], 1
    %s4123 = scalar_lea.sflag [#allocation7], 1
    %4124 = vsyncpa %s4123, 1
    %4125 = vsyncpa [#allocation10], 1
    %s4126 = scalar_lea.sflag [#allocation10], 1
    %4127 = vsyncpa %s4126, 1
    %4128 = vsyncpa [#allocation5], 1
    %s4129 = scalar_lea.sflag [#allocation5], 1
    %4130 = vsyncpa %s4129, 1

</llo_original>
